<compile_context>
chip_gen: v7x
topology: tpu7x:2x2x1
jax: 0.10.0
libtpu: 0.0.40
codegen_flags: <defaults>
</compile_context>

<pallas_src>
import jax
import jax.numpy as jnp
from jax import lax
from jax.experimental import pallas as pl
from jax.experimental.pallas import tpu as pltpu

EPS_LN = 1e-6
EPS_GRN = 1e-6
DW_K = 7              # depthwise kernel size (padding 3)
PW_K = 3              # final conv kernel size (padding 1)
DW_PAD = DW_K // 2    # 3
PW_PAD = PW_K // 2    # 1


def _round_up(n, m):
    return (n + m - 1) // m * m


def dw_grn_conv_pallas(x_nchw, ln_w, ln_b, dw_w, dw_b, gamma, beta, cw, cb):
    """x_nchw: (B, C, H, W) float32; parameters in PyTorch layouts."""
    B, C, H, W = x_nchw.shape
    Cout = cb.shape[0]

    Hp, Wp = H + 2 * DW_PAD, W + 2 * DW_PAD   # zero-padded canvas, row stride Wp
    S = Hp * Wp                               # flattened canvas length (lane axis)
    L = (H - 1) * Wp + W                      # flat window holding all valid pixels
    W0 = DW_PAD * Wp + DW_PAD                 # canvas offset of image pixel (0, 0)
    Lc = _round_up(H * Wp, 128)               # lane-dense output row length (>= L)
    P0 = _round_up(Wp + 1, 128)               # lane-aligned offset of z window in z canvas
    Sz = _round_up(P0 + Wp + 1 + Lc, 128)     # z canvas length covering all 3x3 taps

    # ---- wrapper-side prep: contiguous pad + reshape (no transposes) ----
    xp = jnp.pad(x_nchw, ((0, 0), (0, 0), (DW_PAD, DW_PAD), (DW_PAD, DW_PAD)))
    xf = xp.reshape(B, C, S)

    # validity mask over the flat canvas (1 inside the original HxW image).
    idx = jnp.arange(S)
    row, col = idx // Wp, idx % Wp
    valid = ((row >= DW_PAD) & (row < DW_PAD + H) &
             (col >= DW_PAD) & (col < DW_PAD + W)).astype(jnp.float32)
    mask = valid.reshape(1, S)

    # parameters: channels on sublanes, broadcastable along the lane axis.
    lnw = ln_w.reshape(C, 1)
    lnb = ln_b.reshape(C, 1)
    dwb = dw_b.reshape(C, 1)
    gam = gamma.reshape(C, 1)
    bet = beta.reshape(C, 1)
    cbv = cb.reshape(Cout, 1)
    dww = dw_w[:, 0].reshape(C, DW_K * DW_K)                  # (C, 49), tap-minor
    # (Cout, Cin, 3, 3) -> (3, 3, Cout, Cin) -> (9, Cout, Cin); bf16 for the MXU.
    w3 = jnp.transpose(cw, (2, 3, 0, 1)).reshape(PW_K * PW_K, Cout, C)
    w3 = w3.astype(jnp.bfloat16)

    def kernel(x_ref, mask_ref, lnw_ref, lnb_ref, dww_ref, dwb_ref,
               gam_ref, bet_ref, w3_ref, cb_ref, o_ref, xn_ref, z_ref):
        # Zero the z canvas (full, lane-aligned store): halo == conv zero padding.
        z_ref[...] = jnp.zeros_like(z_ref)

        # --- LayerNorm over channels (channels_first), single-pass statistics ---
        x = x_ref[0]                              # (C, S) f32
        u = jnp.mean(x, axis=0, keepdims=True)
        ex2 = jnp.mean(x * x, axis=0, keepdims=True)
        inv = lax.rsqrt(ex2 - u * u + EPS_LN)
        xn = ((x - u) * inv) * lnw_ref[...] + lnb_ref[...]
        # zero the halo (== depthwise conv zero padding) and stage in VMEM.
        xn_ref[...] = xn * mask_ref[...]

        # --- 7x7 depthwise conv: 49 static flat shifts read from the VMEM canvas ---
        y = jnp.zeros((C, L), jnp.float32)
        for ki in range(DW_K):
            for kj in range(DW_K):
                t = ki * DW_K + kj
                off = ki * Wp + kj
                y = y + xn_ref[:, off:off + L] * dww_ref[:, t:t + 1]
        y = y + dwb_ref[...]

        # --- GRN: masked spatial L2 per channel (lane-axis reduction) ---
        mwin = mask_ref[:, W0:W0 + L]             # (1, L) valid-pixel mask on window
        ym = y * mwin
        gx = jnp.sqrt(jnp.sum(ym * ym, axis=1, keepdims=True))       # (C, 1)
        nx = gx / (jnp.mean(gx, axis=0, keepdims=True) + EPS_GRN)    # (C, 1)
        z = ((gam_ref[...] * nx + 1.0) * y + bet_ref[...]) * mwin
        # stage GRN output (bf16) into the zeroed canvas at a lane-aligned offset.
        z_ref[:, P0:P0 + L] = z.astype(jnp.bfloat16)

        # --- 3x3 conv: 9 accumulating (Cout, C) @ (C, Lc) bf16 MXU matmuls ---
        acc = jnp.zeros((Cout, Lc), jnp.float32)
        for ti in range(PW_K):
            for tj in range(PW_K):
                off3 = P0 - (PW_PAD * Wp + PW_PAD) + ti * Wp + tj
                acc = acc + jnp.dot(w3_ref[ti * PW_K + tj],
                                    z_ref[:, off3:off3 + Lc],
                                    preferred_element_type=jnp.float32)
        o_ref[0] = (acc + cb_ref[...]).astype(o_ref.dtype)   # lane-dense store

    # explicit VMEM budget: double-buffered I/O blocks + canvases + live values.
    est = (2 * C * S * 4 + 2 * Cout * Lc * 4        # pipelined in/out blocks
           + C * S * 4 + C * Sz * 2                 # xn (f32) + z (bf16) canvases
           + 8 * C * L * 4 + 4 * Cout * Lc * 4      # working values / accumulator
           + 2 * S * 4)
    vmem_limit = int(min(max(2 * est + (8 << 20), 32 << 20), 48 << 20))

    out_rows = pl.pallas_call(
        kernel,
        out_shape=jax.ShapeDtypeStruct((B, Cout, Lc), jnp.float32),
        grid_spec=pltpu.PrefetchScalarGridSpec(
            num_scalar_prefetch=0,
            grid=(B,),
            in_specs=[
                pl.BlockSpec((1, C, S), lambda b: (b, 0, 0)),
                pl.BlockSpec((1, S), lambda b: (0, 0)),
                pl.BlockSpec((C, 1), lambda b: (0, 0)),
                pl.BlockSpec((C, 1), lambda b: (0, 0)),
                pl.BlockSpec((C, DW_K * DW_K), lambda b: (0, 0)),
                pl.BlockSpec((C, 1), lambda b: (0, 0)),
                pl.BlockSpec((C, 1), lambda b: (0, 0)),
                pl.BlockSpec((C, 1), lambda b: (0, 0)),
                pl.BlockSpec((PW_K * PW_K, Cout, C), lambda b: (0, 0, 0)),
                pl.BlockSpec((Cout, 1), lambda b: (0, 0)),
            ],
            out_specs=pl.BlockSpec((1, Cout, Lc), lambda b: (b, 0, 0)),
            scratch_shapes=[
                pltpu.VMEM((C, S), jnp.float32),      # xn canvas
                pltpu.VMEM((C, Sz), jnp.bfloat16),    # z canvas (3x3 conv input)
            ],
        ),
        # Batch axis stays "parallel" so v7x's two TensorCores split it.
        compiler_params=pltpu.CompilerParams(
            dimension_semantics=("parallel",),
            vmem_limit_bytes=vmem_limit),
    )(xf, mask, lnw, lnb, dww, dwb, gam, bet, w3, cbv)

    # (B, Cout, Lc) -> NCHW: drop lane padding, reshape with row stride Wp, drop halo cols.
    out = out_rows[:, :, :H * Wp].reshape(B, Cout, H, Wp)[:, :, :, :W]
    return out


def dw_grn_conv_ref(x, ln_w, ln_b, dw_w, dw_b, gamma, beta, cw, cb):
    """Pure-JAX reference mirroring the PyTorch forward (NCHW)."""
    C = x.shape[1]
    u = jnp.mean(x, axis=1, keepdims=True)
    s = jnp.mean((x - u) ** 2, axis=1, keepdims=True)
    xn = (x - u) / jnp.sqrt(s + EPS_LN)
    xn = ln_w[None, :, None, None] * xn + ln_b[None, :, None, None]

    y = lax.conv_general_dilated(
        xn, dw_w, (1, 1), [(3, 3), (3, 3)],
        dimension_numbers=('NCHW', 'OIHW', 'NCHW'),
        feature_group_count=C) + dw_b[None, :, None, None]

    yp = jnp.transpose(y, (0, 2, 3, 1))
    gx = jnp.sqrt(jnp.sum(yp * yp, axis=(1, 2), keepdims=True))
    nx = gx / (jnp.mean(gx, axis=-1, keepdims=True) + EPS_GRN)
    zp = gamma[None, None, None, :] * (yp * nx) + beta[None, None, None, :] + yp
    z = jnp.transpose(zp, (0, 3, 1, 2))

    o = lax.conv_general_dilated(
        z, cw, (1, 1), [(1, 1), (1, 1)],
        dimension_numbers=('NCHW', 'OIHW', 'NCHW'))
    return o + cb[None, :, None, None]


if __name__ == "__main__":
    B, Cin, Cout, H, W = 2, 4, 8, 16, 16
    key = jax.random.PRNGKey(0)
    keys = jax.random.split(key, 10)

    x = jax.random.normal(keys[0], (B, Cin, H, W), jnp.float32)

    # Deterministic synthetic parameters (shapes from the module __init__).
    ln_w = 1.0 + 0.1 * jax.random.normal(keys[1], (Cin,), jnp.float32)
    ln_b = 0.1 * jax.random.normal(keys[2], (Cin,), jnp.float32)
    dw_w = 0.1 * jax.random.normal(keys[3], (Cin, 1, 7, 7), jnp.float32)
    dw_b = 0.1 * jax.random.normal(keys[4], (Cin,), jnp.float32)
    gamma = 0.1 * jax.random.normal(keys[5], (Cin,), jnp.float32)   # GRN gamma
    beta = 0.1 * jax.random.normal(keys[6], (Cin,), jnp.float32)    # GRN beta
    cw = 0.1 * jax.random.normal(keys[7], (Cout, Cin, 3, 3), jnp.float32)
    cb = 0.1 * jax.random.normal(keys[8], (Cout,), jnp.float32)

    params = (ln_w, ln_b, dw_w, dw_b, gamma, beta, cw, cb)

    out = dw_grn_conv_pallas(x, *params)
    out = jax.block_until_ready(out)

    ref = jax.block_until_ready(dw_grn_conv_ref(x, *params))
    assert out.shape == (B, Cout, H, W)
    # Tolerance relaxed vs. the pure-f32 version: the 3x3 conv now runs with
    # bf16 MXU operands (f32 accumulation) per the performance review.
    assert jnp.allclose(out, ref, atol=3e-2, rtol=3e-2), \
        f"max abs err {jnp.max(jnp.abs(out - ref))}"

    print("KERNEL_OK")
</pallas_src>

<mosaic_0001>
module attributes {stable_mosaic.version = 11 : i64} {
  func.func @kernel(%arg0: i32, %arg1: memref<1x4x484xf32, #tpu.memory_space<vmem>>, %arg2: memref<1x484xf32, #tpu.memory_space<vmem>>, %arg3: memref<4x1xf32, #tpu.memory_space<vmem>>, %arg4: memref<4x1xf32, #tpu.memory_space<vmem>>, %arg5: memref<4x49xf32, #tpu.memory_space<vmem>>, %arg6: memref<4x1xf32, #tpu.memory_space<vmem>>, %arg7: memref<4x1xf32, #tpu.memory_space<vmem>>, %arg8: memref<4x1xf32, #tpu.memory_space<vmem>>, %arg9: memref<9x8x4xbf16, #tpu.memory_space<vmem>>, %arg10: memref<8x1xf32, #tpu.memory_space<vmem>>, %arg11: memref<1x8x384xf32, #tpu.memory_space<vmem>>, %arg12: memref<4x484xf32, #tpu.memory_space<vmem>>, %arg13: memref<4x640xbf16, #tpu.memory_space<vmem>>) attributes {dimension_semantics = [#tpu.dimension_semantics<parallel>], iteration_bounds = array<i64: 2>, scalar_prefetch = 0 : i64, scratch_operands = 2 : i64, tpu.core_type = #tpu.core_type<tc>, window_params = [{transform_indices = @transform_0, window_bounds = array<i64: 1, 4, 484>}, {pipeline_mode = #tpu.pipeline_mode<synchronous>, transform_indices = @transform_1, window_bounds = array<i64: 1, 484>}, {pipeline_mode = #tpu.pipeline_mode<synchronous>, transform_indices = @transform_2, window_bounds = array<i64: 4, 1>}, {pipeline_mode = #tpu.pipeline_mode<synchronous>, transform_indices = @transform_3, window_bounds = array<i64: 4, 1>}, {pipeline_mode = #tpu.pipeline_mode<synchronous>, transform_indices = @transform_4, window_bounds = array<i64: 4, 49>}, {pipeline_mode = #tpu.pipeline_mode<synchronous>, transform_indices = @transform_5, window_bounds = array<i64: 4, 1>}, {pipeline_mode = #tpu.pipeline_mode<synchronous>, transform_indices = @transform_6, window_bounds = array<i64: 4, 1>}, {pipeline_mode = #tpu.pipeline_mode<synchronous>, transform_indices = @transform_7, window_bounds = array<i64: 4, 1>}, {pipeline_mode = #tpu.pipeline_mode<synchronous>, transform_indices = @transform_8, window_bounds = array<i64: 9, 8, 4>}, {pipeline_mode = #tpu.pipeline_mode<synchronous>, transform_indices = @transform_9, window_bounds = array<i64: 8, 1>}, {transform_indices = @transform_10, window_bounds = array<i64: 1, 8, 384>}]} {
    %cst = arith.constant 0.000000e+00 : bf16
    %0 = vector.broadcast %cst : bf16 to vector<4x640xbf16>
    %c0 = arith.constant 0 : index
    %c0_0 = arith.constant 0 : index
    %1 = vector.load %arg13[%c0, %c0_0] : memref<4x640xbf16, #tpu.memory_space<vmem>>, vector<4x640xbf16>
    tpu.vector_store %arg13[%c0, %c0_0], %0 {strides = array<i32>} : memref<4x640xbf16, #tpu.memory_space<vmem>>, vector<4x640xbf16>,
    %c0_1 = arith.constant 0 : index
    %c0_2 = arith.constant 0 : index
    %c0_3 = arith.constant 0 : index
    %2 = vector.load %arg1[%c0_1, %c0_2, %c0_3] : memref<1x4x484xf32, #tpu.memory_space<vmem>>, vector<1x4x484xf32>
    %3 = vector.shape_cast %2 : vector<1x4x484xf32> to vector<4x484xf32>
    %cst_4 = arith.constant dense<0.000000e+00> : vector<484xf32>
    %4 = vector.multi_reduction <add>, %3, %cst_4 [0] : vector<4x484xf32> to vector<484xf32>
    %5 = vector.shape_cast %4 : vector<484xf32> to vector<1x484xf32>
    %cst_5 = arith.constant 4.000000e+00 : f32
    %6 = vector.broadcast %cst_5 : f32 to vector<1x484xf32>
    %7 = arith.divf %5, %6 : vector<1x484xf32>
    %8 = arith.mulf %3, %3 : vector<4x484xf32>
    %cst_6 = arith.constant dense<0.000000e+00> : vector<484xf32>
    %9 = vector.multi_reduction <add>, %8, %cst_6 [0] : vector<4x484xf32> to vector<484xf32>
    %10 = vector.shape_cast %9 : vector<484xf32> to vector<1x484xf32>
    %cst_7 = arith.constant 4.000000e+00 : f32
    %11 = vector.broadcast %cst_7 : f32 to vector<1x484xf32>
    %12 = arith.divf %10, %11 : vector<1x484xf32>
    %13 = arith.mulf %7, %7 : vector<1x484xf32>
    %14 = arith.subf %12, %13 : vector<1x484xf32>
    %cst_8 = arith.constant 9.99999997E-7 : f32
    %15 = vector.broadcast %cst_8 : f32 to vector<1x484xf32>
    %16 = arith.addf %14, %15 : vector<1x484xf32>
    %17 = math.rsqrt %16 : vector<1x484xf32>
    %18 = vector.broadcast %7 : vector<1x484xf32> to vector<4x484xf32>
    %19 = arith.subf %3, %18 : vector<4x484xf32>
    %20 = vector.broadcast %17 : vector<1x484xf32> to vector<4x484xf32>
    %21 = arith.mulf %19, %20 : vector<4x484xf32>
    %c0_9 = arith.constant 0 : index
    %c0_10 = arith.constant 0 : index
    %22 = vector.load %arg3[%c0_9, %c0_10] : memref<4x1xf32, #tpu.memory_space<vmem>>, vector<4x1xf32>
    %23 = vector.broadcast %22 : vector<4x1xf32> to vector<4x484xf32>
    %24 = arith.mulf %21, %23 : vector<4x484xf32>
    %c0_11 = arith.constant 0 : index
    %c0_12 = arith.constant 0 : index
    %25 = vector.load %arg4[%c0_11, %c0_12] : memref<4x1xf32, #tpu.memory_space<vmem>>, vector<4x1xf32>
    %26 = vector.broadcast %25 : vector<4x1xf32> to vector<4x484xf32>
    %27 = arith.addf %24, %26 : vector<4x484xf32>
    %c0_13 = arith.constant 0 : index
    %c0_14 = arith.constant 0 : index
    %28 = vector.load %arg2[%c0_13, %c0_14] : memref<1x484xf32, #tpu.memory_space<vmem>>, vector<1x484xf32>
    %29 = vector.broadcast %28 : vector<1x484xf32> to vector<4x484xf32>
    %30 = arith.mulf %27, %29 : vector<4x484xf32>
    %c0_15 = arith.constant 0 : index
    %c0_16 = arith.constant 0 : index
    %31 = vector.load %arg12[%c0_15, %c0_16] : memref<4x484xf32, #tpu.memory_space<vmem>>, vector<4x484xf32>
    tpu.vector_store %arg12[%c0_15, %c0_16], %30 {strides = array<i32>} : memref<4x484xf32, #tpu.memory_space<vmem>>, vector<4x484xf32>,
    %cst_17 = arith.constant 0.000000e+00 : f32
    %32 = vector.broadcast %cst_17 : f32 to vector<4x346xf32>
    %c0_18 = arith.constant 0 : index
    %c0_19 = arith.constant 0 : index
    %33 = vector.load %arg12[%c0_18, %c0_19] : memref<4x484xf32, #tpu.memory_space<vmem>>, vector<4x346xf32>
    %c0_20 = arith.constant 0 : index
    %c0_21 = arith.constant 0 : index
    %34 = vector.load %arg5[%c0_20, %c0_21] : memref<4x49xf32, #tpu.memory_space<vmem>>, vector<4x1xf32>
    %35 = vector.broadcast %34 : vector<4x1xf32> to vector<4x346xf32>
    %36 = arith.mulf %33, %35 : vector<4x346xf32>
    %37 = arith.addf %32, %36 : vector<4x346xf32>
    %c0_22 = arith.constant 0 : index
    %c1 = arith.constant 1 : index
    %38 = vector.load %arg12[%c0_22, %c1] : memref<4x484xf32, #tpu.memory_space<vmem>>, vector<4x346xf32>
    %c0_23 = arith.constant 0 : index
    %c1_24 = arith.constant 1 : index
    %39 = vector.load %arg5[%c0_23, %c1_24] : memref<4x49xf32, #tpu.memory_space<vmem>>, vector<4x1xf32>
    %40 = vector.broadcast %39 : vector<4x1xf32> to vector<4x346xf32>
    %41 = arith.mulf %38, %40 : vector<4x346xf32>
    %42 = arith.addf %37, %41 : vector<4x346xf32>
    %c0_25 = arith.constant 0 : index
    %c2 = arith.constant 2 : index
    %43 = vector.load %arg12[%c0_25, %c2] : memref<4x484xf32, #tpu.memory_space<vmem>>, vector<4x346xf32>
    %c0_26 = arith.constant 0 : index
    %c2_27 = arith.constant 2 : index
    %44 = vector.load %arg5[%c0_26, %c2_27] : memref<4x49xf32, #tpu.memory_space<vmem>>, vector<4x1xf32>
    %45 = vector.broadcast %44 : vector<4x1xf32> to vector<4x346xf32>
    %46 = arith.mulf %43, %45 : vector<4x346xf32>
    %47 = arith.addf %42, %46 : vector<4x346xf32>
    %c0_28 = arith.constant 0 : index
    %c3 = arith.constant 3 : index
    %48 = vector.load %arg12[%c0_28, %c3] : memref<4x484xf32, #tpu.memory_space<vmem>>, vector<4x346xf32>
    %c0_29 = arith.constant 0 : index
    %c3_30 = arith.constant 3 : index
    %49 = vector.load %arg5[%c0_29, %c3_30] : memref<4x49xf32, #tpu.memory_space<vmem>>, vector<4x1xf32>
    %50 = vector.broadcast %49 : vector<4x1xf32> to vector<4x346xf32>
    %51 = arith.mulf %48, %50 : vector<4x346xf32>
    %52 = arith.addf %47, %51 : vector<4x346xf32>
    %c0_31 = arith.constant 0 : index
    %c4 = arith.constant 4 : index
    %53 = vector.load %arg12[%c0_31, %c4] : memref<4x484xf32, #tpu.memory_space<vmem>>, vector<4x346xf32>
    %c0_32 = arith.constant 0 : index
    %c4_33 = arith.constant 4 : index
    %54 = vector.load %arg5[%c0_32, %c4_33] : memref<4x49xf32, #tpu.memory_space<vmem>>, vector<4x1xf32>
    %55 = vector.broadcast %54 : vector<4x1xf32> to vector<4x346xf32>
    %56 = arith.mulf %53, %55 : vector<4x346xf32>
    %57 = arith.addf %52, %56 : vector<4x346xf32>
    %c0_34 = arith.constant 0 : index
    %c5 = arith.constant 5 : index
    %58 = vector.load %arg12[%c0_34, %c5] : memref<4x484xf32, #tpu.memory_space<vmem>>, vector<4x346xf32>
    %c0_35 = arith.constant 0 : index
    %c5_36 = arith.constant 5 : index
    %59 = vector.load %arg5[%c0_35, %c5_36] : memref<4x49xf32, #tpu.memory_space<vmem>>, vector<4x1xf32>
    %60 = vector.broadcast %59 : vector<4x1xf32> to vector<4x346xf32>
    %61 = arith.mulf %58, %60 : vector<4x346xf32>
    %62 = arith.addf %57, %61 : vector<4x346xf32>
    %c0_37 = arith.constant 0 : index
    %c6 = arith.constant 6 : index
    %63 = vector.load %arg12[%c0_37, %c6] : memref<4x484xf32, #tpu.memory_space<vmem>>, vector<4x346xf32>
    %c0_38 = arith.constant 0 : index
    %c6_39 = arith.constant 6 : index
    %64 = vector.load %arg5[%c0_38, %c6_39] : memref<4x49xf32, #tpu.memory_space<vmem>>, vector<4x1xf32>
    %65 = vector.broadcast %64 : vector<4x1xf32> to vector<4x346xf32>
    %66 = arith.mulf %63, %65 : vector<4x346xf32>
    %67 = arith.addf %62, %66 : vector<4x346xf32>
    %c0_40 = arith.constant 0 : index
    %c22 = arith.constant 22 : index
    %68 = vector.load %arg12[%c0_40, %c22] : memref<4x484xf32, #tpu.memory_space<vmem>>, vector<4x346xf32>
    %c0_41 = arith.constant 0 : index
    %c7 = arith.constant 7 : index
    %69 = vector.load %arg5[%c0_41, %c7] : memref<4x49xf32, #tpu.memory_space<vmem>>, vector<4x1xf32>
    %70 = vector.broadcast %69 : vector<4x1xf32> to vector<4x346xf32>
    %71 = arith.mulf %68, %70 : vector<4x346xf32>
    %72 = arith.addf %67, %71 : vector<4x346xf32>
    %c0_42 = arith.constant 0 : index
    %c23 = arith.constant 23 : index
    %73 = vector.load %arg12[%c0_42, %c23] : memref<4x484xf32, #tpu.memory_space<vmem>>, vector<4x346xf32>
    %c0_43 = arith.constant 0 : index
    %c8 = arith.constant 8 : index
    %74 = vector.load %arg5[%c0_43, %c8] : memref<4x49xf32, #tpu.memory_space<vmem>>, vector<4x1xf32>
    %75 = vector.broadcast %74 : vector<4x1xf32> to vector<4x346xf32>
    %76 = arith.mulf %73, %75 : vector<4x346xf32>
    %77 = arith.addf %72, %76 : vector<4x346xf32>
    %c0_44 = arith.constant 0 : index
    %c24 = arith.constant 24 : index
    %78 = vector.load %arg12[%c0_44, %c24] : memref<4x484xf32, #tpu.memory_space<vmem>>, vector<4x346xf32>
    %c0_45 = arith.constant 0 : index
    %c9 = arith.constant 9 : index
    %79 = vector.load %arg5[%c0_45, %c9] : memref<4x49xf32, #tpu.memory_space<vmem>>, vector<4x1xf32>
    %80 = vector.broadcast %79 : vector<4x1xf32> to vector<4x346xf32>
    %81 = arith.mulf %78, %80 : vector<4x346xf32>
    %82 = arith.addf %77, %81 : vector<4x346xf32>
    %c0_46 = arith.constant 0 : index
    %c25 = arith.constant 25 : index
    %83 = vector.load %arg12[%c0_46, %c25] : memref<4x484xf32, #tpu.memory_space<vmem>>, vector<4x346xf32>
    %c0_47 = arith.constant 0 : index
    %c10 = arith.constant 10 : index
    %84 = vector.load %arg5[%c0_47, %c10] : memref<4x49xf32, #tpu.memory_space<vmem>>, vector<4x1xf32>
    %85 = vector.broadcast %84 : vector<4x1xf32> to vector<4x346xf32>
    %86 = arith.mulf %83, %85 : vector<4x346xf32>
    %87 = arith.addf %82, %86 : vector<4x346xf32>
    %c0_48 = arith.constant 0 : index
    %c26 = arith.constant 26 : index
    %88 = vector.load %arg12[%c0_48, %c26] : memref<4x484xf32, #tpu.memory_space<vmem>>, vector<4x346xf32>
    %c0_49 = arith.constant 0 : index
    %c11 = arith.constant 11 : index
    %89 = vector.load %arg5[%c0_49, %c11] : memref<4x49xf32, #tpu.memory_space<vmem>>, vector<4x1xf32>
    %90 = vector.broadcast %89 : vector<4x1xf32> to vector<4x346xf32>
    %91 = arith.mulf %88, %90 : vector<4x346xf32>
    %92 = arith.addf %87, %91 : vector<4x346xf32>
    %c0_50 = arith.constant 0 : index
    %c27 = arith.constant 27 : index
    %93 = vector.load %arg12[%c0_50, %c27] : memref<4x484xf32, #tpu.memory_space<vmem>>, vector<4x346xf32>
    %c0_51 = arith.constant 0 : index
    %c12 = arith.constant 12 : index
    %94 = vector.load %arg5[%c0_51, %c12] : memref<4x49xf32, #tpu.memory_space<vmem>>, vector<4x1xf32>
    %95 = vector.broadcast %94 : vector<4x1xf32> to vector<4x346xf32>
    %96 = arith.mulf %93, %95 : vector<4x346xf32>
    %97 = arith.addf %92, %96 : vector<4x346xf32>
    %c0_52 = arith.constant 0 : index
    %c28 = arith.constant 28 : index
    %98 = vector.load %arg12[%c0_52, %c28] : memref<4x484xf32, #tpu.memory_space<vmem>>, vector<4x346xf32>
    %c0_53 = arith.constant 0 : index
    %c13 = arith.constant 13 : index
    %99 = vector.load %arg5[%c0_53, %c13] : memref<4x49xf32, #tpu.memory_space<vmem>>, vector<4x1xf32>
    %100 = vector.broadcast %99 : vector<4x1xf32> to vector<4x346xf32>
    %101 = arith.mulf %98, %100 : vector<4x346xf32>
    %102 = arith.addf %97, %101 : vector<4x346xf32>
    %c0_54 = arith.constant 0 : index
    %c44 = arith.constant 44 : index
    %103 = vector.load %arg12[%c0_54, %c44] : memref<4x484xf32, #tpu.memory_space<vmem>>, vector<4x346xf32>
    %c0_55 = arith.constant 0 : index
    %c14 = arith.constant 14 : index
    %104 = vector.load %arg5[%c0_55, %c14] : memref<4x49xf32, #tpu.memory_space<vmem>>, vector<4x1xf32>
    %105 = vector.broadcast %104 : vector<4x1xf32> to vector<4x346xf32>
    %106 = arith.mulf %103, %105 : vector<4x346xf32>
    %107 = arith.addf %102, %106 : vector<4x346xf32>
    %c0_56 = arith.constant 0 : index
    %c45 = arith.constant 45 : index
    %108 = vector.load %arg12[%c0_56, %c45] : memref<4x484xf32, #tpu.memory_space<vmem>>, vector<4x346xf32>
    %c0_57 = arith.constant 0 : index
    %c15 = arith.constant 15 : index
    %109 = vector.load %arg5[%c0_57, %c15] : memref<4x49xf32, #tpu.memory_space<vmem>>, vector<4x1xf32>
    %110 = vector.broadcast %109 : vector<4x1xf32> to vector<4x346xf32>
    %111 = arith.mulf %108, %110 : vector<4x346xf32>
    %112 = arith.addf %107, %111 : vector<4x346xf32>
    %c0_58 = arith.constant 0 : index
    %c46 = arith.constant 46 : index
    %113 = vector.load %arg12[%c0_58, %c46] : memref<4x484xf32, #tpu.memory_space<vmem>>, vector<4x346xf32>
    %c0_59 = arith.constant 0 : index
    %c16 = arith.constant 16 : index
    %114 = vector.load %arg5[%c0_59, %c16] : memref<4x49xf32, #tpu.memory_space<vmem>>, vector<4x1xf32>
    %115 = vector.broadcast %114 : vector<4x1xf32> to vector<4x346xf32>
    %116 = arith.mulf %113, %115 : vector<4x346xf32>
    %117 = arith.addf %112, %116 : vector<4x346xf32>
    %c0_60 = arith.constant 0 : index
    %c47 = arith.constant 47 : index
    %118 = vector.load %arg12[%c0_60, %c47] : memref<4x484xf32, #tpu.memory_space<vmem>>, vector<4x346xf32>
    %c0_61 = arith.constant 0 : index
    %c17 = arith.constant 17 : index
    %119 = vector.load %arg5[%c0_61, %c17] : memref<4x49xf32, #tpu.memory_space<vmem>>, vector<4x1xf32>
    %120 = vector.broadcast %119 : vector<4x1xf32> to vector<4x346xf32>
    %121 = arith.mulf %118, %120 : vector<4x346xf32>
    %122 = arith.addf %117, %121 : vector<4x346xf32>
    %c0_62 = arith.constant 0 : index
    %c48 = arith.constant 48 : index
    %123 = vector.load %arg12[%c0_62, %c48] : memref<4x484xf32, #tpu.memory_space<vmem>>, vector<4x346xf32>
    %c0_63 = arith.constant 0 : index
    %c18 = arith.constant 18 : index
    %124 = vector.load %arg5[%c0_63, %c18] : memref<4x49xf32, #tpu.memory_space<vmem>>, vector<4x1xf32>
    %125 = vector.broadcast %124 : vector<4x1xf32> to vector<4x346xf32>
    %126 = arith.mulf %123, %125 : vector<4x346xf32>
    %127 = arith.addf %122, %126 : vector<4x346xf32>
    %c0_64 = arith.constant 0 : index
    %c49 = arith.constant 49 : index
    %128 = vector.load %arg12[%c0_64, %c49] : memref<4x484xf32, #tpu.memory_space<vmem>>, vector<4x346xf32>
    %c0_65 = arith.constant 0 : index
    %c19 = arith.constant 19 : index
    %129 = vector.load %arg5[%c0_65, %c19] : memref<4x49xf32, #tpu.memory_space<vmem>>, vector<4x1xf32>
    %130 = vector.broadcast %129 : vector<4x1xf32> to vector<4x346xf32>
    %131 = arith.mulf %128, %130 : vector<4x346xf32>
    %132 = arith.addf %127, %131 : vector<4x346xf32>
    %c0_66 = arith.constant 0 : index
    %c50 = arith.constant 50 : index
    %133 = vector.load %arg12[%c0_66, %c50] : memref<4x484xf32, #tpu.memory_space<vmem>>, vector<4x346xf32>
    %c0_67 = arith.constant 0 : index
    %c20 = arith.constant 20 : index
    %134 = vector.load %arg5[%c0_67, %c20] : memref<4x49xf32, #tpu.memory_space<vmem>>, vector<4x1xf32>
    %135 = vector.broadcast %134 : vector<4x1xf32> to vector<4x346xf32>
    %136 = arith.mulf %133, %135 : vector<4x346xf32>
    %137 = arith.addf %132, %136 : vector<4x346xf32>
    %c0_68 = arith.constant 0 : index
    %c66 = arith.constant 66 : index
    %138 = vector.load %arg12[%c0_68, %c66] : memref<4x484xf32, #tpu.memory_space<vmem>>, vector<4x346xf32>
    %c0_69 = arith.constant 0 : index
    %c21 = arith.constant 21 : index
    %139 = vector.load %arg5[%c0_69, %c21] : memref<4x49xf32, #tpu.memory_space<vmem>>, vector<4x1xf32>
    %140 = vector.broadcast %139 : vector<4x1xf32> to vector<4x346xf32>
    %141 = arith.mulf %138, %140 : vector<4x346xf32>
    %142 = arith.addf %137, %141 : vector<4x346xf32>
    %c0_70 = arith.constant 0 : index
    %c67 = arith.constant 67 : index
    %143 = vector.load %arg12[%c0_70, %c67] : memref<4x484xf32, #tpu.memory_space<vmem>>, vector<4x346xf32>
    %c0_71 = arith.constant 0 : index
    %c22_72 = arith.constant 22 : index
    %144 = vector.load %arg5[%c0_71, %c22_72] : memref<4x49xf32, #tpu.memory_space<vmem>>, vector<4x1xf32>
    %145 = vector.broadcast %144 : vector<4x1xf32> to vector<4x346xf32>
    %146 = arith.mulf %143, %145 : vector<4x346xf32>
    %147 = arith.addf %142, %146 : vector<4x346xf32>
    %c0_73 = arith.constant 0 : index
    %c68 = arith.constant 68 : index
    %148 = vector.load %arg12[%c0_73, %c68] : memref<4x484xf32, #tpu.memory_space<vmem>>, vector<4x346xf32>
    %c0_74 = arith.constant 0 : index
    %c23_75 = arith.constant 23 : index
    %149 = vector.load %arg5[%c0_74, %c23_75] : memref<4x49xf32, #tpu.memory_space<vmem>>, vector<4x1xf32>
    %150 = vector.broadcast %149 : vector<4x1xf32> to vector<4x346xf32>
    %151 = arith.mulf %148, %150 : vector<4x346xf32>
    %152 = arith.addf %147, %151 : vector<4x346xf32>
    %c0_76 = arith.constant 0 : index
    %c69 = arith.constant 69 : index
    %153 = vector.load %arg12[%c0_76, %c69] : memref<4x484xf32, #tpu.memory_space<vmem>>, vector<4x346xf32>
    %c0_77 = arith.constant 0 : index
    %c24_78 = arith.constant 24 : index
    %154 = vector.load %arg5[%c0_77, %c24_78] : memref<4x49xf32, #tpu.memory_space<vmem>>, vector<4x1xf32>
    %155 = vector.broadcast %154 : vector<4x1xf32> to vector<4x346xf32>
    %156 = arith.mulf %153, %155 : vector<4x346xf32>
    %157 = arith.addf %152, %156 : vector<4x346xf32>
    %c0_79 = arith.constant 0 : index
    %c70 = arith.constant 70 : index
    %158 = vector.load %arg12[%c0_79, %c70] : memref<4x484xf32, #tpu.memory_space<vmem>>, vector<4x346xf32>
    %c0_80 = arith.constant 0 : index
    %c25_81 = arith.constant 25 : index
    %159 = vector.load %arg5[%c0_80, %c25_81] : memref<4x49xf32, #tpu.memory_space<vmem>>, vector<4x1xf32>
    %160 = vector.broadcast %159 : vector<4x1xf32> to vector<4x346xf32>
    %161 = arith.mulf %158, %160 : vector<4x346xf32>
    %162 = arith.addf %157, %161 : vector<4x346xf32>
    %c0_82 = arith.constant 0 : index
    %c71 = arith.constant 71 : index
    %163 = vector.load %arg12[%c0_82, %c71] : memref<4x484xf32, #tpu.memory_space<vmem>>, vector<4x346xf32>
    %c0_83 = arith.constant 0 : index
    %c26_84 = arith.constant 26 : index
    %164 = vector.load %arg5[%c0_83, %c26_84] : memref<4x49xf32, #tpu.memory_space<vmem>>, vector<4x1xf32>
    %165 = vector.broadcast %164 : vector<4x1xf32> to vector<4x346xf32>
    %166 = arith.mulf %163, %165 : vector<4x346xf32>
    %167 = arith.addf %162, %166 : vector<4x346xf32>
    %c0_85 = arith.constant 0 : index
    %c72 = arith.constant 72 : index
    %168 = vector.load %arg12[%c0_85, %c72] : memref<4x484xf32, #tpu.memory_space<vmem>>, vector<4x346xf32>
    %c0_86 = arith.constant 0 : index
    %c27_87 = arith.constant 27 : index
    %169 = vector.load %arg5[%c0_86, %c27_87] : memref<4x49xf32, #tpu.memory_space<vmem>>, vector<4x1xf32>
    %170 = vector.broadcast %169 : vector<4x1xf32> to vector<4x346xf32>
    %171 = arith.mulf %168, %170 : vector<4x346xf32>
    %172 = arith.addf %167, %171 : vector<4x346xf32>
    %c0_88 = arith.constant 0 : index
    %c88 = arith.constant 88 : index
    %173 = vector.load %arg12[%c0_88, %c88] : memref<4x484xf32, #tpu.memory_space<vmem>>, vector<4x346xf32>
    %c0_89 = arith.constant 0 : index
    %c28_90 = arith.constant 28 : index
    %174 = vector.load %arg5[%c0_89, %c28_90] : memref<4x49xf32, #tpu.memory_space<vmem>>, vector<4x1xf32>
    %175 = vector.broadcast %174 : vector<4x1xf32> to vector<4x346xf32>
    %176 = arith.mulf %173, %175 : vector<4x346xf32>
    %177 = arith.addf %172, %176 : vector<4x346xf32>
    %c0_91 = arith.constant 0 : index
    %c89 = arith.constant 89 : index
    %178 = vector.load %arg12[%c0_91, %c89] : memref<4x484xf32, #tpu.memory_space<vmem>>, vector<4x346xf32>
    %c0_92 = arith.constant 0 : index
    %c29 = arith.constant 29 : index
    %179 = vector.load %arg5[%c0_92, %c29] : memref<4x49xf32, #tpu.memory_space<vmem>>, vector<4x1xf32>
    %180 = vector.broadcast %179 : vector<4x1xf32> to vector<4x346xf32>
    %181 = arith.mulf %178, %180 : vector<4x346xf32>
    %182 = arith.addf %177, %181 : vector<4x346xf32>
    %c0_93 = arith.constant 0 : index
    %c90 = arith.constant 90 : index
    %183 = vector.load %arg12[%c0_93, %c90] : memref<4x484xf32, #tpu.memory_space<vmem>>, vector<4x346xf32>
    %c0_94 = arith.constant 0 : index
    %c30 = arith.constant 30 : index
    %184 = vector.load %arg5[%c0_94, %c30] : memref<4x49xf32, #tpu.memory_space<vmem>>, vector<4x1xf32>
    %185 = vector.broadcast %184 : vector<4x1xf32> to vector<4x346xf32>
    %186 = arith.mulf %183, %185 : vector<4x346xf32>
    %187 = arith.addf %182, %186 : vector<4x346xf32>
    %c0_95 = arith.constant 0 : index
    %c91 = arith.constant 91 : index
    %188 = vector.load %arg12[%c0_95, %c91] : memref<4x484xf32, #tpu.memory_space<vmem>>, vector<4x346xf32>
    %c0_96 = arith.constant 0 : index
    %c31 = arith.constant 31 : index
    %189 = vector.load %arg5[%c0_96, %c31] : memref<4x49xf32, #tpu.memory_space<vmem>>, vector<4x1xf32>
    %190 = vector.broadcast %189 : vector<4x1xf32> to vector<4x346xf32>
    %191 = arith.mulf %188, %190 : vector<4x346xf32>
    %192 = arith.addf %187, %191 : vector<4x346xf32>
    %c0_97 = arith.constant 0 : index
    %c92 = arith.constant 92 : index
    %193 = vector.load %arg12[%c0_97, %c92] : memref<4x484xf32, #tpu.memory_space<vmem>>, vector<4x346xf32>
    %c0_98 = arith.constant 0 : index
    %c32 = arith.constant 32 : index
    %194 = vector.load %arg5[%c0_98, %c32] : memref<4x49xf32, #tpu.memory_space<vmem>>, vector<4x1xf32>
    %195 = vector.broadcast %194 : vector<4x1xf32> to vector<4x346xf32>
    %196 = arith.mulf %193, %195 : vector<4x346xf32>
    %197 = arith.addf %192, %196 : vector<4x346xf32>
    %c0_99 = arith.constant 0 : index
    %c93 = arith.constant 93 : index
    %198 = vector.load %arg12[%c0_99, %c93] : memref<4x484xf32, #tpu.memory_space<vmem>>, vector<4x346xf32>
    %c0_100 = arith.constant 0 : index
    %c33 = arith.constant 33 : index
    %199 = vector.load %arg5[%c0_100, %c33] : memref<4x49xf32, #tpu.memory_space<vmem>>, vector<4x1xf32>
    %200 = vector.broadcast %199 : vector<4x1xf32> to vector<4x346xf32>
    %201 = arith.mulf %198, %200 : vector<4x346xf32>
    %202 = arith.addf %197, %201 : vector<4x346xf32>
    %c0_101 = arith.constant 0 : index
    %c94 = arith.constant 94 : index
    %203 = vector.load %arg12[%c0_101, %c94] : memref<4x484xf32, #tpu.memory_space<vmem>>, vector<4x346xf32>
    %c0_102 = arith.constant 0 : index
    %c34 = arith.constant 34 : index
    %204 = vector.load %arg5[%c0_102, %c34] : memref<4x49xf32, #tpu.memory_space<vmem>>, vector<4x1xf32>
    %205 = vector.broadcast %204 : vector<4x1xf32> to vector<4x346xf32>
    %206 = arith.mulf %203, %205 : vector<4x346xf32>
    %207 = arith.addf %202, %206 : vector<4x346xf32>
    %c0_103 = arith.constant 0 : index
    %c110 = arith.constant 110 : index
    %208 = vector.load %arg12[%c0_103, %c110] : memref<4x484xf32, #tpu.memory_space<vmem>>, vector<4x346xf32>
    %c0_104 = arith.constant 0 : index
    %c35 = arith.constant 35 : index
    %209 = vector.load %arg5[%c0_104, %c35] : memref<4x49xf32, #tpu.memory_space<vmem>>, vector<4x1xf32>
    %210 = vector.broadcast %209 : vector<4x1xf32> to vector<4x346xf32>
    %211 = arith.mulf %208, %210 : vector<4x346xf32>
    %212 = arith.addf %207, %211 : vector<4x346xf32>
    %c0_105 = arith.constant 0 : index
    %c111 = arith.constant 111 : index
    %213 = vector.load %arg12[%c0_105, %c111] : memref<4x484xf32, #tpu.memory_space<vmem>>, vector<4x346xf32>
    %c0_106 = arith.constant 0 : index
    %c36 = arith.constant 36 : index
    %214 = vector.load %arg5[%c0_106, %c36] : memref<4x49xf32, #tpu.memory_space<vmem>>, vector<4x1xf32>
    %215 = vector.broadcast %214 : vector<4x1xf32> to vector<4x346xf32>
    %216 = arith.mulf %213, %215 : vector<4x346xf32>
    %217 = arith.addf %212, %216 : vector<4x346xf32>
    %c0_107 = arith.constant 0 : index
    %c112 = arith.constant 112 : index
    %218 = vector.load %arg12[%c0_107, %c112] : memref<4x484xf32, #tpu.memory_space<vmem>>, vector<4x346xf32>
    %c0_108 = arith.constant 0 : index
    %c37 = arith.constant 37 : index
    %219 = vector.load %arg5[%c0_108, %c37] : memref<4x49xf32, #tpu.memory_space<vmem>>, vector<4x1xf32>
    %220 = vector.broadcast %219 : vector<4x1xf32> to vector<4x346xf32>
    %221 = arith.mulf %218, %220 : vector<4x346xf32>
    %222 = arith.addf %217, %221 : vector<4x346xf32>
    %c0_109 = arith.constant 0 : index
    %c113 = arith.constant 113 : index
    %223 = vector.load %arg12[%c0_109, %c113] : memref<4x484xf32, #tpu.memory_space<vmem>>, vector<4x346xf32>
    %c0_110 = arith.constant 0 : index
    %c38 = arith.constant 38 : index
    %224 = vector.load %arg5[%c0_110, %c38] : memref<4x49xf32, #tpu.memory_space<vmem>>, vector<4x1xf32>
    %225 = vector.broadcast %224 : vector<4x1xf32> to vector<4x346xf32>
    %226 = arith.mulf %223, %225 : vector<4x346xf32>
    %227 = arith.addf %222, %226 : vector<4x346xf32>
    %c0_111 = arith.constant 0 : index
    %c114 = arith.constant 114 : index
    %228 = vector.load %arg12[%c0_111, %c114] : memref<4x484xf32, #tpu.memory_space<vmem>>, vector<4x346xf32>
    %c0_112 = arith.constant 0 : index
    %c39 = arith.constant 39 : index
    %229 = vector.load %arg5[%c0_112, %c39] : memref<4x49xf32, #tpu.memory_space<vmem>>, vector<4x1xf32>
    %230 = vector.broadcast %229 : vector<4x1xf32> to vector<4x346xf32>
    %231 = arith.mulf %228, %230 : vector<4x346xf32>
    %232 = arith.addf %227, %231 : vector<4x346xf32>
    %c0_113 = arith.constant 0 : index
    %c115 = arith.constant 115 : index
    %233 = vector.load %arg12[%c0_113, %c115] : memref<4x484xf32, #tpu.memory_space<vmem>>, vector<4x346xf32>
    %c0_114 = arith.constant 0 : index
    %c40 = arith.constant 40 : index
    %234 = vector.load %arg5[%c0_114, %c40] : memref<4x49xf32, #tpu.memory_space<vmem>>, vector<4x1xf32>
    %235 = vector.broadcast %234 : vector<4x1xf32> to vector<4x346xf32>
    %236 = arith.mulf %233, %235 : vector<4x346xf32>
    %237 = arith.addf %232, %236 : vector<4x346xf32>
    %c0_115 = arith.constant 0 : index
    %c116 = arith.constant 116 : index
    %238 = vector.load %arg12[%c0_115, %c116] : memref<4x484xf32, #tpu.memory_space<vmem>>, vector<4x346xf32>
    %c0_116 = arith.constant 0 : index
    %c41 = arith.constant 41 : index
    %239 = vector.load %arg5[%c0_116, %c41] : memref<4x49xf32, #tpu.memory_space<vmem>>, vector<4x1xf32>
    %240 = vector.broadcast %239 : vector<4x1xf32> to vector<4x346xf32>
    %241 = arith.mulf %238, %240 : vector<4x346xf32>
    %242 = arith.addf %237, %241 : vector<4x346xf32>
    %c0_117 = arith.constant 0 : index
    %c132 = arith.constant 132 : index
    %243 = vector.load %arg12[%c0_117, %c132] : memref<4x484xf32, #tpu.memory_space<vmem>>, vector<4x346xf32>
    %c0_118 = arith.constant 0 : index
    %c42 = arith.constant 42 : index
    %244 = vector.load %arg5[%c0_118, %c42] : memref<4x49xf32, #tpu.memory_space<vmem>>, vector<4x1xf32>
    %245 = vector.broadcast %244 : vector<4x1xf32> to vector<4x346xf32>
    %246 = arith.mulf %243, %245 : vector<4x346xf32>
    %247 = arith.addf %242, %246 : vector<4x346xf32>
    %c0_119 = arith.constant 0 : index
    %c133 = arith.constant 133 : index
    %248 = vector.load %arg12[%c0_119, %c133] : memref<4x484xf32, #tpu.memory_space<vmem>>, vector<4x346xf32>
    %c0_120 = arith.constant 0 : index
    %c43 = arith.constant 43 : index
    %249 = vector.load %arg5[%c0_120, %c43] : memref<4x49xf32, #tpu.memory_space<vmem>>, vector<4x1xf32>
    %250 = vector.broadcast %249 : vector<4x1xf32> to vector<4x346xf32>
    %251 = arith.mulf %248, %250 : vector<4x346xf32>
    %252 = arith.addf %247, %251 : vector<4x346xf32>
    %c0_121 = arith.constant 0 : index
    %c134 = arith.constant 134 : index
    %253 = vector.load %arg12[%c0_121, %c134] : memref<4x484xf32, #tpu.memory_space<vmem>>, vector<4x346xf32>
    %c0_122 = arith.constant 0 : index
    %c44_123 = arith.constant 44 : index
    %254 = vector.load %arg5[%c0_122, %c44_123] : memref<4x49xf32, #tpu.memory_space<vmem>>, vector<4x1xf32>
    %255 = vector.broadcast %254 : vector<4x1xf32> to vector<4x346xf32>
    %256 = arith.mulf %253, %255 : vector<4x346xf32>
    %257 = arith.addf %252, %256 : vector<4x346xf32>
    %c0_124 = arith.constant 0 : index
    %c135 = arith.constant 135 : index
    %258 = vector.load %arg12[%c0_124, %c135] : memref<4x484xf32, #tpu.memory_space<vmem>>, vector<4x346xf32>
    %c0_125 = arith.constant 0 : index
    %c45_126 = arith.constant 45 : index
    %259 = vector.load %arg5[%c0_125, %c45_126] : memref<4x49xf32, #tpu.memory_space<vmem>>, vector<4x1xf32>
    %260 = vector.broadcast %259 : vector<4x1xf32> to vector<4x346xf32>
    %261 = arith.mulf %258, %260 : vector<4x346xf32>
    %262 = arith.addf %257, %261 : vector<4x346xf32>
    %c0_127 = arith.constant 0 : index
    %c136 = arith.constant 136 : index
    %263 = vector.load %arg12[%c0_127, %c136] : memref<4x484xf32, #tpu.memory_space<vmem>>, vector<4x346xf32>
    %c0_128 = arith.constant 0 : index
    %c46_129 = arith.constant 46 : index
    %264 = vector.load %arg5[%c0_128, %c46_129] : memref<4x49xf32, #tpu.memory_space<vmem>>, vector<4x1xf32>
    %265 = vector.broadcast %264 : vector<4x1xf32> to vector<4x346xf32>
    %266 = arith.mulf %263, %265 : vector<4x346xf32>
    %267 = arith.addf %262, %266 : vector<4x346xf32>
    %c0_130 = arith.constant 0 : index
    %c137 = arith.constant 137 : index
    %268 = vector.load %arg12[%c0_130, %c137] : memref<4x484xf32, #tpu.memory_space<vmem>>, vector<4x346xf32>
    %c0_131 = arith.constant 0 : index
    %c47_132 = arith.constant 47 : index
    %269 = vector.load %arg5[%c0_131, %c47_132] : memref<4x49xf32, #tpu.memory_space<vmem>>, vector<4x1xf32>
    %270 = vector.broadcast %269 : vector<4x1xf32> to vector<4x346xf32>
    %271 = arith.mulf %268, %270 : vector<4x346xf32>
    %272 = arith.addf %267, %271 : vector<4x346xf32>
    %c0_133 = arith.constant 0 : index
    %c138 = arith.constant 138 : index
    %273 = vector.load %arg12[%c0_133, %c138] : memref<4x484xf32, #tpu.memory_space<vmem>>, vector<4x346xf32>
    %c0_134 = arith.constant 0 : index
    %c48_135 = arith.constant 48 : index
    %274 = vector.load %arg5[%c0_134, %c48_135] : memref<4x49xf32, #tpu.memory_space<vmem>>, vector<4x1xf32>
    %275 = vector.broadcast %274 : vector<4x1xf32> to vector<4x346xf32>
    %276 = arith.mulf %273, %275 : vector<4x346xf32>
    %277 = arith.addf %272, %276 : vector<4x346xf32>
    %c0_136 = arith.constant 0 : index
    %c0_137 = arith.constant 0 : index
    %278 = vector.load %arg6[%c0_136, %c0_137] : memref<4x1xf32, #tpu.memory_space<vmem>>, vector<4x1xf32>
    %279 = vector.broadcast %278 : vector<4x1xf32> to vector<4x346xf32>
    %280 = arith.addf %277, %279 : vector<4x346xf32>
    %c0_138 = arith.constant 0 : index
    %c69_139 = arith.constant 69 : index
    %281 = vector.load %arg2[%c0_138, %c69_139] : memref<1x484xf32, #tpu.memory_space<vmem>>, vector<1x346xf32>
    %282 = vector.broadcast %281 : vector<1x346xf32> to vector<4x346xf32>
    %283 = arith.mulf %280, %282 : vector<4x346xf32>
    %284 = arith.mulf %283, %283 : vector<4x346xf32>
    %cst_140 = arith.constant dense<0.000000e+00> : vector<4xf32>
    %285 = vector.multi_reduction <add>, %284, %cst_140 [1] : vector<4x346xf32> to vector<4xf32>
    %286 = vector.shape_cast %285 : vector<4xf32> to vector<4x1xf32>
    %287 = math.sqrt %286 : vector<4x1xf32>
    %cst_141 = arith.constant dense<0.000000e+00> : vector<1xf32>
    %288 = vector.multi_reduction <add>, %287, %cst_141 [0] : vector<4x1xf32> to vector<1xf32>
    %289 = vector.shape_cast %288 : vector<1xf32> to vector<1x1xf32>
    %cst_142 = arith.constant 4.000000e+00 : f32
    %290 = vector.broadcast %cst_142 : f32 to vector<1x1xf32>
    %291 = arith.divf %289, %290 : vector<1x1xf32>
    %cst_143 = arith.constant 9.99999997E-7 : f32
    %292 = vector.broadcast %cst_143 : f32 to vector<1x1xf32>
    %293 = arith.addf %291, %292 : vector<1x1xf32>
    %294 = vector.broadcast %293 : vector<1x1xf32> to vector<4x1xf32>
    %295 = arith.divf %287, %294 : vector<4x1xf32>
    %c0_144 = arith.constant 0 : index
    %c0_145 = arith.constant 0 : index
    %296 = vector.load %arg7[%c0_144, %c0_145] : memref<4x1xf32, #tpu.memory_space<vmem>>, vector<4x1xf32>
    %297 = arith.mulf %296, %295 : vector<4x1xf32>
    %cst_146 = arith.constant 1.000000e+00 : f32
    %298 = vector.broadcast %cst_146 : f32 to vector<4x1xf32>
    %299 = arith.addf %297, %298 : vector<4x1xf32>
    %300 = vector.broadcast %299 : vector<4x1xf32> to vector<4x346xf32>
    %301 = arith.mulf %300, %280 : vector<4x346xf32>
    %c0_147 = arith.constant 0 : index
    %c0_148 = arith.constant 0 : index
    %302 = vector.load %arg8[%c0_147, %c0_148] : memref<4x1xf32, #tpu.memory_space<vmem>>, vector<4x1xf32>
    %303 = vector.broadcast %302 : vector<4x1xf32> to vector<4x346xf32>
    %304 = arith.addf %301, %303 : vector<4x346xf32>
    %305 = vector.broadcast %281 : vector<1x346xf32> to vector<4x346xf32>
    %306 = arith.mulf %304, %305 : vector<4x346xf32>
    %307 = arith.truncf %306 : vector<4x346xf32> to vector<4x346xbf16>
    %c0_149 = arith.constant 0 : index
    %c128 = arith.constant 128 : index
    %308 = vector.load %arg13[%c0_149, %c128] : memref<4x640xbf16, #tpu.memory_space<vmem>>, vector<4x346xbf16>
    tpu.vector_store %arg13[%c0_149, %c128], %307 {strides = array<i32>} : memref<4x640xbf16, #tpu.memory_space<vmem>>, vector<4x346xbf16>,
    %cst_150 = arith.constant 0.000000e+00 : f32
    %309 = vector.broadcast %cst_150 : f32 to vector<8x384xf32>
    %c0_151 = arith.constant 0 : index
    %c0_152 = arith.constant 0 : index
    %c0_153 = arith.constant 0 : index
    %310 = vector.load %arg9[%c0_151, %c0_152, %c0_153] : memref<9x8x4xbf16, #tpu.memory_space<vmem>>, vector<1x8x4xbf16>
    %311 = vector.shape_cast %310 : vector<1x8x4xbf16> to vector<8x4xbf16>
    %c0_154 = arith.constant 0 : index
    %c105 = arith.constant 105 : index
    %312 = vector.load %arg13[%c0_154, %c105] : memref<4x640xbf16, #tpu.memory_space<vmem>>, vector<4x384xbf16>
    %cst_155 = arith.constant dense<0.000000e+00> : vector<8x384xf32>
    %313 = tpu.matmul %311, %312, %cst_155 {dimension_numbers = #tpu.dot_dimension_numbers<[1], [0], [0], [1], [0, 0, 1, 1], [], []>} : vector<8x4xbf16>, vector<4x384xbf16>, vector<8x384xf32> -> vector<8x384xf32>
    %314 = arith.addf %309, %313 : vector<8x384xf32>
    %c1_156 = arith.constant 1 : index
    %c0_157 = arith.constant 0 : index
    %c0_158 = arith.constant 0 : index
    %315 = vector.load %arg9[%c1_156, %c0_157, %c0_158] : memref<9x8x4xbf16, #tpu.memory_space<vmem>>, vector<1x8x4xbf16>
    %316 = vector.shape_cast %315 : vector<1x8x4xbf16> to vector<8x4xbf16>
    %c0_159 = arith.constant 0 : index
    %c106 = arith.constant 106 : index
    %317 = vector.load %arg13[%c0_159, %c106] : memref<4x640xbf16, #tpu.memory_space<vmem>>, vector<4x384xbf16>
    %cst_160 = arith.constant dense<0.000000e+00> : vector<8x384xf32>
    %318 = tpu.matmul %316, %317, %cst_160 {dimension_numbers = #tpu.dot_dimension_numbers<[1], [0], [0], [1], [0, 0, 1, 1], [], []>} : vector<8x4xbf16>, vector<4x384xbf16>, vector<8x384xf32> -> vector<8x384xf32>
    %319 = arith.addf %314, %318 : vector<8x384xf32>
    %c2_161 = arith.constant 2 : index
    %c0_162 = arith.constant 0 : index
    %c0_163 = arith.constant 0 : index
    %320 = vector.load %arg9[%c2_161, %c0_162, %c0_163] : memref<9x8x4xbf16, #tpu.memory_space<vmem>>, vector<1x8x4xbf16>
    %321 = vector.shape_cast %320 : vector<1x8x4xbf16> to vector<8x4xbf16>
    %c0_164 = arith.constant 0 : index
    %c107 = arith.constant 107 : index
    %322 = vector.load %arg13[%c0_164, %c107] : memref<4x640xbf16, #tpu.memory_space<vmem>>, vector<4x384xbf16>
    %cst_165 = arith.constant dense<0.000000e+00> : vector<8x384xf32>
    %323 = tpu.matmul %321, %322, %cst_165 {dimension_numbers = #tpu.dot_dimension_numbers<[1], [0], [0], [1], [0, 0, 1, 1], [], []>} : vector<8x4xbf16>, vector<4x384xbf16>, vector<8x384xf32> -> vector<8x384xf32>
    %324 = arith.addf %319, %323 : vector<8x384xf32>
    %c3_166 = arith.constant 3 : index
    %c0_167 = arith.constant 0 : index
    %c0_168 = arith.constant 0 : index
    %325 = vector.load %arg9[%c3_166, %c0_167, %c0_168] : memref<9x8x4xbf16, #tpu.memory_space<vmem>>, vector<1x8x4xbf16>
    %326 = vector.shape_cast %325 : vector<1x8x4xbf16> to vector<8x4xbf16>
    %c0_169 = arith.constant 0 : index
    %c127 = arith.constant 127 : index
    %327 = vector.load %arg13[%c0_169, %c127] : memref<4x640xbf16, #tpu.memory_space<vmem>>, vector<4x384xbf16>
    %cst_170 = arith.constant dense<0.000000e+00> : vector<8x384xf32>
    %328 = tpu.matmul %326, %327, %cst_170 {dimension_numbers = #tpu.dot_dimension_numbers<[1], [0], [0], [1], [0, 0, 1, 1], [], []>} : vector<8x4xbf16>, vector<4x384xbf16>, vector<8x384xf32> -> vector<8x384xf32>
    %329 = arith.addf %324, %328 : vector<8x384xf32>
    %c4_171 = arith.constant 4 : index
    %c0_172 = arith.constant 0 : index
    %c0_173 = arith.constant 0 : index
    %330 = vector.load %arg9[%c4_171, %c0_172, %c0_173] : memref<9x8x4xbf16, #tpu.memory_space<vmem>>, vector<1x8x4xbf16>
    %331 = vector.shape_cast %330 : vector<1x8x4xbf16> to vector<8x4xbf16>
    %c0_174 = arith.constant 0 : index
    %c128_175 = arith.constant 128 : index
    %332 = vector.load %arg13[%c0_174, %c128_175] : memref<4x640xbf16, #tpu.memory_space<vmem>>, vector<4x384xbf16>
    %cst_176 = arith.constant dense<0.000000e+00> : vector<8x384xf32>
    %333 = tpu.matmul %331, %332, %cst_176 {dimension_numbers = #tpu.dot_dimension_numbers<[1], [0], [0], [1], [0, 0, 1, 1], [], []>} : vector<8x4xbf16>, vector<4x384xbf16>, vector<8x384xf32> -> vector<8x384xf32>
    %334 = arith.addf %329, %333 : vector<8x384xf32>
    %c5_177 = arith.constant 5 : index
    %c0_178 = arith.constant 0 : index
    %c0_179 = arith.constant 0 : index
    %335 = vector.load %arg9[%c5_177, %c0_178, %c0_179] : memref<9x8x4xbf16, #tpu.memory_space<vmem>>, vector<1x8x4xbf16>
    %336 = vector.shape_cast %335 : vector<1x8x4xbf16> to vector<8x4xbf16>
    %c0_180 = arith.constant 0 : index
    %c129 = arith.constant 129 : index
    %337 = vector.load %arg13[%c0_180, %c129] : memref<4x640xbf16, #tpu.memory_space<vmem>>, vector<4x384xbf16>
    %cst_181 = arith.constant dense<0.000000e+00> : vector<8x384xf32>
    %338 = tpu.matmul %336, %337, %cst_181 {dimension_numbers = #tpu.dot_dimension_numbers<[1], [0], [0], [1], [0, 0, 1, 1], [], []>} : vector<8x4xbf16>, vector<4x384xbf16>, vector<8x384xf32> -> vector<8x384xf32>
    %339 = arith.addf %334, %338 : vector<8x384xf32>
    %c6_182 = arith.constant 6 : index
    %c0_183 = arith.constant 0 : index
    %c0_184 = arith.constant 0 : index
    %340 = vector.load %arg9[%c6_182, %c0_183, %c0_184] : memref<9x8x4xbf16, #tpu.memory_space<vmem>>, vector<1x8x4xbf16>
    %341 = vector.shape_cast %340 : vector<1x8x4xbf16> to vector<8x4xbf16>
    %c0_185 = arith.constant 0 : index
    %c149 = arith.constant 149 : index
    %342 = vector.load %arg13[%c0_185, %c149] : memref<4x640xbf16, #tpu.memory_space<vmem>>, vector<4x384xbf16>
    %cst_186 = arith.constant dense<0.000000e+00> : vector<8x384xf32>
    %343 = tpu.matmul %341, %342, %cst_186 {dimension_numbers = #tpu.dot_dimension_numbers<[1], [0], [0], [1], [0, 0, 1, 1], [], []>} : vector<8x4xbf16>, vector<4x384xbf16>, vector<8x384xf32> -> vector<8x384xf32>
    %344 = arith.addf %339, %343 : vector<8x384xf32>
    %c7_187 = arith.constant 7 : index
    %c0_188 = arith.constant 0 : index
    %c0_189 = arith.constant 0 : index
    %345 = vector.load %arg9[%c7_187, %c0_188, %c0_189] : memref<9x8x4xbf16, #tpu.memory_space<vmem>>, vector<1x8x4xbf16>
    %346 = vector.shape_cast %345 : vector<1x8x4xbf16> to vector<8x4xbf16>
    %c0_190 = arith.constant 0 : index
    %c150 = arith.constant 150 : index
    %347 = vector.load %arg13[%c0_190, %c150] : memref<4x640xbf16, #tpu.memory_space<vmem>>, vector<4x384xbf16>
    %cst_191 = arith.constant dense<0.000000e+00> : vector<8x384xf32>
    %348 = tpu.matmul %346, %347, %cst_191 {dimension_numbers = #tpu.dot_dimension_numbers<[1], [0], [0], [1], [0, 0, 1, 1], [], []>} : vector<8x4xbf16>, vector<4x384xbf16>, vector<8x384xf32> -> vector<8x384xf32>
    %349 = arith.addf %344, %348 : vector<8x384xf32>
    %c8_192 = arith.constant 8 : index
    %c0_193 = arith.constant 0 : index
    %c0_194 = arith.constant 0 : index
    %350 = vector.load %arg9[%c8_192, %c0_193, %c0_194] : memref<9x8x4xbf16, #tpu.memory_space<vmem>>, vector<1x8x4xbf16>
    %351 = vector.shape_cast %350 : vector<1x8x4xbf16> to vector<8x4xbf16>
    %c0_195 = arith.constant 0 : index
    %c151 = arith.constant 151 : index
    %352 = vector.load %arg13[%c0_195, %c151] : memref<4x640xbf16, #tpu.memory_space<vmem>>, vector<4x384xbf16>
    %cst_196 = arith.constant dense<0.000000e+00> : vector<8x384xf32>
    %353 = tpu.matmul %351, %352, %cst_196 {dimension_numbers = #tpu.dot_dimension_numbers<[1], [0], [0], [1], [0, 0, 1, 1], [], []>} : vector<8x4xbf16>, vector<4x384xbf16>, vector<8x384xf32> -> vector<8x384xf32>
    %354 = arith.addf %349, %353 : vector<8x384xf32>
    %c0_197 = arith.constant 0 : index
    %c0_198 = arith.constant 0 : index
    %355 = vector.load %arg10[%c0_197, %c0_198] : memref<8x1xf32, #tpu.memory_space<vmem>>, vector<8x1xf32>
    %356 = vector.broadcast %355 : vector<8x1xf32> to vector<8x384xf32>
    %357 = arith.addf %354, %356 : vector<8x384xf32>
    %c0_199 = arith.constant 0 : index
    %c0_200 = arith.constant 0 : index
    %c0_201 = arith.constant 0 : index
    %358 = vector.load %arg11[%c0_199, %c0_200, %c0_201] : memref<1x8x384xf32, #tpu.memory_space<vmem>>, vector<1x8x384xf32>
    %359 = vector.shape_cast %358 : vector<1x8x384xf32> to vector<8x384xf32>
    %360 = vector.shape_cast %357 : vector<8x384xf32> to vector<1x8x384xf32>
    tpu.vector_store %arg11[%c0_199, %c0_200, %c0_201], %360 {strides = array<i32>} : memref<1x8x384xf32, #tpu.memory_space<vmem>>, vector<1x8x384xf32>,
    return
  }
  func.func @transform_0(%arg0: i32) -> (i32, i32, i32) {
    %c0_i32 = arith.constant 0 : i32
    %c0_i32_0 = arith.constant 0 : i32
    %c0_i32_1 = arith.constant 0 : i32
    return %arg0, %c0_i32, %c0_i32_0 : i32, i32, i32
  }
  func.func @transform_1(%arg0: i32) -> (i32, i32) {
    %c0_i32 = arith.constant 0 : i32
    %c0_i32_0 = arith.constant 0 : i32
    %c0_i32_1 = arith.constant 0 : i32
    return %c0_i32, %c0_i32_0 : i32, i32
  }
  func.func @transform_2(%arg0: i32) -> (i32, i32) {
    %c0_i32 = arith.constant 0 : i32
    %c0_i32_0 = arith.constant 0 : i32
    %c0_i32_1 = arith.constant 0 : i32
    return %c0_i32, %c0_i32_0 : i32, i32
  }
  func.func @transform_3(%arg0: i32) -> (i32, i32) {
    %c0_i32 = arith.constant 0 : i32
    %c0_i32_0 = arith.constant 0 : i32
    %c0_i32_1 = arith.constant 0 : i32
    return %c0_i32, %c0_i32_0 : i32, i32
  }
  func.func @transform_4(%arg0: i32) -> (i32, i32) {
    %c0_i32 = arith.constant 0 : i32
    %c0_i32_0 = arith.constant 0 : i32
    %c0_i32_1 = arith.constant 0 : i32
    return %c0_i32, %c0_i32_0 : i32, i32
  }
  func.func @transform_5(%arg0: i32) -> (i32, i32) {
    %c0_i32 = arith.constant 0 : i32
    %c0_i32_0 = arith.constant 0 : i32
    %c0_i32_1 = arith.constant 0 : i32
    return %c0_i32, %c0_i32_0 : i32, i32
  }
  func.func @transform_6(%arg0: i32) -> (i32, i32) {
    %c0_i32 = arith.constant 0 : i32
    %c0_i32_0 = arith.constant 0 : i32
    %c0_i32_1 = arith.constant 0 : i32
    return %c0_i32, %c0_i32_0 : i32, i32
  }
  func.func @transform_7(%arg0: i32) -> (i32, i32) {
    %c0_i32 = arith.constant 0 : i32
    %c0_i32_0 = arith.constant 0 : i32
    %c0_i32_1 = arith.constant 0 : i32
    return %c0_i32, %c0_i32_0 : i32, i32
  }
  func.func @transform_8(%arg0: i32) -> (i32, i32, i32) {
    %c0_i32 = arith.constant 0 : i32
    %c0_i32_0 = arith.constant 0 : i32
    %c0_i32_1 = arith.constant 0 : i32
    %c0_i32_2 = arith.constant 0 : i32
    return %c0_i32, %c0_i32_0, %c0_i32_1 : i32, i32, i32
  }
  func.func @transform_9(%arg0: i32) -> (i32, i32) {
    %c0_i32 = arith.constant 0 : i32
    %c0_i32_0 = arith.constant 0 : i32
    %c0_i32_1 = arith.constant 0 : i32
    return %c0_i32, %c0_i32_0 : i32, i32
  }
  func.func @transform_10(%arg0: i32) -> (i32, i32, i32) {
    %c0_i32 = arith.constant 0 : i32
    %c0_i32_0 = arith.constant 0 : i32
    %c0_i32_1 = arith.constant 0 : i32
    return %arg0, %c0_i32, %c0_i32_0 : i32, i32, i32
  }
}

</mosaic_0001>

<llo_original>
// kernel: tpu_custom_call.1
$region0: #{tpu_custom_call.1}
  #allocation0 [shape = 'u32[]', space=smem, size = 0x4, offset = 0x4, fixed_abs, tag = 'smem constant byte address 0x4 - core index']
  #allocation1 [shape = 'u32[144,128]{1,0:T(1,128)}', space=vmem, size = 0x12000, scoped, tag = 'internal scratch']
  #allocation2 [shape = 'f32[4,484]{1,0:T(4,128)}', space=vmem, size = 0x2000, scoped, tag = 'scratch operand']
  #allocation3 [shape = 'bf16[4,640]{1,0:T(4,128)(2,1)}', space=vmem, size = 0x1400, scoped, tag = 'scratch operand']
  %s0 = inlined_call_operand.vmem [shape: f32[2,4,484], index: 0, kind: input, shape index: {}]
  %s1 = inlined_call_operand.vmem [shape: f32[1,484], index: 1, kind: input, shape index: {}]
  %s2 = inlined_call_operand.vmem [shape: f32[4,1], index: 2, kind: input, shape index: {}]
  %s3 = inlined_call_operand.vmem [shape: f32[4,1], index: 3, kind: input, shape index: {}]
  %s4 = inlined_call_operand.vmem [shape: f32[4,49], index: 4, kind: input, shape index: {}]
  %s5 = inlined_call_operand.vmem [shape: f32[4,1], index: 5, kind: input, shape index: {}]
  %s6 = inlined_call_operand.vmem [shape: f32[4,1], index: 6, kind: input, shape index: {}]
  %s7 = inlined_call_operand.vmem [shape: f32[4,1], index: 7, kind: input, shape index: {}]
  %s8 = inlined_call_operand.vmem [shape: bf16[9,8,4], index: 8, kind: input, shape index: {}]
  %s9 = inlined_call_operand.vmem [shape: f32[8,1], index: 9, kind: input, shape index: {}]
  %s10 = inlined_call_operand.hbm [shape: f32[2,8,384], index: 10, kind: output, shape index: {}]
  %s11 = sld [smem:[#allocation0]]
  $region73: #{tpu_custom_call.1} parent=0
    _
  %s13 = ssub.s32 1, %s11
  %s14 = scalar_select 0, %s13, %s11
  $region1: #{tpu_custom_call.1} parent=0
    #allocation4 [shape = 'u8[24576]{0}', space=vmem, size = 0x6000, scoped, tag = 'output window, operand 0']
    #allocation5 [shape = 's32[2]{0}', space=sflag, size = 0x8, scoped, tag = 'scoped memory for tpu_custom_call.1']
    %15 = vsyncpa [#allocation5], 0
    %s16 = scalar_lea.sflag [#allocation5], 1
    %17 = vsyncpa %s16, 0
    loop: start=0, step=1, limit=4
    $region2: #{tpu_custom_call.1} parent=1 // loop_pre_header
      _
    $region3: #{tpu_custom_call.1} parent=1 // loop_header
      %s19 = sphi 0, %s23
      %p20 = scmp.ge.s32.totalorder %s19, 4
      %s29 = sphi 0, %s31
      %s32 = sphi 0, %s29
      %s33 = sphi 0, %s32
      %s49 = sphi 0, %s33
      %s53 = sphi 0, %s53
      %s55 = sphi 0, %s53
      %s56 = sphi 0, %s55
      %s70 = sphi 0, %s56
      %s74 = sphi 0, %s74
      %s76 = sphi 0, %s74
      %s77 = sphi 0, %s76
      %s91 = sphi 0, %s77
      %s95 = sphi 0, %s95
      %s97 = sphi 0, %s95
      %s98 = sphi 0, %s97
      %s112 = sphi 0, %s98
      %s116 = sphi 0, %s116
      %s118 = sphi 0, %s116
      %s119 = sphi 0, %s118
      %s133 = sphi 0, %s119
      %s137 = sphi 0, %s137
      %s139 = sphi 0, %s137
      %s140 = sphi 0, %s139
      %s154 = sphi 0, %s140
      %s158 = sphi 0, %s158
      %s160 = sphi 0, %s158
      %s161 = sphi 0, %s160
      %s175 = sphi 0, %s161
      %s179 = sphi 0, %s179
      %s181 = sphi 0, %s179
      %s182 = sphi 0, %s181
      %s196 = sphi 0, %s182
      %s200 = sphi 0, %s200
      %s202 = sphi 0, %s200
      %s203 = sphi 0, %s202
      %s217 = sphi 0, %s203
      %s221 = sphi 0, %s221
      %s223 = sphi 0, %s221
      %s224 = sphi 0, %s223
      %s238 = sphi 0, %s224
      %s244 = sphi 0, %s246
      %s247 = sphi 0, %s244
      %s248 = sphi 0, %s247
      %s264 = sphi 0, %s248
    $region4: #{tpu_custom_call.1} parent=1 // loop_header_branch
      %22 = sbr.rel (%p20) target = $region8
    $region5: #{tpu_custom_call.1} parent=1 // loop_body
      %s24 = ssub.s32 %s19, 1
      %s25 = ssub.s32 %s19, 2
      %s26 = sadd.s32 %s19, 1
      %s27 = ssub.s32 %s19, %s26
      %p28 = scmp.eq.s32.totalorder %s27, 0
      %s30 = sadd.s32 %s29, 1
      %s31 = scalar_select %p28, %s29, %s30
      %p34 = pneg %p28
      %p35 = scmp.eq.s32.totalorder %s19, 1
      %p36 = por %p34, %p35
      %p37 = scmp.ne.s32.totalorder %s29, %s32
      %p38 = scmp.eq.s32.totalorder %s19, 0
      %p39 = por %p37, %p38
      %p40 = scmp.ne.s32.totalorder %s29, %s32
      %p41 = scmp.eq.s32.totalorder %s24, 1
      %p42 = por %p40, %p41
      %p43 = scmp.ne.s32.totalorder %s32, %s33
      %p44 = scmp.eq.s32.totalorder %s24, 0
      %p45 = por %p43, %p44
      %p46 = scmp.ne.s32.totalorder %s32, %s33
      %p47 = scmp.eq.s32.totalorder %s25, 1
      %p48 = por %p46, %p47
      %p50 = scmp.ne.s32.totalorder %s33, %s49
      %p51 = scmp.eq.s32.totalorder %s25, 0
      %p52 = por %p50, %p51
      %s54 = sadd.s32 %s53, 1
      %p57 = scmp.eq.s32.totalorder %s19, 1
      %p58 = scmp.ne.s32.totalorder %s53, %s55
      %p59 = scmp.eq.s32.totalorder %s19, 0
      %p60 = por %p58, %p59
      %p61 = scmp.ne.s32.totalorder %s53, %s55
      %p62 = scmp.eq.s32.totalorder %s24, 1
      %p63 = por %p61, %p62
      %p64 = scmp.ne.s32.totalorder %s55, %s56
      %p65 = scmp.eq.s32.totalorder %s24, 0
      %p66 = por %p64, %p65
      %p67 = scmp.ne.s32.totalorder %s55, %s56
      %p68 = scmp.eq.s32.totalorder %s25, 1
      %p69 = por %p67, %p68
      %p71 = scmp.ne.s32.totalorder %s56, %s70
      %p72 = scmp.eq.s32.totalorder %s25, 0
      %p73 = por %p71, %p72
      %s75 = sadd.s32 %s74, 1
      %p78 = scmp.eq.s32.totalorder %s19, 1
      %p79 = scmp.ne.s32.totalorder %s74, %s76
      %p80 = scmp.eq.s32.totalorder %s19, 0
      %p81 = por %p79, %p80
      %p82 = scmp.ne.s32.totalorder %s74, %s76
      %p83 = scmp.eq.s32.totalorder %s24, 1
      %p84 = por %p82, %p83
      %p85 = scmp.ne.s32.totalorder %s76, %s77
      %p86 = scmp.eq.s32.totalorder %s24, 0
      %p87 = por %p85, %p86
      %p88 = scmp.ne.s32.totalorder %s76, %s77
      %p89 = scmp.eq.s32.totalorder %s25, 1
      %p90 = por %p88, %p89
      %p92 = scmp.ne.s32.totalorder %s77, %s91
      %p93 = scmp.eq.s32.totalorder %s25, 0
      %p94 = por %p92, %p93
      %s96 = sadd.s32 %s95, 1
      %p99 = scmp.eq.s32.totalorder %s19, 1
      %p100 = scmp.ne.s32.totalorder %s95, %s97
      %p101 = scmp.eq.s32.totalorder %s19, 0
      %p102 = por %p100, %p101
      %p103 = scmp.ne.s32.totalorder %s95, %s97
      %p104 = scmp.eq.s32.totalorder %s24, 1
      %p105 = por %p103, %p104
      %p106 = scmp.ne.s32.totalorder %s97, %s98
      %p107 = scmp.eq.s32.totalorder %s24, 0
      %p108 = por %p106, %p107
      %p109 = scmp.ne.s32.totalorder %s97, %s98
      %p110 = scmp.eq.s32.totalorder %s25, 1
      %p111 = por %p109, %p110
      %p113 = scmp.ne.s32.totalorder %s98, %s112
      %p114 = scmp.eq.s32.totalorder %s25, 0
      %p115 = por %p113, %p114
      %s117 = sadd.s32 %s116, 1
      %p120 = scmp.eq.s32.totalorder %s19, 1
      %p121 = scmp.ne.s32.totalorder %s116, %s118
      %p122 = scmp.eq.s32.totalorder %s19, 0
      %p123 = por %p121, %p122
      %p124 = scmp.ne.s32.totalorder %s116, %s118
      %p125 = scmp.eq.s32.totalorder %s24, 1
      %p126 = por %p124, %p125
      %p127 = scmp.ne.s32.totalorder %s118, %s119
      %p128 = scmp.eq.s32.totalorder %s24, 0
      %p129 = por %p127, %p128
      %p130 = scmp.ne.s32.totalorder %s118, %s119
      %p131 = scmp.eq.s32.totalorder %s25, 1
      %p132 = por %p130, %p131
      %p134 = scmp.ne.s32.totalorder %s119, %s133
      %p135 = scmp.eq.s32.totalorder %s25, 0
      %p136 = por %p134, %p135
      %s138 = sadd.s32 %s137, 1
      %p141 = scmp.eq.s32.totalorder %s19, 1
      %p142 = scmp.ne.s32.totalorder %s137, %s139
      %p143 = scmp.eq.s32.totalorder %s19, 0
      %p144 = por %p142, %p143
      %p145 = scmp.ne.s32.totalorder %s137, %s139
      %p146 = scmp.eq.s32.totalorder %s24, 1
      %p147 = por %p145, %p146
      %p148 = scmp.ne.s32.totalorder %s139, %s140
      %p149 = scmp.eq.s32.totalorder %s24, 0
      %p150 = por %p148, %p149
      %p151 = scmp.ne.s32.totalorder %s139, %s140
      %p152 = scmp.eq.s32.totalorder %s25, 1
      %p153 = por %p151, %p152
      %p155 = scmp.ne.s32.totalorder %s140, %s154
      %p156 = scmp.eq.s32.totalorder %s25, 0
      %p157 = por %p155, %p156
      %s159 = sadd.s32 %s158, 1
      %p162 = scmp.eq.s32.totalorder %s19, 1
      %p163 = scmp.ne.s32.totalorder %s158, %s160
      %p164 = scmp.eq.s32.totalorder %s19, 0
      %p165 = por %p163, %p164
      %p166 = scmp.ne.s32.totalorder %s158, %s160
      %p167 = scmp.eq.s32.totalorder %s24, 1
      %p168 = por %p166, %p167
      %p169 = scmp.ne.s32.totalorder %s160, %s161
      %p170 = scmp.eq.s32.totalorder %s24, 0
      %p171 = por %p169, %p170
      %p172 = scmp.ne.s32.totalorder %s160, %s161
      %p173 = scmp.eq.s32.totalorder %s25, 1
      %p174 = por %p172, %p173
      %p176 = scmp.ne.s32.totalorder %s161, %s175
      %p177 = scmp.eq.s32.totalorder %s25, 0
      %p178 = por %p176, %p177
      %s180 = sadd.s32 %s179, 1
      %p183 = scmp.eq.s32.totalorder %s19, 1
      %p184 = scmp.ne.s32.totalorder %s179, %s181
      %p185 = scmp.eq.s32.totalorder %s19, 0
      %p186 = por %p184, %p185
      %p187 = scmp.ne.s32.totalorder %s179, %s181
      %p188 = scmp.eq.s32.totalorder %s24, 1
      %p189 = por %p187, %p188
      %p190 = scmp.ne.s32.totalorder %s181, %s182
      %p191 = scmp.eq.s32.totalorder %s24, 0
      %p192 = por %p190, %p191
      %p193 = scmp.ne.s32.totalorder %s181, %s182
      %p194 = scmp.eq.s32.totalorder %s25, 1
      %p195 = por %p193, %p194
      %p197 = scmp.ne.s32.totalorder %s182, %s196
      %p198 = scmp.eq.s32.totalorder %s25, 0
      %p199 = por %p197, %p198
      %s201 = sadd.s32 %s200, 1
      %p204 = scmp.eq.s32.totalorder %s19, 1
      %p205 = scmp.ne.s32.totalorder %s200, %s202
      %p206 = scmp.eq.s32.totalorder %s19, 0
      %p207 = por %p205, %p206
      %p208 = scmp.ne.s32.totalorder %s200, %s202
      %p209 = scmp.eq.s32.totalorder %s24, 1
      %p210 = por %p208, %p209
      %p211 = scmp.ne.s32.totalorder %s202, %s203
      %p212 = scmp.eq.s32.totalorder %s24, 0
      %p213 = por %p211, %p212
      %p214 = scmp.ne.s32.totalorder %s202, %s203
      %p215 = scmp.eq.s32.totalorder %s25, 1
      %p216 = por %p214, %p215
      %p218 = scmp.ne.s32.totalorder %s203, %s217
      %p219 = scmp.eq.s32.totalorder %s25, 0
      %p220 = por %p218, %p219
      %s222 = sadd.s32 %s221, 1
      %p225 = scmp.eq.s32.totalorder %s19, 1
      %p226 = scmp.ne.s32.totalorder %s221, %s223
      %p227 = scmp.eq.s32.totalorder %s19, 0
      %p228 = por %p226, %p227
      %p229 = scmp.ne.s32.totalorder %s221, %s223
      %p230 = scmp.eq.s32.totalorder %s24, 1
      %p231 = por %p229, %p230
      %p232 = scmp.ne.s32.totalorder %s223, %s224
      %p233 = scmp.eq.s32.totalorder %s24, 0
      %p234 = por %p232, %p233
      %p235 = scmp.ne.s32.totalorder %s223, %s224
      %p236 = scmp.eq.s32.totalorder %s25, 1
      %p237 = por %p235, %p236
      %p239 = scmp.ne.s32.totalorder %s224, %s238
      %p240 = scmp.eq.s32.totalorder %s25, 0
      %p241 = por %p239, %p240
      %s242 = ssub.s32 %s19, %s26
      %p243 = scmp.eq.s32.totalorder %s242, 0
      %s245 = sadd.s32 %s244, 1
      %s246 = scalar_select %p243, %s244, %s245
      %p249 = pneg %p243
      %p250 = scmp.eq.s32.totalorder %s19, 1
      %p251 = por %p249, %p250
      %p252 = scmp.ne.s32.totalorder %s244, %s247
      %p253 = scmp.eq.s32.totalorder %s19, 0
      %p254 = por %p252, %p253
      %p255 = scmp.ne.s32.totalorder %s244, %s247
      %p256 = scmp.eq.s32.totalorder %s24, 1
      %p257 = por %p255, %p256
      %p258 = scmp.ne.s32.totalorder %s247, %s248
      %p259 = scmp.eq.s32.totalorder %s24, 0
      %p260 = por %p258, %p259
      %p261 = scmp.ne.s32.totalorder %s247, %s248
      %p262 = scmp.eq.s32.totalorder %s25, 1
      %p263 = por %p261, %p262
      %p265 = scmp.ne.s32.totalorder %s248, %s264
      %p266 = scmp.eq.s32.totalorder %s25, 0
      %p267 = por %p265, %p266
      %p268 = scmp.le.s32.totalorder 1, %s19
      %p269 = scmp.lt.s32.totalorder %s19, 3
      %p270 = pnand %p268, %p269
      %p271 = pneg %p270
      // Predicated region
      $region9: #{tpu_custom_call.1} parent=5 // pred_check
        _
      $region10: #{tpu_custom_call.1} parent=5 // pred_check_branch
        %273 = sbr.rel (%p270) target = $region12
      $region11: #{tpu_custom_call.1} parent=5 // pred_region
        %s274 = ssub.s32 %s19, 1
        // Predicated region
        $region13: #{tpu_custom_call.1} parent=11 // pred_check
          %p275 = pneg %p66
        $region14: #{tpu_custom_call.1} parent=11 // pred_check_branch
          %277 = sbr.rel (%p275) target = $region16
        $region15: #{tpu_custom_call.1} parent=11 // pred_region
          _
        $region16: #{tpu_custom_call.1} parent=11 // pred_fallthru
          _
        // Predicated region
        $region17: #{tpu_custom_call.1} parent=11 // pred_check
          %p278 = pneg %p87
        $region18: #{tpu_custom_call.1} parent=11 // pred_check_branch
          %280 = sbr.rel (%p278) target = $region20
        $region19: #{tpu_custom_call.1} parent=11 // pred_region
          _
        $region20: #{tpu_custom_call.1} parent=11 // pred_fallthru
          _
        // Predicated region
        $region21: #{tpu_custom_call.1} parent=11 // pred_check
          %p281 = pneg %p108
        $region22: #{tpu_custom_call.1} parent=11 // pred_check_branch
          %283 = sbr.rel (%p281) target = $region24
        $region23: #{tpu_custom_call.1} parent=11 // pred_region
          _
        $region24: #{tpu_custom_call.1} parent=11 // pred_fallthru
          _
        // Predicated region
        $region25: #{tpu_custom_call.1} parent=11 // pred_check
          %p284 = pneg %p129
        $region26: #{tpu_custom_call.1} parent=11 // pred_check_branch
          %286 = sbr.rel (%p284) target = $region28
        $region27: #{tpu_custom_call.1} parent=11 // pred_region
          _
        $region28: #{tpu_custom_call.1} parent=11 // pred_fallthru
          _
        // Predicated region
        $region29: #{tpu_custom_call.1} parent=11 // pred_check
          %p287 = pneg %p150
        $region30: #{tpu_custom_call.1} parent=11 // pred_check_branch
          %289 = sbr.rel (%p287) target = $region32
        $region31: #{tpu_custom_call.1} parent=11 // pred_region
          _
        $region32: #{tpu_custom_call.1} parent=11 // pred_fallthru
          _
        // Predicated region
        $region33: #{tpu_custom_call.1} parent=11 // pred_check
          %p290 = pneg %p171
        $region34: #{tpu_custom_call.1} parent=11 // pred_check_branch
          %292 = sbr.rel (%p290) target = $region36
        $region35: #{tpu_custom_call.1} parent=11 // pred_region
          _
        $region36: #{tpu_custom_call.1} parent=11 // pred_fallthru
          _
        // Predicated region
        $region37: #{tpu_custom_call.1} parent=11 // pred_check
          %p293 = pneg %p192
        $region38: #{tpu_custom_call.1} parent=11 // pred_check_branch
          %295 = sbr.rel (%p293) target = $region40
        $region39: #{tpu_custom_call.1} parent=11 // pred_region
          _
        $region40: #{tpu_custom_call.1} parent=11 // pred_fallthru
          _
        // Predicated region
        $region41: #{tpu_custom_call.1} parent=11 // pred_check
          %p296 = pneg %p213
        $region42: #{tpu_custom_call.1} parent=11 // pred_check_branch
          %298 = sbr.rel (%p296) target = $region44
        $region43: #{tpu_custom_call.1} parent=11 // pred_region
          _
        $region44: #{tpu_custom_call.1} parent=11 // pred_fallthru
          _
        // Predicated region
        $region45: #{tpu_custom_call.1} parent=11 // pred_check
          %p299 = pneg %p234
        $region46: #{tpu_custom_call.1} parent=11 // pred_check_branch
          %301 = sbr.rel (%p299) target = $region48
        $region47: #{tpu_custom_call.1} parent=11 // pred_region
          _
        $region48: #{tpu_custom_call.1} parent=11 // pred_fallthru
          _
      $region12: #{tpu_custom_call.1} parent=5 // pred_fallthru
        _
      %p302 = scmp.lt.s32.totalorder %s19, 2
      // Predicated region
      $region49: #{tpu_custom_call.1} parent=5 // pred_check
        %p303 = pneg %p302
      $region50: #{tpu_custom_call.1} parent=5 // pred_check_branch
        %305 = sbr.rel (%p303) target = $region52
      $region51: #{tpu_custom_call.1} parent=5 // pred_region
        // Predicated region
        $region53: #{tpu_custom_call.1} parent=51 // pred_check
          %p306 = pneg %p39
        $region54: #{tpu_custom_call.1} parent=51 // pred_check_branch
          %308 = sbr.rel (%p306) target = $region56
        $region55: #{tpu_custom_call.1} parent=51 // pred_region
          %p309 = scmp.lt.s32.totalorder %s19, 1
          %s310 = scalar_select %p309, %s19, 1
          %s311 = smul.addr %s310, 4
          %s312 = smul.addr %s311, 4
          %s313 = scalar_lea.vmem %s0, %s312
        $region56: #{tpu_custom_call.1} parent=51 // pred_fallthru
          _
      $region52: #{tpu_custom_call.1} parent=5 // pred_fallthru
        _
      %p314 = scmp.le.s32.totalorder 1, %s19
      %p315 = scmp.lt.s32.totalorder %s19, 3
      %p316 = pnand %p314, %p315
      %p317 = pneg %p316
      // Predicated region
      $region57: #{tpu_custom_call.1} parent=5 // pred_check
        _
      $region58: #{tpu_custom_call.1} parent=5 // pred_check_branch
        %319 = sbr.rel (%p316) target = $region60
      $region59: #{tpu_custom_call.1} parent=5 // pred_region
        %s320 = ssub.s32 %s19, 1
        %p321 = scmp.lt.s32.totalorder %s24, 1
        %s322 = scalar_select %p321, %s24, 1
        %s323 = smul.addr %s322, 4
        %s324 = smul.addr %s323, 4
        %s325 = scalar_lea.vmem %s0, %s324
        %p326 = pneg %p45
        %p327 = pneg %p42
        %p328 = pneg %p66
        %p329 = pneg %p63
        %p330 = pneg %p87
        %p331 = pneg %p84
        %p332 = pneg %p108
        %p333 = pneg %p105
        %p334 = pneg %p129
        %p335 = pneg %p126
        %p336 = pneg %p150
        %p337 = pneg %p147
        %p338 = pneg %p171
        %p339 = pneg %p168
        %p340 = pneg %p192
        %p341 = pneg %p189
        %p342 = pneg %p213
        %p343 = pneg %p210
        %p344 = pneg %p234
        %p345 = pneg %p231
        %p346 = pneg %p260
        %p347 = pneg %p257
        %s348 = sand.u32 %s247, 1
        %s349 = scalar_lea.sflag [#allocation5], %s348
        %s350 = sand.u32 %s247, 1
        %s351 = smul.addr %s350, 24
        %s352 = scalar_lea.vmem [#allocation4], %s351
        %p353 = scmp.lt.s32.totalorder %s24, 1
        %s354 = scalar_select %p353, %s24, 1
        %s355 = smul.addr %s354, 4
        %s356 = smul.addr %s355, 4
        %s357 = scalar_lea.vmem %s0, %s356
        %359 = vst [vmem:[#allocation3] sm:$0xff] 0
        %360 = vst [vmem:[#allocation3 + $0x8] sm:$0x3] 0
        %v361 = vld [vmem:[%s357] sm:$0xff]
        %v362 = vld [vmem:[%s357 + $0x8] sm:$0xff]
        %v365 = vcombine.high %v361, %v361
        %v366 = vcombine.high %v362, %v362
        %vm369 = vcmask 1043456
        %v370 = vsel %vm369, %v361, 0.0
        %v371 = vrot.slane %v370, 4
        %v372 = vadd.f32 %v370, %v371
        %v373 = vrot.slane %v372, 2
        %v374 = vadd.f32 %v372, %v373
        %v375 = vrot.slane %v374, 1
        %v376 = vadd.f32 %v374, %v375
        %v377 = vsel %vm369, %v365, 0.0
        %v378 = vrot.slane %v377, 4
        %v379 = vadd.f32 %v377, %v378
        %v380 = vrot.slane %v379, 2
        %v381 = vadd.f32 %v379, %v380
        %v382 = vrot.slane %v381, 1
        %v383 = vadd.f32 %v381, %v382
        %v384 = vsel %vm369, %v362, 0.0
        %v385 = vrot.slane %v384, 4
        %v386 = vadd.f32 %v384, %v385
        %v387 = vrot.slane %v386, 2
        %v388 = vadd.f32 %v386, %v387
        %v389 = vrot.slane %v388, 1
        %v390 = vadd.f32 %v388, %v389
        %vm391 = vcmask 814080
        %v392 = vsel %vm391, %v366, 0.0
        %v393 = vrot.slane %v392, 4
        %v394 = vadd.f32 %v392, %v393
        %v395 = vrot.slane %v394, 2
        %v396 = vadd.f32 %v394, %v395
        %v397 = vrot.slane %v396, 1
        %v398 = vadd.f32 %v396, %v397
        %v399 = vrcp.pop 4.0
        %v400 = vmul.f32 %v376, %v399
        %v401 = vmul.f32 %v383, %v399
        %v402 = vmul.f32 %v390, %v399
        %v403 = vmul.f32 %v398, %v399
        %v404 = vmul.f32 %v361, %v361
        %v405 = vmul.f32 %v362, %v362
        %v408 = vcombine.high %v404, %v404
        %v409 = vcombine.high %v405, %v405
        %v412 = vsel %vm369, %v404, 0.0
        %v413 = vrot.slane %v412, 4
        %v414 = vadd.f32 %v412, %v413
        %v415 = vrot.slane %v414, 2
        %v416 = vadd.f32 %v414, %v415
        %v417 = vrot.slane %v416, 1
        %v418 = vadd.f32 %v416, %v417
        %v419 = vsel %vm369, %v408, 0.0
        %v420 = vrot.slane %v419, 4
        %v421 = vadd.f32 %v419, %v420
        %v422 = vrot.slane %v421, 2
        %v423 = vadd.f32 %v421, %v422
        %v424 = vrot.slane %v423, 1
        %v425 = vadd.f32 %v423, %v424
        %v426 = vsel %vm369, %v405, 0.0
        %v427 = vrot.slane %v426, 4
        %v428 = vadd.f32 %v426, %v427
        %v429 = vrot.slane %v428, 2
        %v430 = vadd.f32 %v428, %v429
        %v431 = vrot.slane %v430, 1
        %v432 = vadd.f32 %v430, %v431
        %v433 = vsel %vm391, %v409, 0.0
        %v434 = vrot.slane %v433, 4
        %v435 = vadd.f32 %v433, %v434
        %v436 = vrot.slane %v435, 2
        %v437 = vadd.f32 %v435, %v436
        %v438 = vrot.slane %v437, 1
        %v439 = vadd.f32 %v437, %v438
        %v440 = vmul.f32 %v418, %v399
        %v441 = vmul.f32 %v425, %v399
        %v442 = vmul.f32 %v432, %v399
        %v443 = vmul.f32 %v439, %v399
        %v444 = vmul.f32 %v400, %v400
        %v445 = vmul.f32 %v401, %v401
        %v446 = vmul.f32 %v402, %v402
        %v447 = vmul.f32 %v403, %v403
        %v448 = vsub.f32 %v440, %v444
        %v449 = vsub.f32 %v441, %v445
        %v450 = vsub.f32 %v442, %v446
        %v451 = vsub.f32 %v443, %v447
        %v452 = vadd.f32 %v448, 1e-06
        %v453 = vadd.f32 %v449, 1e-06
        %v454 = vadd.f32 %v450, 1e-06
        %v455 = vadd.f32 %v451, 1e-06
        %v456 = vrsqrt.pop %v452
        %v457 = vrsqrt.pop %v453
        %v458 = vrsqrt.pop %v454
        %v459 = vrsqrt.pop %v455
        %v464 = vcombine.low %v400, %v401
        %v465 = vcombine.low %v402, %v403
        %v468 = vsub.f32 %v361, %v464
        %v469 = vsub.f32 %v362, %v465
        %v474 = vcombine.low %v456, %v457
        %v475 = vcombine.low %v458, %v459
        %v478 = vmul.f32 %v468, %v474
        %v479 = vmul.f32 %v469, %v475
        %v480 = vld [vmem:[%s2] sm:$0xf]
        %482 = vset.pattern.permute.xlu0 0
        %483 = vperm.xlu0 %482, %v480
        %v484 = vpop.permute.xlu0 %483
        %v486 = vunpack.c.l.s4 839922192
        %v487 = vunpack.c.0.s8 %v486
        %v488 = vlaneseq
        %v489 = vshrl.u32 %v488, 7
        %v490 = vsub.s32 %v487, %v489
        %v491 = vrot.slane %v484, %v490
        %v493 = vmul.f32 %v478, %v491
        %v494 = vmul.f32 %v479, %v491
        %v495 = vld [vmem:[%s3] sm:$0xf]
        %497 = vset.pattern.permute.xlu0 0
        %498 = vperm.xlu0 %497, %v495
        %v499 = vpop.permute.xlu0 %498
        %v501 = vunpack.c.l.s4 839922192
        %v502 = vunpack.c.0.s8 %v501
        %v503 = vlaneseq
        %v504 = vshrl.u32 %v503, 7
        %v505 = vsub.s32 %v502, %v504
        %v506 = vrot.slane %v499, %v505
        %v508 = vadd.f32 %v493, %v506
        %v509 = vadd.f32 %v494, %v506
        %v510 = vld [vmem:[%s1] sm:$0xf]
        %v512 = vlaneseq
        %v513 = vshrl.u32 %v512, 7
        %v514 = vsub.s32 0, %v513
        %v515 = vrot.slane %v510, %v514
        %v516 = vlaneseq
        %v517 = vshrl.u32 %v516, 7
        %v518 = vsub.s32 1, %v517
        %v519 = vrot.slane %v510, %v518
        %v520 = vlaneseq
        %v521 = vshrl.u32 %v520, 7
        %v522 = vsub.s32 2, %v521
        %v523 = vrot.slane %v510, %v522
        %v524 = vlaneseq
        %v525 = vshrl.u32 %v524, 7
        %v526 = vsub.s32 3, %v525
        %v527 = vrot.slane %v510, %v526
        %v528 = vcombine.low %v515, %v519
        %v529 = vcombine.low %v523, %v527
        %v532 = vmul.f32 %v508, %v528
        %v533 = vmul.f32 %v509, %v529
        %534 = vst [vmem:[#allocation2] sm:$0xff] %v532
        %vm535 = vcmask 818180
        %vm536 = vmor %vm535, %vm369
        %537 = vst.msk [vmem:[#allocation2 + $0x8] sm:$0xff] %vm536, %v533
        %v538 = vld [vmem:[#allocation2] sm:$0xff]
        %v539 = vld [vmem:[#allocation2 + $0x8] sm:$0xf]
        %v540 = vld [vmem:[%s4] sm:$0xf]
        %542 = vset.pattern.permute.xlu0 0
        %543 = vperm.xlu0 %542, %v540
        %v544 = vpop.permute.xlu0 %543
        %v546 = vunpack.c.l.s4 839922192
        %v547 = vunpack.c.0.s8 %v546
        %v548 = vlaneseq
        %v549 = vshrl.u32 %v548, 7
        %v550 = vsub.s32 %v547, %v549
        %v551 = vrot.slane %v544, %v550
        %v553 = vmul.f32 %v538, %v551
        %v554 = vmul.f32 %v539, %v551
        %v555 = vadd.f32 %v553, 0.0
        %v556 = vadd.f32 %v554, 0.0
        %557 = vset.pattern.permute.xlu0 1
        %558 = vperm.xlu0 %557, %v540
        %v559 = vpop.permute.xlu0 %558
        %v561 = vunpack.c.l.s4 839922192
        %v562 = vunpack.c.0.s8 %v561
        %v563 = vlaneseq
        %v564 = vshrl.u32 %v563, 7
        %v565 = vsub.s32 %v562, %v564
        %v566 = vrot.slane %v559, %v565
        %v568 = vmul.f32 %v538, %v566
        %v569 = vmul.f32 %v539, %v566
        %572 = vrot.lane.b32.xlu0 %v568, 127
        %v573 = vpop.permute.xlu0 %572
        %574 = vrot.lane.b32.xlu0 %v569, 127
        %v575 = vpop.permute.xlu0 %574
        %v576 = vrot.slane %v573, 4
        %v577 = vrot.slane %v575, 4
        %v578 = vsel %vm369, %v576, %v577
        %vm579 = vcmask 1039360
        %v580 = vsel %vm579, %v573, %v578
        %v583 = vadd.f32 %v555, %v580
        %v584 = vadd.f32 %v556, %v575
        %585 = vset.pattern.permute.xlu0 2
        %586 = vperm.xlu0 %585, %v540
        %v587 = vpop.permute.xlu0 %586
        %v589 = vunpack.c.l.s4 839922192
        %v590 = vunpack.c.0.s8 %v589
        %v591 = vlaneseq
        %v592 = vshrl.u32 %v591, 7
        %v593 = vsub.s32 %v590, %v592
        %v594 = vrot.slane %v587, %v593
        %v596 = vmul.f32 %v538, %v594
        %v597 = vmul.f32 %v539, %v594
        %600 = vrot.lane.b32.xlu0 %v596, 126
        %v601 = vpop.permute.xlu0 %600
        %602 = vrot.lane.b32.xlu0 %v597, 126
        %v603 = vpop.permute.xlu0 %602
        %v604 = vrot.slane %v601, 4
        %v605 = vrot.slane %v603, 4
        %v606 = vsel %vm369, %v604, %v605
        %vm607 = vcmask 1031168
        %v608 = vsel %vm607, %v601, %v606
        %v611 = vadd.f32 %v583, %v608
        %v612 = vadd.f32 %v584, %v603
        %613 = vset.pattern.permute.xlu0 3
        %614 = vperm.xlu0 %613, %v540
        %v615 = vpop.permute.xlu0 %614
        %v617 = vunpack.c.l.s4 839922192
        %v618 = vunpack.c.0.s8 %v617
        %v619 = vlaneseq
        %v620 = vshrl.u32 %v619, 7
        %v621 = vsub.s32 %v618, %v620
        %v622 = vrot.slane %v615, %v621
        %v624 = vmul.f32 %v538, %v622
        %v625 = vmul.f32 %v539, %v622
        %628 = vrot.lane.b32.xlu0 %v624, 125
        %v629 = vpop.permute.xlu0 %628
        %630 = vrot.lane.b32.xlu0 %v625, 125
        %v631 = vpop.permute.xlu0 %630
        %v632 = vrot.slane %v629, 4
        %v633 = vrot.slane %v631, 4
        %v634 = vsel %vm369, %v632, %v633
        %vm635 = vcmask 1022976
        %v636 = vsel %vm635, %v629, %v634
        %v639 = vadd.f32 %v611, %v636
        %v640 = vadd.f32 %v612, %v631
        %641 = vset.pattern.permute.xlu0 4
        %642 = vperm.xlu0 %641, %v540
        %v643 = vpop.permute.xlu0 %642
        %v645 = vunpack.c.l.s4 839922192
        %v646 = vunpack.c.0.s8 %v645
        %v647 = vlaneseq
        %v648 = vshrl.u32 %v647, 7
        %v649 = vsub.s32 %v646, %v648
        %v650 = vrot.slane %v643, %v649
        %v652 = vmul.f32 %v538, %v650
        %v653 = vmul.f32 %v539, %v650
        %656 = vrot.lane.b32.xlu0 %v652, 124
        %v657 = vpop.permute.xlu0 %656
        %658 = vrot.lane.b32.xlu0 %v653, 124
        %v659 = vpop.permute.xlu0 %658
        %v660 = vrot.slane %v657, 4
        %v661 = vrot.slane %v659, 4
        %v662 = vsel %vm369, %v660, %v661
        %vm663 = vcmask 1014784
        %v664 = vsel %vm663, %v657, %v662
        %v667 = vadd.f32 %v639, %v664
        %v668 = vadd.f32 %v640, %v659
        %669 = vset.pattern.permute.xlu0 5
        %670 = vperm.xlu0 %669, %v540
        %v671 = vpop.permute.xlu0 %670
        %v673 = vunpack.c.l.s4 839922192
        %v674 = vunpack.c.0.s8 %v673
        %v675 = vlaneseq
        %v676 = vshrl.u32 %v675, 7
        %v677 = vsub.s32 %v674, %v676
        %v678 = vrot.slane %v671, %v677
        %v680 = vmul.f32 %v538, %v678
        %v681 = vmul.f32 %v539, %v678
        %684 = vrot.lane.b32.xlu0 %v680, 123
        %v685 = vpop.permute.xlu0 %684
        %686 = vrot.lane.b32.xlu0 %v681, 123
        %v687 = vpop.permute.xlu0 %686
        %v688 = vrot.slane %v685, 4
        %v689 = vrot.slane %v687, 4
        %v690 = vsel %vm369, %v688, %v689
        %vm691 = vcmask 1006592
        %v692 = vsel %vm691, %v685, %v690
        %v695 = vadd.f32 %v667, %v692
        %v696 = vadd.f32 %v668, %v687
        %697 = vset.pattern.permute.xlu0 6
        %698 = vperm.xlu0 %697, %v540
        %v699 = vpop.permute.xlu0 %698
        %v701 = vunpack.c.l.s4 839922192
        %v702 = vunpack.c.0.s8 %v701
        %v703 = vlaneseq
        %v704 = vshrl.u32 %v703, 7
        %v705 = vsub.s32 %v702, %v704
        %v706 = vrot.slane %v699, %v705
        %v708 = vmul.f32 %v538, %v706
        %v709 = vmul.f32 %v539, %v706
        %712 = vrot.lane.b32.xlu0 %v708, 122
        %v713 = vpop.permute.xlu0 %712
        %714 = vrot.lane.b32.xlu0 %v709, 122
        %v715 = vpop.permute.xlu0 %714
        %v716 = vrot.slane %v713, 4
        %v717 = vrot.slane %v715, 4
        %v718 = vsel %vm369, %v716, %v717
        %vm719 = vcmask 998400
        %v720 = vsel %vm719, %v713, %v718
        %v723 = vadd.f32 %v695, %v720
        %v724 = vadd.f32 %v696, %v715
        %725 = vset.pattern.permute.xlu0 7
        %726 = vperm.xlu0 %725, %v540
        %v727 = vpop.permute.xlu0 %726
        %v729 = vunpack.c.l.s4 839922192
        %v730 = vunpack.c.0.s8 %v729
        %v731 = vlaneseq
        %v732 = vshrl.u32 %v731, 7
        %v733 = vsub.s32 %v730, %v732
        %v734 = vrot.slane %v727, %v733
        %v736 = vmul.f32 %v538, %v734
        %v737 = vmul.f32 %v539, %v734
        %740 = vrot.lane.b32.xlu0 %v736, 106
        %v741 = vpop.permute.xlu0 %740
        %742 = vrot.lane.b32.xlu0 %v737, 106
        %v743 = vpop.permute.xlu0 %742
        %v744 = vrot.slane %v741, 4
        %v745 = vrot.slane %v743, 4
        %v746 = vsel %vm369, %v744, %v745
        %vm747 = vcmask 867328
        %v748 = vsel %vm747, %v741, %v746
        %v751 = vadd.f32 %v723, %v748
        %v752 = vadd.f32 %v724, %v743
        %753 = vset.pattern.permute.xlu0 8
        %754 = vperm.xlu0 %753, %v540
        %v755 = vpop.permute.xlu0 %754
        %v757 = vunpack.c.l.s4 839922192
        %v758 = vunpack.c.0.s8 %v757
        %v759 = vlaneseq
        %v760 = vshrl.u32 %v759, 7
        %v761 = vsub.s32 %v758, %v760
        %v762 = vrot.slane %v755, %v761
        %v764 = vmul.f32 %v538, %v762
        %v765 = vmul.f32 %v539, %v762
        %768 = vrot.lane.b32.xlu0 %v764, 105
        %v769 = vpop.permute.xlu0 %768
        %770 = vrot.lane.b32.xlu0 %v765, 105
        %v771 = vpop.permute.xlu0 %770
        %v772 = vrot.slane %v769, 4
        %v773 = vrot.slane %v771, 4
        %v774 = vsel %vm369, %v772, %v773
        %vm775 = vcmask 859136
        %v776 = vsel %vm775, %v769, %v774
        %v779 = vadd.f32 %v751, %v776
        %v780 = vadd.f32 %v752, %v771
        %781 = vset.pattern.permute.xlu0 9
        %782 = vperm.xlu0 %781, %v540
        %v783 = vpop.permute.xlu0 %782
        %v785 = vunpack.c.l.s4 839922192
        %v786 = vunpack.c.0.s8 %v785
        %v787 = vlaneseq
        %v788 = vshrl.u32 %v787, 7
        %v789 = vsub.s32 %v786, %v788
        %v790 = vrot.slane %v783, %v789
        %v792 = vmul.f32 %v538, %v790
        %v793 = vmul.f32 %v539, %v790
        %796 = vrot.lane.b32.xlu0 %v792, 104
        %v797 = vpop.permute.xlu0 %796
        %798 = vrot.lane.b32.xlu0 %v793, 104
        %v799 = vpop.permute.xlu0 %798
        %v800 = vrot.slane %v797, 4
        %v801 = vrot.slane %v799, 4
        %v802 = vsel %vm369, %v800, %v801
        %vm803 = vcmask 850944
        %v804 = vsel %vm803, %v797, %v802
        %v807 = vadd.f32 %v779, %v804
        %v808 = vadd.f32 %v780, %v799
        %809 = vset.pattern.permute.xlu0 10
        %810 = vperm.xlu0 %809, %v540
        %v811 = vpop.permute.xlu0 %810
        %v813 = vunpack.c.l.s4 839922192
        %v814 = vunpack.c.0.s8 %v813
        %v815 = vlaneseq
        %v816 = vshrl.u32 %v815, 7
        %v817 = vsub.s32 %v814, %v816
        %v818 = vrot.slane %v811, %v817
        %v820 = vmul.f32 %v538, %v818
        %v821 = vmul.f32 %v539, %v818
        %824 = vrot.lane.b32.xlu0 %v820, 103
        %v825 = vpop.permute.xlu0 %824
        %826 = vrot.lane.b32.xlu0 %v821, 103
        %v827 = vpop.permute.xlu0 %826
        %v828 = vrot.slane %v825, 4
        %v829 = vrot.slane %v827, 4
        %v830 = vsel %vm369, %v828, %v829
        %vm831 = vcmask 842752
        %v832 = vsel %vm831, %v825, %v830
        %v835 = vadd.f32 %v807, %v832
        %v836 = vadd.f32 %v808, %v827
        %837 = vset.pattern.permute.xlu0 11
        %838 = vperm.xlu0 %837, %v540
        %v839 = vpop.permute.xlu0 %838
        %v841 = vunpack.c.l.s4 839922192
        %v842 = vunpack.c.0.s8 %v841
        %v843 = vlaneseq
        %v844 = vshrl.u32 %v843, 7
        %v845 = vsub.s32 %v842, %v844
        %v846 = vrot.slane %v839, %v845
        %v848 = vmul.f32 %v538, %v846
        %v849 = vmul.f32 %v539, %v846
        %852 = vrot.lane.b32.xlu0 %v848, 102
        %v853 = vpop.permute.xlu0 %852
        %854 = vrot.lane.b32.xlu0 %v849, 102
        %v855 = vpop.permute.xlu0 %854
        %v856 = vrot.slane %v853, 4
        %v857 = vrot.slane %v855, 4
        %v858 = vsel %vm369, %v856, %v857
        %vm859 = vcmask 834560
        %v860 = vsel %vm859, %v853, %v858
        %v863 = vadd.f32 %v835, %v860
        %v864 = vadd.f32 %v836, %v855
        %865 = vset.pattern.permute.xlu0 12
        %866 = vperm.xlu0 %865, %v540
        %v867 = vpop.permute.xlu0 %866
        %v869 = vunpack.c.l.s4 839922192
        %v870 = vunpack.c.0.s8 %v869
        %v871 = vlaneseq
        %v872 = vshrl.u32 %v871, 7
        %v873 = vsub.s32 %v870, %v872
        %v874 = vrot.slane %v867, %v873
        %v876 = vmul.f32 %v538, %v874
        %v877 = vmul.f32 %v539, %v874
        %880 = vrot.lane.b32.xlu0 %v876, 101
        %v881 = vpop.permute.xlu0 %880
        %882 = vrot.lane.b32.xlu0 %v877, 101
        %v883 = vpop.permute.xlu0 %882
        %v884 = vrot.slane %v881, 4
        %v885 = vrot.slane %v883, 4
        %v886 = vsel %vm369, %v884, %v885
        %vm887 = vcmask 826368
        %v888 = vsel %vm887, %v881, %v886
        %v891 = vadd.f32 %v863, %v888
        %v892 = vadd.f32 %v864, %v883
        %893 = vset.pattern.permute.xlu0 13
        %894 = vperm.xlu0 %893, %v540
        %v895 = vpop.permute.xlu0 %894
        %v897 = vunpack.c.l.s4 839922192
        %v898 = vunpack.c.0.s8 %v897
        %v899 = vlaneseq
        %v900 = vshrl.u32 %v899, 7
        %v901 = vsub.s32 %v898, %v900
        %v902 = vrot.slane %v895, %v901
        %v904 = vmul.f32 %v538, %v902
        %v905 = vmul.f32 %v539, %v902
        %908 = vrot.lane.b32.xlu0 %v904, 100
        %v909 = vpop.permute.xlu0 %908
        %910 = vrot.lane.b32.xlu0 %v905, 100
        %v911 = vpop.permute.xlu0 %910
        %v912 = vrot.slane %v909, 4
        %v913 = vrot.slane %v911, 4
        %v914 = vsel %vm369, %v912, %v913
        %vm915 = vcmask 818176
        %v916 = vsel %vm915, %v909, %v914
        %v919 = vadd.f32 %v891, %v916
        %v920 = vadd.f32 %v892, %v911
        %v921 = vld [vmem:[#allocation2] sm:$0xff]
        %v922 = vld [vmem:[#allocation2 + $0x8] sm:$0xff]
        %923 = vset.pattern.permute.xlu0 14
        %924 = vperm.xlu0 %923, %v540
        %v925 = vpop.permute.xlu0 %924
        %v927 = vunpack.c.l.s4 839922192
        %v928 = vunpack.c.0.s8 %v927
        %v929 = vlaneseq
        %v930 = vshrl.u32 %v929, 7
        %v931 = vsub.s32 %v928, %v930
        %v932 = vrot.slane %v925, %v931
        %v934 = vmul.f32 %v921, %v932
        %v935 = vmul.f32 %v922, %v932
        %938 = vrot.lane.b32.xlu0 %v934, 84
        %v939 = vpop.permute.xlu0 %938
        %940 = vrot.lane.b32.xlu0 %v935, 84
        %v941 = vpop.permute.xlu0 %940
        %v942 = vrot.slane %v939, 4
        %v943 = vrot.slane %v941, 4
        %v944 = vsel %vm369, %v942, %v943
        %vm945 = vcmask 687104
        %v946 = vsel %vm945, %v939, %v944
        %v947 = vsel %vm945, %v941, %v943
        %v950 = vadd.f32 %v919, %v946
        %v951 = vadd.f32 %v920, %v947
        %952 = vset.pattern.permute.xlu0 15
        %953 = vperm.xlu0 %952, %v540
        %v954 = vpop.permute.xlu0 %953
        %v956 = vunpack.c.l.s4 839922192
        %v957 = vunpack.c.0.s8 %v956
        %v958 = vlaneseq
        %v959 = vshrl.u32 %v958, 7
        %v960 = vsub.s32 %v957, %v959
        %v961 = vrot.slane %v954, %v960
        %v963 = vmul.f32 %v921, %v961
        %v964 = vmul.f32 %v922, %v961
        %967 = vrot.lane.b32.xlu0 %v963, 83
        %v968 = vpop.permute.xlu0 %967
        %969 = vrot.lane.b32.xlu0 %v964, 83
        %v970 = vpop.permute.xlu0 %969
        %v971 = vrot.slane %v968, 4
        %v972 = vrot.slane %v970, 4
        %v973 = vsel %vm369, %v971, %v972
        %vm974 = vcmask 678912
        %v975 = vsel %vm974, %v968, %v973
        %v976 = vsel %vm974, %v970, %v972
        %v979 = vadd.f32 %v950, %v975
        %v980 = vadd.f32 %v951, %v976
        %981 = vset.pattern.permute.xlu0 16
        %982 = vperm.xlu0 %981, %v540
        %v983 = vpop.permute.xlu0 %982
        %v985 = vunpack.c.l.s4 839922192
        %v986 = vunpack.c.0.s8 %v985
        %v987 = vlaneseq
        %v988 = vshrl.u32 %v987, 7
        %v989 = vsub.s32 %v986, %v988
        %v990 = vrot.slane %v983, %v989
        %v992 = vmul.f32 %v921, %v990
        %v993 = vmul.f32 %v922, %v990
        %996 = vrot.lane.b32.xlu0 %v992, 82
        %v997 = vpop.permute.xlu0 %996
        %998 = vrot.lane.b32.xlu0 %v993, 82
        %v999 = vpop.permute.xlu0 %998
        %v1000 = vrot.slane %v997, 4
        %v1001 = vrot.slane %v999, 4
        %v1002 = vsel %vm369, %v1000, %v1001
        %vm1003 = vcmask 670720
        %v1004 = vsel %vm1003, %v997, %v1002
        %v1005 = vsel %vm1003, %v999, %v1001
        %v1008 = vadd.f32 %v979, %v1004
        %v1009 = vadd.f32 %v980, %v1005
        %1010 = vset.pattern.permute.xlu0 17
        %1011 = vperm.xlu0 %1010, %v540
        %v1012 = vpop.permute.xlu0 %1011
        %v1014 = vunpack.c.l.s4 839922192
        %v1015 = vunpack.c.0.s8 %v1014
        %v1016 = vlaneseq
        %v1017 = vshrl.u32 %v1016, 7
        %v1018 = vsub.s32 %v1015, %v1017
        %v1019 = vrot.slane %v1012, %v1018
        %v1021 = vmul.f32 %v921, %v1019
        %v1022 = vmul.f32 %v922, %v1019
        %1025 = vrot.lane.b32.xlu0 %v1021, 81
        %v1026 = vpop.permute.xlu0 %1025
        %1027 = vrot.lane.b32.xlu0 %v1022, 81
        %v1028 = vpop.permute.xlu0 %1027
        %v1029 = vrot.slane %v1026, 4
        %v1030 = vrot.slane %v1028, 4
        %v1031 = vsel %vm369, %v1029, %v1030
        %vm1032 = vcmask 662528
        %v1033 = vsel %vm1032, %v1026, %v1031
        %v1034 = vsel %vm1032, %v1028, %v1030
        %v1037 = vadd.f32 %v1008, %v1033
        %v1038 = vadd.f32 %v1009, %v1034
        %1039 = vset.pattern.permute.xlu0 18
        %1040 = vperm.xlu0 %1039, %v540
        %v1041 = vpop.permute.xlu0 %1040
        %v1043 = vunpack.c.l.s4 839922192
        %v1044 = vunpack.c.0.s8 %v1043
        %v1045 = vlaneseq
        %v1046 = vshrl.u32 %v1045, 7
        %v1047 = vsub.s32 %v1044, %v1046
        %v1048 = vrot.slane %v1041, %v1047
        %v1050 = vmul.f32 %v921, %v1048
        %v1051 = vmul.f32 %v922, %v1048
        %1054 = vrot.lane.b32.xlu0 %v1050, 80
        %v1055 = vpop.permute.xlu0 %1054
        %1056 = vrot.lane.b32.xlu0 %v1051, 80
        %v1057 = vpop.permute.xlu0 %1056
        %v1058 = vrot.slane %v1055, 4
        %v1059 = vrot.slane %v1057, 4
        %v1060 = vsel %vm369, %v1058, %v1059
        %vm1061 = vcmask 654336
        %v1062 = vsel %vm1061, %v1055, %v1060
        %v1063 = vsel %vm1061, %v1057, %v1059
        %v1066 = vadd.f32 %v1037, %v1062
        %v1067 = vadd.f32 %v1038, %v1063
        %1068 = vset.pattern.permute.xlu0 19
        %1069 = vperm.xlu0 %1068, %v540
        %v1070 = vpop.permute.xlu0 %1069
        %v1072 = vunpack.c.l.s4 839922192
        %v1073 = vunpack.c.0.s8 %v1072
        %v1074 = vlaneseq
        %v1075 = vshrl.u32 %v1074, 7
        %v1076 = vsub.s32 %v1073, %v1075
        %v1077 = vrot.slane %v1070, %v1076
        %v1079 = vmul.f32 %v921, %v1077
        %v1080 = vmul.f32 %v922, %v1077
        %1083 = vrot.lane.b32.xlu0 %v1079, 79
        %v1084 = vpop.permute.xlu0 %1083
        %1085 = vrot.lane.b32.xlu0 %v1080, 79
        %v1086 = vpop.permute.xlu0 %1085
        %v1087 = vrot.slane %v1084, 4
        %v1088 = vrot.slane %v1086, 4
        %v1089 = vsel %vm369, %v1087, %v1088
        %vm1090 = vcmask 646144
        %v1091 = vsel %vm1090, %v1084, %v1089
        %v1092 = vsel %vm1090, %v1086, %v1088
        %v1095 = vadd.f32 %v1066, %v1091
        %v1096 = vadd.f32 %v1067, %v1092
        %1097 = vset.pattern.permute.xlu0 20
        %1098 = vperm.xlu0 %1097, %v540
        %v1099 = vpop.permute.xlu0 %1098
        %v1101 = vunpack.c.l.s4 839922192
        %v1102 = vunpack.c.0.s8 %v1101
        %v1103 = vlaneseq
        %v1104 = vshrl.u32 %v1103, 7
        %v1105 = vsub.s32 %v1102, %v1104
        %v1106 = vrot.slane %v1099, %v1105
        %v1108 = vmul.f32 %v921, %v1106
        %v1109 = vmul.f32 %v922, %v1106
        %1112 = vrot.lane.b32.xlu0 %v1108, 78
        %v1113 = vpop.permute.xlu0 %1112
        %1114 = vrot.lane.b32.xlu0 %v1109, 78
        %v1115 = vpop.permute.xlu0 %1114
        %v1116 = vrot.slane %v1113, 4
        %v1117 = vrot.slane %v1115, 4
        %v1118 = vsel %vm369, %v1116, %v1117
        %vm1119 = vcmask 637952
        %v1120 = vsel %vm1119, %v1113, %v1118
        %v1121 = vsel %vm1119, %v1115, %v1117
        %v1124 = vadd.f32 %v1095, %v1120
        %v1125 = vadd.f32 %v1096, %v1121
        %1126 = vset.pattern.permute.xlu0 21
        %1127 = vperm.xlu0 %1126, %v540
        %v1128 = vpop.permute.xlu0 %1127
        %v1130 = vunpack.c.l.s4 839922192
        %v1131 = vunpack.c.0.s8 %v1130
        %v1132 = vlaneseq
        %v1133 = vshrl.u32 %v1132, 7
        %v1134 = vsub.s32 %v1131, %v1133
        %v1135 = vrot.slane %v1128, %v1134
        %v1137 = vmul.f32 %v921, %v1135
        %v1138 = vmul.f32 %v922, %v1135
        %1141 = vrot.lane.b32.xlu0 %v1137, 62
        %v1142 = vpop.permute.xlu0 %1141
        %1143 = vrot.lane.b32.xlu0 %v1138, 62
        %v1144 = vpop.permute.xlu0 %1143
        %v1145 = vrot.slane %v1142, 4
        %v1146 = vrot.slane %v1144, 4
        %v1147 = vsel %vm369, %v1145, %v1146
        %vm1148 = vcmask 506880
        %v1149 = vsel %vm1148, %v1142, %v1147
        %v1150 = vsel %vm1148, %v1144, %v1146
        %v1153 = vadd.f32 %v1124, %v1149
        %v1154 = vadd.f32 %v1125, %v1150
        %1155 = vset.pattern.permute.xlu0 22
        %1156 = vperm.xlu0 %1155, %v540
        %v1157 = vpop.permute.xlu0 %1156
        %v1159 = vunpack.c.l.s4 839922192
        %v1160 = vunpack.c.0.s8 %v1159
        %v1161 = vlaneseq
        %v1162 = vshrl.u32 %v1161, 7
        %v1163 = vsub.s32 %v1160, %v1162
        %v1164 = vrot.slane %v1157, %v1163
        %v1166 = vmul.f32 %v921, %v1164
        %v1167 = vmul.f32 %v922, %v1164
        %1170 = vrot.lane.b32.xlu0 %v1166, 61
        %v1171 = vpop.permute.xlu0 %1170
        %1172 = vrot.lane.b32.xlu0 %v1167, 61
        %v1173 = vpop.permute.xlu0 %1172
        %v1174 = vrot.slane %v1171, 4
        %v1175 = vrot.slane %v1173, 4
        %v1176 = vsel %vm369, %v1174, %v1175
        %vm1177 = vcmask 498688
        %v1178 = vsel %vm1177, %v1171, %v1176
        %v1179 = vsel %vm1177, %v1173, %v1175
        %v1182 = vadd.f32 %v1153, %v1178
        %v1183 = vadd.f32 %v1154, %v1179
        %1184 = vset.pattern.permute.xlu0 23
        %1185 = vperm.xlu0 %1184, %v540
        %v1186 = vpop.permute.xlu0 %1185
        %v1188 = vunpack.c.l.s4 839922192
        %v1189 = vunpack.c.0.s8 %v1188
        %v1190 = vlaneseq
        %v1191 = vshrl.u32 %v1190, 7
        %v1192 = vsub.s32 %v1189, %v1191
        %v1193 = vrot.slane %v1186, %v1192
        %v1195 = vmul.f32 %v921, %v1193
        %v1196 = vmul.f32 %v922, %v1193
        %1199 = vrot.lane.b32.xlu0 %v1195, 60
        %v1200 = vpop.permute.xlu0 %1199
        %1201 = vrot.lane.b32.xlu0 %v1196, 60
        %v1202 = vpop.permute.xlu0 %1201
        %v1203 = vrot.slane %v1200, 4
        %v1204 = vrot.slane %v1202, 4
        %v1205 = vsel %vm369, %v1203, %v1204
        %vm1206 = vcmask 490496
        %v1207 = vsel %vm1206, %v1200, %v1205
        %v1208 = vsel %vm1206, %v1202, %v1204
        %v1211 = vadd.f32 %v1182, %v1207
        %v1212 = vadd.f32 %v1183, %v1208
        %1213 = vset.pattern.permute.xlu0 24
        %1214 = vperm.xlu0 %1213, %v540
        %v1215 = vpop.permute.xlu0 %1214
        %v1217 = vunpack.c.l.s4 839922192
        %v1218 = vunpack.c.0.s8 %v1217
        %v1219 = vlaneseq
        %v1220 = vshrl.u32 %v1219, 7
        %v1221 = vsub.s32 %v1218, %v1220
        %v1222 = vrot.slane %v1215, %v1221
        %v1224 = vmul.f32 %v921, %v1222
        %v1225 = vmul.f32 %v922, %v1222
        %1228 = vrot.lane.b32.xlu0 %v1224, 59
        %v1229 = vpop.permute.xlu0 %1228
        %1230 = vrot.lane.b32.xlu0 %v1225, 59
        %v1231 = vpop.permute.xlu0 %1230
        %v1232 = vrot.slane %v1229, 4
        %v1233 = vrot.slane %v1231, 4
        %v1234 = vsel %vm369, %v1232, %v1233
        %vm1235 = vcmask 482304
        %v1236 = vsel %vm1235, %v1229, %v1234
        %v1237 = vsel %vm1235, %v1231, %v1233
        %v1240 = vadd.f32 %v1211, %v1236
        %v1241 = vadd.f32 %v1212, %v1237
        %1242 = vset.pattern.permute.xlu0 25
        %1243 = vperm.xlu0 %1242, %v540
        %v1244 = vpop.permute.xlu0 %1243
        %v1246 = vunpack.c.l.s4 839922192
        %v1247 = vunpack.c.0.s8 %v1246
        %v1248 = vlaneseq
        %v1249 = vshrl.u32 %v1248, 7
        %v1250 = vsub.s32 %v1247, %v1249
        %v1251 = vrot.slane %v1244, %v1250
        %v1253 = vmul.f32 %v921, %v1251
        %v1254 = vmul.f32 %v922, %v1251
        %1257 = vrot.lane.b32.xlu0 %v1253, 58
        %v1258 = vpop.permute.xlu0 %1257
        %1259 = vrot.lane.b32.xlu0 %v1254, 58
        %v1260 = vpop.permute.xlu0 %1259
        %v1261 = vrot.slane %v1258, 4
        %v1262 = vrot.slane %v1260, 4
        %v1263 = vsel %vm369, %v1261, %v1262
        %vm1264 = vcmask 474112
        %v1265 = vsel %vm1264, %v1258, %v1263
        %v1266 = vsel %vm1264, %v1260, %v1262
        %v1269 = vadd.f32 %v1240, %v1265
        %v1270 = vadd.f32 %v1241, %v1266
        %1271 = vset.pattern.permute.xlu0 26
        %1272 = vperm.xlu0 %1271, %v540
        %v1273 = vpop.permute.xlu0 %1272
        %v1275 = vunpack.c.l.s4 839922192
        %v1276 = vunpack.c.0.s8 %v1275
        %v1277 = vlaneseq
        %v1278 = vshrl.u32 %v1277, 7
        %v1279 = vsub.s32 %v1276, %v1278
        %v1280 = vrot.slane %v1273, %v1279
        %v1282 = vmul.f32 %v921, %v1280
        %v1283 = vmul.f32 %v922, %v1280
        %1286 = vrot.lane.b32.xlu0 %v1282, 57
        %v1287 = vpop.permute.xlu0 %1286
        %1288 = vrot.lane.b32.xlu0 %v1283, 57
        %v1289 = vpop.permute.xlu0 %1288
        %v1290 = vrot.slane %v1287, 4
        %v1291 = vrot.slane %v1289, 4
        %v1292 = vsel %vm369, %v1290, %v1291
        %vm1293 = vcmask 465920
        %v1294 = vsel %vm1293, %v1287, %v1292
        %v1295 = vsel %vm1293, %v1289, %v1291
        %v1298 = vadd.f32 %v1269, %v1294
        %v1299 = vadd.f32 %v1270, %v1295
        %1300 = vset.pattern.permute.xlu0 27
        %1301 = vperm.xlu0 %1300, %v540
        %v1302 = vpop.permute.xlu0 %1301
        %v1304 = vunpack.c.l.s4 839922192
        %v1305 = vunpack.c.0.s8 %v1304
        %v1306 = vlaneseq
        %v1307 = vshrl.u32 %v1306, 7
        %v1308 = vsub.s32 %v1305, %v1307
        %v1309 = vrot.slane %v1302, %v1308
        %v1311 = vmul.f32 %v921, %v1309
        %v1312 = vmul.f32 %v922, %v1309
        %1315 = vrot.lane.b32.xlu0 %v1311, 56
        %v1316 = vpop.permute.xlu0 %1315
        %1317 = vrot.lane.b32.xlu0 %v1312, 56
        %v1318 = vpop.permute.xlu0 %1317
        %v1319 = vrot.slane %v1316, 4
        %v1320 = vrot.slane %v1318, 4
        %v1321 = vsel %vm369, %v1319, %v1320
        %vm1322 = vcmask 457728
        %v1323 = vsel %vm1322, %v1316, %v1321
        %v1324 = vsel %vm1322, %v1318, %v1320
        %v1327 = vadd.f32 %v1298, %v1323
        %v1328 = vadd.f32 %v1299, %v1324
        %1329 = vset.pattern.permute.xlu0 28
        %1330 = vperm.xlu0 %1329, %v540
        %v1331 = vpop.permute.xlu0 %1330
        %v1333 = vunpack.c.l.s4 839922192
        %v1334 = vunpack.c.0.s8 %v1333
        %v1335 = vlaneseq
        %v1336 = vshrl.u32 %v1335, 7
        %v1337 = vsub.s32 %v1334, %v1336
        %v1338 = vrot.slane %v1331, %v1337
        %v1340 = vmul.f32 %v921, %v1338
        %v1341 = vmul.f32 %v922, %v1338
        %1344 = vrot.lane.b32.xlu0 %v1340, 40
        %v1345 = vpop.permute.xlu0 %1344
        %1346 = vrot.lane.b32.xlu0 %v1341, 40
        %v1347 = vpop.permute.xlu0 %1346
        %v1348 = vrot.slane %v1345, 4
        %v1349 = vrot.slane %v1347, 4
        %v1350 = vsel %vm369, %v1348, %v1349
        %vm1351 = vcmask 326656
        %v1352 = vsel %vm1351, %v1345, %v1350
        %v1353 = vsel %vm1351, %v1347, %v1349
        %v1356 = vadd.f32 %v1327, %v1352
        %v1357 = vadd.f32 %v1328, %v1353
        %1358 = vset.pattern.permute.xlu0 29
        %1359 = vperm.xlu0 %1358, %v540
        %v1360 = vpop.permute.xlu0 %1359
        %v1362 = vunpack.c.l.s4 839922192
        %v1363 = vunpack.c.0.s8 %v1362
        %v1364 = vlaneseq
        %v1365 = vshrl.u32 %v1364, 7
        %v1366 = vsub.s32 %v1363, %v1365
        %v1367 = vrot.slane %v1360, %v1366
        %v1369 = vmul.f32 %v921, %v1367
        %v1370 = vmul.f32 %v922, %v1367
        %1373 = vrot.lane.b32.xlu0 %v1369, 39
        %v1374 = vpop.permute.xlu0 %1373
        %1375 = vrot.lane.b32.xlu0 %v1370, 39
        %v1376 = vpop.permute.xlu0 %1375
        %v1377 = vrot.slane %v1374, 4
        %v1378 = vrot.slane %v1376, 4
        %v1379 = vsel %vm369, %v1377, %v1378
        %vm1380 = vcmask 318464
        %v1381 = vsel %vm1380, %v1374, %v1379
        %v1382 = vsel %vm1380, %v1376, %v1378
        %v1385 = vadd.f32 %v1356, %v1381
        %v1386 = vadd.f32 %v1357, %v1382
        %1387 = vset.pattern.permute.xlu0 30
        %1388 = vperm.xlu0 %1387, %v540
        %v1389 = vpop.permute.xlu0 %1388
        %v1391 = vunpack.c.l.s4 839922192
        %v1392 = vunpack.c.0.s8 %v1391
        %v1393 = vlaneseq
        %v1394 = vshrl.u32 %v1393, 7
        %v1395 = vsub.s32 %v1392, %v1394
        %v1396 = vrot.slane %v1389, %v1395
        %v1398 = vmul.f32 %v921, %v1396
        %v1399 = vmul.f32 %v922, %v1396
        %1402 = vrot.lane.b32.xlu0 %v1398, 38
        %v1403 = vpop.permute.xlu0 %1402
        %1404 = vrot.lane.b32.xlu0 %v1399, 38
        %v1405 = vpop.permute.xlu0 %1404
        %v1406 = vrot.slane %v1403, 4
        %v1407 = vrot.slane %v1405, 4
        %v1408 = vsel %vm369, %v1406, %v1407
        %vm1409 = vcmask 310272
        %v1410 = vsel %vm1409, %v1403, %v1408
        %v1411 = vsel %vm1409, %v1405, %v1407
        %v1414 = vadd.f32 %v1385, %v1410
        %v1415 = vadd.f32 %v1386, %v1411
        %1416 = vset.pattern.permute.xlu0 31
        %1417 = vperm.xlu0 %1416, %v540
        %v1418 = vpop.permute.xlu0 %1417
        %v1420 = vunpack.c.l.s4 839922192
        %v1421 = vunpack.c.0.s8 %v1420
        %v1422 = vlaneseq
        %v1423 = vshrl.u32 %v1422, 7
        %v1424 = vsub.s32 %v1421, %v1423
        %v1425 = vrot.slane %v1418, %v1424
        %v1427 = vmul.f32 %v921, %v1425
        %v1428 = vmul.f32 %v922, %v1425
        %1431 = vrot.lane.b32.xlu0 %v1427, 37
        %v1432 = vpop.permute.xlu0 %1431
        %1433 = vrot.lane.b32.xlu0 %v1428, 37
        %v1434 = vpop.permute.xlu0 %1433
        %v1435 = vrot.slane %v1432, 4
        %v1436 = vrot.slane %v1434, 4
        %v1437 = vsel %vm369, %v1435, %v1436
        %vm1438 = vcmask 302080
        %v1439 = vsel %vm1438, %v1432, %v1437
        %v1440 = vsel %vm1438, %v1434, %v1436
        %v1443 = vadd.f32 %v1414, %v1439
        %v1444 = vadd.f32 %v1415, %v1440
        %1445 = vset.pattern.permute.xlu0 32
        %1446 = vperm.xlu0 %1445, %v540
        %v1447 = vpop.permute.xlu0 %1446
        %v1449 = vunpack.c.l.s4 839922192
        %v1450 = vunpack.c.0.s8 %v1449
        %v1451 = vlaneseq
        %v1452 = vshrl.u32 %v1451, 7
        %v1453 = vsub.s32 %v1450, %v1452
        %v1454 = vrot.slane %v1447, %v1453
        %v1456 = vmul.f32 %v921, %v1454
        %v1457 = vmul.f32 %v922, %v1454
        %1460 = vrot.lane.b32.xlu0 %v1456, 36
        %v1461 = vpop.permute.xlu0 %1460
        %1462 = vrot.lane.b32.xlu0 %v1457, 36
        %v1463 = vpop.permute.xlu0 %1462
        %v1464 = vrot.slane %v1461, 4
        %v1465 = vrot.slane %v1463, 4
        %v1466 = vsel %vm369, %v1464, %v1465
        %vm1467 = vcmask 293888
        %v1468 = vsel %vm1467, %v1461, %v1466
        %v1469 = vsel %vm1467, %v1463, %v1465
        %v1472 = vadd.f32 %v1443, %v1468
        %v1473 = vadd.f32 %v1444, %v1469
        %1474 = vset.pattern.permute.xlu0 33
        %1475 = vperm.xlu0 %1474, %v540
        %v1476 = vpop.permute.xlu0 %1475
        %v1478 = vunpack.c.l.s4 839922192
        %v1479 = vunpack.c.0.s8 %v1478
        %v1480 = vlaneseq
        %v1481 = vshrl.u32 %v1480, 7
        %v1482 = vsub.s32 %v1479, %v1481
        %v1483 = vrot.slane %v1476, %v1482
        %v1485 = vmul.f32 %v921, %v1483
        %v1486 = vmul.f32 %v922, %v1483
        %1489 = vrot.lane.b32.xlu0 %v1485, 35
        %v1490 = vpop.permute.xlu0 %1489
        %1491 = vrot.lane.b32.xlu0 %v1486, 35
        %v1492 = vpop.permute.xlu0 %1491
        %v1493 = vrot.slane %v1490, 4
        %v1494 = vrot.slane %v1492, 4
        %v1495 = vsel %vm369, %v1493, %v1494
        %vm1496 = vcmask 285696
        %v1497 = vsel %vm1496, %v1490, %v1495
        %v1498 = vsel %vm1496, %v1492, %v1494
        %v1501 = vadd.f32 %v1472, %v1497
        %v1502 = vadd.f32 %v1473, %v1498
        %1503 = vset.pattern.permute.xlu0 34
        %1504 = vperm.xlu0 %1503, %v540
        %v1505 = vpop.permute.xlu0 %1504
        %v1507 = vunpack.c.l.s4 839922192
        %v1508 = vunpack.c.0.s8 %v1507
        %v1509 = vlaneseq
        %v1510 = vshrl.u32 %v1509, 7
        %v1511 = vsub.s32 %v1508, %v1510
        %v1512 = vrot.slane %v1505, %v1511
        %v1514 = vmul.f32 %v921, %v1512
        %v1515 = vmul.f32 %v922, %v1512
        %1518 = vrot.lane.b32.xlu0 %v1514, 34
        %v1519 = vpop.permute.xlu0 %1518
        %1520 = vrot.lane.b32.xlu0 %v1515, 34
        %v1521 = vpop.permute.xlu0 %1520
        %v1522 = vrot.slane %v1519, 4
        %v1523 = vrot.slane %v1521, 4
        %v1524 = vsel %vm369, %v1522, %v1523
        %vm1525 = vcmask 277504
        %v1526 = vsel %vm1525, %v1519, %v1524
        %v1527 = vsel %vm1525, %v1521, %v1523
        %v1530 = vadd.f32 %v1501, %v1526
        %v1531 = vadd.f32 %v1502, %v1527
        %1532 = vset.pattern.permute.xlu0 35
        %1533 = vperm.xlu0 %1532, %v540
        %v1534 = vpop.permute.xlu0 %1533
        %v1536 = vunpack.c.l.s4 839922192
        %v1537 = vunpack.c.0.s8 %v1536
        %v1538 = vlaneseq
        %v1539 = vshrl.u32 %v1538, 7
        %v1540 = vsub.s32 %v1537, %v1539
        %v1541 = vrot.slane %v1534, %v1540
        %v1543 = vmul.f32 %v921, %v1541
        %v1544 = vmul.f32 %v922, %v1541
        %1547 = vrot.lane.b32.xlu0 %v1543, 18
        %v1548 = vpop.permute.xlu0 %1547
        %1549 = vrot.lane.b32.xlu0 %v1544, 18
        %v1550 = vpop.permute.xlu0 %1549
        %v1551 = vrot.slane %v1548, 4
        %v1552 = vrot.slane %v1550, 4
        %v1553 = vsel %vm369, %v1551, %v1552
        %vm1554 = vcmask 146432
        %v1555 = vsel %vm1554, %v1548, %v1553
        %v1556 = vsel %vm1554, %v1550, %v1552
        %v1559 = vadd.f32 %v1530, %v1555
        %v1560 = vadd.f32 %v1531, %v1556
        %1561 = vset.pattern.permute.xlu0 36
        %1562 = vperm.xlu0 %1561, %v540
        %v1563 = vpop.permute.xlu0 %1562
        %v1565 = vunpack.c.l.s4 839922192
        %v1566 = vunpack.c.0.s8 %v1565
        %v1567 = vlaneseq
        %v1568 = vshrl.u32 %v1567, 7
        %v1569 = vsub.s32 %v1566, %v1568
        %v1570 = vrot.slane %v1563, %v1569
        %v1572 = vmul.f32 %v921, %v1570
        %v1573 = vmul.f32 %v922, %v1570
        %1576 = vrot.lane.b32.xlu0 %v1572, 17
        %v1577 = vpop.permute.xlu0 %1576
        %1578 = vrot.lane.b32.xlu0 %v1573, 17
        %v1579 = vpop.permute.xlu0 %1578
        %v1580 = vrot.slane %v1577, 4
        %v1581 = vrot.slane %v1579, 4
        %v1582 = vsel %vm369, %v1580, %v1581
        %vm1583 = vcmask 138240
        %v1584 = vsel %vm1583, %v1577, %v1582
        %v1585 = vsel %vm1583, %v1579, %v1581
        %v1588 = vadd.f32 %v1559, %v1584
        %v1589 = vadd.f32 %v1560, %v1585
        %1590 = vset.pattern.permute.xlu0 37
        %1591 = vperm.xlu0 %1590, %v540
        %v1592 = vpop.permute.xlu0 %1591
        %v1594 = vunpack.c.l.s4 839922192
        %v1595 = vunpack.c.0.s8 %v1594
        %v1596 = vlaneseq
        %v1597 = vshrl.u32 %v1596, 7
        %v1598 = vsub.s32 %v1595, %v1597
        %v1599 = vrot.slane %v1592, %v1598
        %v1601 = vmul.f32 %v921, %v1599
        %v1602 = vmul.f32 %v922, %v1599
        %1605 = vrot.lane.b32.xlu0 %v1601, 16
        %v1606 = vpop.permute.xlu0 %1605
        %1607 = vrot.lane.b32.xlu0 %v1602, 16
        %v1608 = vpop.permute.xlu0 %1607
        %v1609 = vrot.slane %v1606, 4
        %v1610 = vrot.slane %v1608, 4
        %v1611 = vsel %vm369, %v1609, %v1610
        %vm1612 = vcmask 130048
        %v1613 = vsel %vm1612, %v1606, %v1611
        %v1614 = vsel %vm1612, %v1608, %v1610
        %v1617 = vadd.f32 %v1588, %v1613
        %v1618 = vadd.f32 %v1589, %v1614
        %1619 = vset.pattern.permute.xlu0 38
        %1620 = vperm.xlu0 %1619, %v540
        %v1621 = vpop.permute.xlu0 %1620
        %v1623 = vunpack.c.l.s4 839922192
        %v1624 = vunpack.c.0.s8 %v1623
        %v1625 = vlaneseq
        %v1626 = vshrl.u32 %v1625, 7
        %v1627 = vsub.s32 %v1624, %v1626
        %v1628 = vrot.slane %v1621, %v1627
        %v1630 = vmul.f32 %v921, %v1628
        %v1631 = vmul.f32 %v922, %v1628
        %1634 = vrot.lane.b32.xlu0 %v1630, 15
        %v1635 = vpop.permute.xlu0 %1634
        %1636 = vrot.lane.b32.xlu0 %v1631, 15
        %v1637 = vpop.permute.xlu0 %1636
        %v1638 = vrot.slane %v1635, 4
        %v1639 = vrot.slane %v1637, 4
        %v1640 = vsel %vm369, %v1638, %v1639
        %vm1641 = vcmask 121856
        %v1642 = vsel %vm1641, %v1635, %v1640
        %v1643 = vsel %vm1641, %v1637, %v1639
        %v1646 = vadd.f32 %v1617, %v1642
        %v1647 = vadd.f32 %v1618, %v1643
        %1648 = vset.pattern.permute.xlu0 39
        %1649 = vperm.xlu0 %1648, %v540
        %v1650 = vpop.permute.xlu0 %1649
        %v1652 = vunpack.c.l.s4 839922192
        %v1653 = vunpack.c.0.s8 %v1652
        %v1654 = vlaneseq
        %v1655 = vshrl.u32 %v1654, 7
        %v1656 = vsub.s32 %v1653, %v1655
        %v1657 = vrot.slane %v1650, %v1656
        %v1659 = vmul.f32 %v921, %v1657
        %v1660 = vmul.f32 %v922, %v1657
        %1663 = vrot.lane.b32.xlu0 %v1659, 14
        %v1664 = vpop.permute.xlu0 %1663
        %1665 = vrot.lane.b32.xlu0 %v1660, 14
        %v1666 = vpop.permute.xlu0 %1665
        %v1667 = vrot.slane %v1664, 4
        %v1668 = vrot.slane %v1666, 4
        %v1669 = vsel %vm369, %v1667, %v1668
        %vm1670 = vcmask 113664
        %v1671 = vsel %vm1670, %v1664, %v1669
        %v1672 = vsel %vm1670, %v1666, %v1668
        %v1675 = vadd.f32 %v1646, %v1671
        %v1676 = vadd.f32 %v1647, %v1672
        %1677 = vset.pattern.permute.xlu0 40
        %1678 = vperm.xlu0 %1677, %v540
        %v1679 = vpop.permute.xlu0 %1678
        %v1681 = vunpack.c.l.s4 839922192
        %v1682 = vunpack.c.0.s8 %v1681
        %v1683 = vlaneseq
        %v1684 = vshrl.u32 %v1683, 7
        %v1685 = vsub.s32 %v1682, %v1684
        %v1686 = vrot.slane %v1679, %v1685
        %v1688 = vmul.f32 %v921, %v1686
        %v1689 = vmul.f32 %v922, %v1686
        %1692 = vrot.lane.b32.xlu0 %v1688, 13
        %v1693 = vpop.permute.xlu0 %1692
        %1694 = vrot.lane.b32.xlu0 %v1689, 13
        %v1695 = vpop.permute.xlu0 %1694
        %v1696 = vrot.slane %v1693, 4
        %v1697 = vrot.slane %v1695, 4
        %v1698 = vsel %vm369, %v1696, %v1697
        %vm1699 = vcmask 105472
        %v1700 = vsel %vm1699, %v1693, %v1698
        %v1701 = vsel %vm1699, %v1695, %v1697
        %v1704 = vadd.f32 %v1675, %v1700
        %v1705 = vadd.f32 %v1676, %v1701
        %1706 = vset.pattern.permute.xlu0 41
        %1707 = vperm.xlu0 %1706, %v540
        %v1708 = vpop.permute.xlu0 %1707
        %v1710 = vunpack.c.l.s4 839922192
        %v1711 = vunpack.c.0.s8 %v1710
        %v1712 = vlaneseq
        %v1713 = vshrl.u32 %v1712, 7
        %v1714 = vsub.s32 %v1711, %v1713
        %v1715 = vrot.slane %v1708, %v1714
        %v1717 = vmul.f32 %v921, %v1715
        %v1718 = vmul.f32 %v922, %v1715
        %1721 = vrot.lane.b32.xlu0 %v1717, 12
        %v1722 = vpop.permute.xlu0 %1721
        %1723 = vrot.lane.b32.xlu0 %v1718, 12
        %v1724 = vpop.permute.xlu0 %1723
        %v1725 = vrot.slane %v1722, 4
        %v1726 = vrot.slane %v1724, 4
        %v1727 = vsel %vm369, %v1725, %v1726
        %vm1728 = vcmask 97280
        %v1729 = vsel %vm1728, %v1722, %v1727
        %v1730 = vsel %vm1728, %v1724, %v1726
        %v1733 = vadd.f32 %v1704, %v1729
        %v1734 = vadd.f32 %v1705, %v1730
        %v1735 = vld [vmem:[#allocation2 + $0x4] sm:$0xff]
        %v1736 = vld [vmem:[#allocation2 + $0xc] sm:$0xf]
        %1737 = vset.pattern.permute.xlu0 42
        %1738 = vperm.xlu0 %1737, %v540
        %v1739 = vpop.permute.xlu0 %1738
        %v1741 = vunpack.c.l.s4 839922192
        %v1742 = vunpack.c.0.s8 %v1741
        %v1743 = vlaneseq
        %v1744 = vshrl.u32 %v1743, 7
        %v1745 = vsub.s32 %v1742, %v1744
        %v1746 = vrot.slane %v1739, %v1745
        %v1748 = vmul.f32 %v1735, %v1746
        %v1749 = vmul.f32 %v1736, %v1746
        %1752 = vrot.lane.b32.xlu0 %v1748, 124
        %v1753 = vpop.permute.xlu0 %1752
        %1754 = vrot.lane.b32.xlu0 %v1749, 124
        %v1755 = vpop.permute.xlu0 %1754
        %v1756 = vrot.slane %v1753, 4
        %v1757 = vrot.slane %v1755, 4
        %v1758 = vsel %vm369, %v1756, %v1757
        %v1759 = vsel %vm663, %v1753, %v1758
        %v1762 = vadd.f32 %v1733, %v1759
        %v1763 = vadd.f32 %v1734, %v1755
        %1764 = vset.pattern.permute.xlu0 43
        %1765 = vperm.xlu0 %1764, %v540
        %v1766 = vpop.permute.xlu0 %1765
        %v1768 = vunpack.c.l.s4 839922192
        %v1769 = vunpack.c.0.s8 %v1768
        %v1770 = vlaneseq
        %v1771 = vshrl.u32 %v1770, 7
        %v1772 = vsub.s32 %v1769, %v1771
        %v1773 = vrot.slane %v1766, %v1772
        %v1775 = vmul.f32 %v1735, %v1773
        %v1776 = vmul.f32 %v1736, %v1773
        %1779 = vrot.lane.b32.xlu0 %v1775, 123
        %v1780 = vpop.permute.xlu0 %1779
        %1781 = vrot.lane.b32.xlu0 %v1776, 123
        %v1782 = vpop.permute.xlu0 %1781
        %v1783 = vrot.slane %v1780, 4
        %v1784 = vrot.slane %v1782, 4
        %v1785 = vsel %vm369, %v1783, %v1784
        %v1786 = vsel %vm691, %v1780, %v1785
        %v1789 = vadd.f32 %v1762, %v1786
        %v1790 = vadd.f32 %v1763, %v1782
        %1791 = vset.pattern.permute.xlu0 44
        %1792 = vperm.xlu0 %1791, %v540
        %v1793 = vpop.permute.xlu0 %1792
        %v1795 = vunpack.c.l.s4 839922192
        %v1796 = vunpack.c.0.s8 %v1795
        %v1797 = vlaneseq
        %v1798 = vshrl.u32 %v1797, 7
        %v1799 = vsub.s32 %v1796, %v1798
        %v1800 = vrot.slane %v1793, %v1799
        %v1802 = vmul.f32 %v1735, %v1800
        %v1803 = vmul.f32 %v1736, %v1800
        %1806 = vrot.lane.b32.xlu0 %v1802, 122
        %v1807 = vpop.permute.xlu0 %1806
        %1808 = vrot.lane.b32.xlu0 %v1803, 122
        %v1809 = vpop.permute.xlu0 %1808
        %v1810 = vrot.slane %v1807, 4
        %v1811 = vrot.slane %v1809, 4
        %v1812 = vsel %vm369, %v1810, %v1811
        %v1813 = vsel %vm719, %v1807, %v1812
        %v1816 = vadd.f32 %v1789, %v1813
        %v1817 = vadd.f32 %v1790, %v1809
        %1818 = vset.pattern.permute.xlu0 45
        %1819 = vperm.xlu0 %1818, %v540
        %v1820 = vpop.permute.xlu0 %1819
        %v1822 = vunpack.c.l.s4 839922192
        %v1823 = vunpack.c.0.s8 %v1822
        %v1824 = vlaneseq
        %v1825 = vshrl.u32 %v1824, 7
        %v1826 = vsub.s32 %v1823, %v1825
        %v1827 = vrot.slane %v1820, %v1826
        %v1829 = vmul.f32 %v1735, %v1827
        %v1830 = vmul.f32 %v1736, %v1827
        %1833 = vrot.lane.b32.xlu0 %v1829, 121
        %v1834 = vpop.permute.xlu0 %1833
        %1835 = vrot.lane.b32.xlu0 %v1830, 121
        %v1836 = vpop.permute.xlu0 %1835
        %v1837 = vrot.slane %v1834, 4
        %v1838 = vrot.slane %v1836, 4
        %v1839 = vsel %vm369, %v1837, %v1838
        %vm1840 = vcmask 990208
        %v1841 = vsel %vm1840, %v1834, %v1839
        %v1844 = vadd.f32 %v1816, %v1841
        %v1845 = vadd.f32 %v1817, %v1836
        %1846 = vset.pattern.permute.xlu0 46
        %1847 = vperm.xlu0 %1846, %v540
        %v1848 = vpop.permute.xlu0 %1847
        %v1850 = vunpack.c.l.s4 839922192
        %v1851 = vunpack.c.0.s8 %v1850
        %v1852 = vlaneseq
        %v1853 = vshrl.u32 %v1852, 7
        %v1854 = vsub.s32 %v1851, %v1853
        %v1855 = vrot.slane %v1848, %v1854
        %v1857 = vmul.f32 %v1735, %v1855
        %v1858 = vmul.f32 %v1736, %v1855
        %1861 = vrot.lane.b32.xlu0 %v1857, 120
        %v1862 = vpop.permute.xlu0 %1861
        %1863 = vrot.lane.b32.xlu0 %v1858, 120
        %v1864 = vpop.permute.xlu0 %1863
        %v1865 = vrot.slane %v1862, 4
        %v1866 = vrot.slane %v1864, 4
        %v1867 = vsel %vm369, %v1865, %v1866
        %vm1868 = vcmask 982016
        %v1869 = vsel %vm1868, %v1862, %v1867
        %v1872 = vadd.f32 %v1844, %v1869
        %v1873 = vadd.f32 %v1845, %v1864
        %1874 = vset.pattern.permute.xlu0 47
        %1875 = vperm.xlu0 %1874, %v540
        %v1876 = vpop.permute.xlu0 %1875
        %v1878 = vunpack.c.l.s4 839922192
        %v1879 = vunpack.c.0.s8 %v1878
        %v1880 = vlaneseq
        %v1881 = vshrl.u32 %v1880, 7
        %v1882 = vsub.s32 %v1879, %v1881
        %v1883 = vrot.slane %v1876, %v1882
        %v1885 = vmul.f32 %v1735, %v1883
        %v1886 = vmul.f32 %v1736, %v1883
        %1889 = vrot.lane.b32.xlu0 %v1885, 119
        %v1890 = vpop.permute.xlu0 %1889
        %1891 = vrot.lane.b32.xlu0 %v1886, 119
        %v1892 = vpop.permute.xlu0 %1891
        %v1893 = vrot.slane %v1890, 4
        %v1894 = vrot.slane %v1892, 4
        %v1895 = vsel %vm369, %v1893, %v1894
        %vm1896 = vcmask 973824
        %v1897 = vsel %vm1896, %v1890, %v1895
        %v1900 = vadd.f32 %v1872, %v1897
        %v1901 = vadd.f32 %v1873, %v1892
        %1902 = vset.pattern.permute.xlu0 48
        %1903 = vperm.xlu0 %1902, %v540
        %v1904 = vpop.permute.xlu0 %1903
        %v1906 = vunpack.c.l.s4 839922192
        %v1907 = vunpack.c.0.s8 %v1906
        %v1908 = vlaneseq
        %v1909 = vshrl.u32 %v1908, 7
        %v1910 = vsub.s32 %v1907, %v1909
        %v1911 = vrot.slane %v1904, %v1910
        %v1913 = vmul.f32 %v1735, %v1911
        %v1914 = vmul.f32 %v1736, %v1911
        %1917 = vrot.lane.b32.xlu0 %v1913, 118
        %v1918 = vpop.permute.xlu0 %1917
        %1919 = vrot.lane.b32.xlu0 %v1914, 118
        %v1920 = vpop.permute.xlu0 %1919
        %v1921 = vrot.slane %v1918, 4
        %v1922 = vrot.slane %v1920, 4
        %v1923 = vsel %vm369, %v1921, %v1922
        %vm1924 = vcmask 965632
        %v1925 = vsel %vm1924, %v1918, %v1923
        %v1928 = vadd.f32 %v1900, %v1925
        %v1929 = vadd.f32 %v1901, %v1920
        %v1930 = vld [vmem:[%s5] sm:$0xf]
        %1932 = vset.pattern.permute.xlu0 0
        %1933 = vperm.xlu0 %1932, %v1930
        %v1934 = vpop.permute.xlu0 %1933
        %v1936 = vunpack.c.l.s4 839922192
        %v1937 = vunpack.c.0.s8 %v1936
        %v1938 = vlaneseq
        %v1939 = vshrl.u32 %v1938, 7
        %v1940 = vsub.s32 %v1937, %v1939
        %v1941 = vrot.slane %v1934, %v1940
        %v1943 = vadd.f32 %v1928, %v1941
        %v1944 = vadd.f32 %v1929, %v1941
        %v1945 = vld [vmem:[%s1] sm:$0xf]
        %v1947 = vlaneseq
        %v1948 = vshrl.u32 %v1947, 7
        %v1949 = vsub.s32 0, %v1948
        %v1950 = vrot.slane %v1945, %v1949
        %v1951 = vlaneseq
        %v1952 = vshrl.u32 %v1951, 7
        %v1953 = vsub.s32 1, %v1952
        %v1954 = vrot.slane %v1945, %v1953
        %v1955 = vlaneseq
        %v1956 = vshrl.u32 %v1955, 7
        %v1957 = vsub.s32 2, %v1956
        %v1958 = vrot.slane %v1945, %v1957
        %v1959 = vlaneseq
        %v1960 = vshrl.u32 %v1959, 7
        %v1961 = vsub.s32 3, %v1960
        %v1962 = vrot.slane %v1945, %v1961
        %v1963 = vcombine.low %v1950, %v1954
        %v1964 = vcombine.low %v1958, %v1962
        %1965 = vrot.lane.b32.xlu0 %v1963, 59
        %v1966 = vpop.permute.xlu0 %1965
        %1967 = vrot.lane.b32.xlu0 %v1964, 59
        %v1968 = vpop.permute.xlu0 %1967
        %v1969 = vrot.slane %v1966, 4
        %v1970 = vrot.slane %v1968, 4
        %v1971 = vsel %vm369, %v1969, %v1970
        %v1972 = vsel %vm1235, %v1966, %v1971
        %v1973 = vsel %vm1235, %v1968, %v1970
        %v1976 = vmul.f32 %v1943, %v1972
        %v1977 = vmul.f32 %v1944, %v1973
        %v1978 = vmul.f32 %v1976, %v1976
        %v1979 = vmul.f32 %v1977, %v1977
        %v1981 = vcombine.high %v1978, %v1978
        %v1983 = vsel %vm369, %v1978, 0.0
        %v1984 = vsel %vm369, %v1981, 0.0
        %v1985 = vadd.f32 %v1983, %v1984
        %vm1986 = vcmask 732160
        %v1987 = vsel %vm1986, %v1979, 0.0
        %v1988 = vadd.f32 %v1985, %v1987
        %1989 = vadd.xlane.f32.xlu0 %v1988
        %v1990 = vpop.xlane.xlu0 %1989
        %v1991 = vrsqrt.pop %v1990
        %v1992 = vmul.f32 %v1990, %v1991
        %vm1993 = vcmp.eq.f32.partialorder %v1990, inf
        %v1994 = vsel %vm1993, %v1990, %v1992
        %vm1995 = vcmp.eq.f32.partialorder %v1990, 0.0
        %v1996 = vand.u32 %v1990, 2147483648
        %v1997 = vsel %vm1995, %v1996, %v1994
        %v1998 = vsel %vm369, %v1997, 0.0
        %v1999 = vrot.slane %v1998, 4
        %v2000 = vadd.f32 %v1998, %v1999
        %v2001 = vrot.slane %v2000, 2
        %v2002 = vadd.f32 %v2000, %v2001
        %v2003 = vrot.slane %v2002, 1
        %v2004 = vadd.f32 %v2002, %v2003
        %v2005 = vmul.f32 %v2004, %v399
        %v2006 = vadd.f32 %v2005, 1e-06
        %v2007 = vrcp.pop %v2006
        %v2008 = vmul.f32 %v1997, %v2007
        %v2009 = vld [vmem:[%s6] sm:$0xf]
        %v2010 = vmul.f32 %v2009, %v2008
        %v2011 = vadd.f32 %v2010, 1.0
        %2013 = vset.pattern.permute.xlu0 0
        %2014 = vperm.xlu0 %2013, %v2011
        %v2015 = vpop.permute.xlu0 %2014
        %v2018 = vcombine.high %v1943, %v1943
        %v2020 = vmul.f32 %v2015, %v1943
        %v2021 = vmul.f32 %v2015, %v2018
        %v2022 = vmul.f32 %v2015, %v1944
        %v2023 = vld [vmem:[%s7] sm:$0xf]
        %2025 = vset.pattern.permute.xlu0 0
        %2026 = vperm.xlu0 %2025, %v2023
        %v2027 = vpop.permute.xlu0 %2026
        %v2029 = vadd.f32 %v2020, %v2027
        %v2030 = vadd.f32 %v2021, %v2027
        %v2031 = vadd.f32 %v2022, %v2027
        %2032 = vrot.lane.b32.xlu0 %v1950, 59
        %v2033 = vpop.permute.xlu0 %2032
        %2034 = vrot.lane.b32.xlu0 %v1954, 59
        %v2035 = vpop.permute.xlu0 %2034
        %2036 = vrot.lane.b32.xlu0 %v1958, 59
        %v2037 = vpop.permute.xlu0 %2036
        %2038 = vrot.lane.b32.xlu0 %v1962, 59
        %v2039 = vpop.permute.xlu0 %2038
        %v2040 = vsel %vm1235, %v2033, %v2035
        %v2041 = vsel %vm1235, %v2035, %v2037
        %v2042 = vsel %vm1235, %v2037, %v2039
        %v2046 = vmul.f32 %v2029, %v2040
        %v2047 = vmul.f32 %v2030, %v2041
        %v2048 = vmul.f32 %v2031, %v2042
        %v2049 = vpack.c.bf16 %v2046, %v2046
        %v2050 = vpack.c.bf16 %v2047, %v2047
        %v2051 = vpack.c.bf16 %v2048, %v2048
        %v2055 = vcombine.low %v2049, %v2050
        %v2057 = vunpack.c.l.s4 1983009808
        %v2058 = vunpack.c.0.s8 %v2057
        %v2059 = vlaneseq
        %v2060 = vshrl.u32 %v2059, 7
        %v2061 = vsub.s32 %v2058, %v2060
        %v2062 = vrot.slane %v2055, %v2061
        %v2064 = vunpack.c.l.s4 1983009808
        %v2065 = vunpack.c.0.s8 %v2064
        %v2066 = vlaneseq
        %v2067 = vshrl.u32 %v2066, 7
        %v2068 = vsub.s32 %v2065, %v2067
        %v2069 = vrot.slane %v2051, %v2068
        %v2070 = vcombine.low %v2062, %v2069
        %vm2072 = vcmask 1041408
        %vm2073 = vcmask 1043458
        %vm2074 = vmor %vm2073, %vm2072
        %vm2075 = vcmask 734212
        %vm2076 = vmor %vm2075, %vm2074
        %2077 = vst.msk [vmem:[#allocation3 + $0x2] sm:$0x3f] %vm2076, %v2070
        %v2078 = vld [vmem:[%s8] sm:$0xf]
        %v2079 = vld [vmem:[#allocation3] sm:$0xff]
        %s2080 = scalar_lea.vmem %s8, 4
        %v2081 = vld [vmem:[%s2080] sm:$0xf]
        %v2083 = vcombine.high %v2079, %v2079
        %v2085 = vunpack.c.l.s4 1983009808
        %v2086 = vunpack.c.0.s8 %v2085
        %v2087 = vlaneseq
        %v2088 = vshrl.u32 %v2087, 7
        %v2089 = vsub.s32 %v2086, %v2088
        %v2090 = vrot.slane %v2079, %v2089
        %v2092 = vunpack.c.l.s4 1983009808
        %v2093 = vunpack.c.0.s8 %v2092
        %v2094 = vlaneseq
        %v2095 = vshrl.u32 %v2094, 7
        %v2096 = vsub.s32 %v2093, %v2095
        %v2097 = vrot.slane %v2083, %v2096
        %v2098 = vcombine.high %v2090, %v2090
        %v2099 = vcombine.high %v2097, %v2097
        %2100 = vrot.lane.b32.xlu0 %v2090, 22
        %v2101 = vpop.permute.xlu0 %2100
        %2102 = vrot.lane.b32.xlu0 %v2098, 22
        %v2103 = vpop.permute.xlu0 %2102
        %2104 = vrot.lane.b32.xlu0 %v2097, 22
        %v2105 = vpop.permute.xlu0 %2104
        %2106 = vrot.lane.b32.xlu0 %v2099, 22
        %v2107 = vpop.permute.xlu0 %2106
        %vm2108 = vcmask 179200
        %v2109 = vsel %vm2108, %v2101, %v2103
        %v2110 = vsel %vm2108, %v2103, %v2105
        %v2111 = vsel %vm2108, %v2105, %v2107
        %vm2112 = vcmask 31744
        %v2114 = vsel %vm2112, %v2081, 0
        %v2117 = vsel %vm2072, %v2109, 0
        %v2120 = vsel %vm2072, %v2110, 0
        %v2123 = vsel %vm2072, %v2111, 0
        %2125 = vmatprep.subr.bf16.mxu0 %v2120
        %2126 = vmatpush1.bf16.msra.mxu0 %v2117
        %2127 = vmatprep.subr.bf16.mxu0 0
        %2128 = vmatpush1.bf16.msra.mxu0 0
        %2129 = vmatprep.subr.bf16.mxu0 0
        %2130 = vmatpush1.bf16.msra.mxu0 0
        %2131 = vmatprep.subr.bf16.mxu0 0
        %2132 = vmatpush1.bf16.msra.mxu0 0
        %2133 = vmatprep.subr.bf16.mxu0 0
        %2134 = vmatpush1.bf16.msra.mxu0 0
        %2135 = vmatprep.subr.bf16.mxu0 0
        %2136 = vmatpush1.bf16.msra.mxu0 0
        %2137 = vmatprep.subr.bf16.mxu0 0
        %2138 = vmatpush1.bf16.msra.mxu0 0
        %2139 = vmatprep.subr.bf16.mxu0 0
        %2140 = vmatpush1.bf16.msra.mxu0 0
        %2141 = vmatprep.subr.bf16.mxu0 0
        %2142 = vmatpush1.bf16.msra.mxu0 0
        %2143 = vmatprep.subr.bf16.mxu0 0
        %2144 = vmatpush1.bf16.msra.mxu0 0
        %2145 = vmatprep.subr.bf16.mxu0 0
        %2146 = vmatpush1.bf16.msra.mxu0 0
        %2147 = vmatprep.subr.bf16.mxu0 0
        %2148 = vmatpush1.bf16.msra.mxu0 0
        %2149 = vmatprep.subr.bf16.mxu0 0
        %2150 = vmatpush1.bf16.msra.mxu0 0
        %2151 = vmatprep.subr.bf16.mxu0 0
        %2152 = vmatpush1.bf16.msra.mxu0 0
        %2153 = vmatprep.subr.bf16.mxu0 0
        %2154 = vmatpush1.bf16.msra.mxu0 0
        %2155 = vmatprep.subr.bf16.mxu0 0
        %2156 = vmatpush1.bf16.msra.mxu0 0
        %2157 = vmatprep.mubr.bf16.mxu0 0
        %2158 = vmatmul.mubr.bf16.gmra.mrb[0].mxu0 %v2114
        %v2159 = vpop.f32.mrb[0].mxu0
        %v2160 = vadd.f32 0.0, %v2159
        %v2161 = vpop.f32.mrb[0].mxu0
        %v2162 = vadd.f32 0.0, %v2161
        %v2163 = vpop.f32.mrb[0].mxu0
        %v2164 = vpop.f32.mrb[0].mxu0
        %2165 = vdwg.mxu0
        %2166 = vmatprep.subr.bf16.mxu0 0
        %2167 = vmatpush1.bf16.msra.mxu0 %v2123
        %2168 = vmatprep.subr.bf16.mxu0 0
        %2169 = vmatpush1.bf16.msra.mxu0 0
        %2170 = vmatprep.subr.bf16.mxu0 0
        %2171 = vmatpush1.bf16.msra.mxu0 0
        %2172 = vmatprep.subr.bf16.mxu0 0
        %2173 = vmatpush1.bf16.msra.mxu0 0
        %2174 = vmatprep.subr.bf16.mxu0 0
        %2175 = vmatpush1.bf16.msra.mxu0 0
        %2176 = vmatprep.subr.bf16.mxu0 0
        %2177 = vmatpush1.bf16.msra.mxu0 0
        %2178 = vmatprep.subr.bf16.mxu0 0
        %2179 = vmatpush1.bf16.msra.mxu0 0
        %2180 = vmatprep.subr.bf16.mxu0 0
        %2181 = vmatpush1.bf16.msra.mxu0 0
        %2182 = vmatprep.subr.bf16.mxu0 0
        %2183 = vmatpush1.bf16.msra.mxu0 0
        %2184 = vmatprep.subr.bf16.mxu0 0
        %2185 = vmatpush1.bf16.msra.mxu0 0
        %2186 = vmatprep.subr.bf16.mxu0 0
        %2187 = vmatpush1.bf16.msra.mxu0 0
        %2188 = vmatprep.subr.bf16.mxu0 0
        %2189 = vmatpush1.bf16.msra.mxu0 0
        %2190 = vmatprep.subr.bf16.mxu0 0
        %2191 = vmatpush1.bf16.msra.mxu0 0
        %2192 = vmatprep.subr.bf16.mxu0 0
        %2193 = vmatpush1.bf16.msra.mxu0 0
        %2194 = vmatprep.subr.bf16.mxu0 0
        %2195 = vmatpush1.bf16.msra.mxu0 0
        %2196 = vmatprep.subr.bf16.mxu0 0
        %2197 = vmatpush1.bf16.msra.mxu0 0
        %2198 = vmatprep.mubr.bf16.mxu0 0
        %2199 = vmatmul.mubr.bf16.gmra.mrb[0].mxu0 %v2114
        %v2200 = vpop.f32.mrb[0].mxu0
        %v2201 = vadd.f32 0.0, %v2200
        %v2202 = vpop.f32.mrb[0].mxu0
        %v2203 = vpop.f32.mrb[0].mxu0
        %v2204 = vpop.f32.mrb[0].mxu0
        %2205 = vdwg.mxu0
        %2206 = vrot.lane.b32.xlu0 %v2090, 23
        %v2207 = vpop.permute.xlu0 %2206
        %2208 = vrot.lane.b32.xlu0 %v2098, 23
        %v2209 = vpop.permute.xlu0 %2208
        %2210 = vrot.lane.b32.xlu0 %v2097, 23
        %v2211 = vpop.permute.xlu0 %2210
        %2212 = vrot.lane.b32.xlu0 %v2099, 23
        %v2213 = vpop.permute.xlu0 %2212
        %vm2214 = vcmask 187392
        %v2215 = vsel %vm2214, %v2207, %v2209
        %v2216 = vsel %vm2214, %v2209, %v2211
        %v2217 = vsel %vm2214, %v2211, %v2213
        %v2219 = vsel %vm2112, %v2078, 0
        %v2222 = vsel %vm2072, %v2215, 0
        %v2225 = vsel %vm2072, %v2216, 0
        %v2228 = vsel %vm2072, %v2217, 0
        %2230 = vmatprep.subr.bf16.mxu0 %v2225
        %2231 = vmatpush1.bf16.msra.mxu0 %v2222
        %2232 = vmatprep.subr.bf16.mxu0 0
        %2233 = vmatpush1.bf16.msra.mxu0 0
        %2234 = vmatprep.subr.bf16.mxu0 0
        %2235 = vmatpush1.bf16.msra.mxu0 0
        %2236 = vmatprep.subr.bf16.mxu0 0
        %2237 = vmatpush1.bf16.msra.mxu0 0
        %2238 = vmatprep.subr.bf16.mxu0 0
        %2239 = vmatpush1.bf16.msra.mxu0 0
        %2240 = vmatprep.subr.bf16.mxu0 0
        %2241 = vmatpush1.bf16.msra.mxu0 0
        %2242 = vmatprep.subr.bf16.mxu0 0
        %2243 = vmatpush1.bf16.msra.mxu0 0
        %2244 = vmatprep.subr.bf16.mxu0 0
        %2245 = vmatpush1.bf16.msra.mxu0 0
        %2246 = vmatprep.subr.bf16.mxu0 0
        %2247 = vmatpush1.bf16.msra.mxu0 0
        %2248 = vmatprep.subr.bf16.mxu0 0
        %2249 = vmatpush1.bf16.msra.mxu0 0
        %2250 = vmatprep.subr.bf16.mxu0 0
        %2251 = vmatpush1.bf16.msra.mxu0 0
        %2252 = vmatprep.subr.bf16.mxu0 0
        %2253 = vmatpush1.bf16.msra.mxu0 0
        %2254 = vmatprep.subr.bf16.mxu0 0
        %2255 = vmatpush1.bf16.msra.mxu0 0
        %2256 = vmatprep.subr.bf16.mxu0 0
        %2257 = vmatpush1.bf16.msra.mxu0 0
        %2258 = vmatprep.subr.bf16.mxu0 0
        %2259 = vmatpush1.bf16.msra.mxu0 0
        %2260 = vmatprep.subr.bf16.mxu0 0
        %2261 = vmatpush1.bf16.msra.mxu0 0
        %2262 = vmatprep.mubr.bf16.mxu0 0
        %2263 = vmatmul.mubr.bf16.gmra.mrb[0].mxu0 %v2219
        %v2264 = vpop.f32.mrb[0].mxu0
        %v2265 = vadd.f32 %v2160, %v2264
        %v2266 = vpop.f32.mrb[0].mxu0
        %v2267 = vadd.f32 %v2162, %v2266
        %v2268 = vpop.f32.mrb[0].mxu0
        %v2269 = vpop.f32.mrb[0].mxu0
        %2270 = vdwg.mxu0
        %2271 = vmatprep.subr.bf16.mxu0 0
        %2272 = vmatpush1.bf16.msra.mxu0 %v2228
        %2273 = vmatprep.subr.bf16.mxu0 0
        %2274 = vmatpush1.bf16.msra.mxu0 0
        %2275 = vmatprep.subr.bf16.mxu0 0
        %2276 = vmatpush1.bf16.msra.mxu0 0
        %2277 = vmatprep.subr.bf16.mxu0 0
        %2278 = vmatpush1.bf16.msra.mxu0 0
        %2279 = vmatprep.subr.bf16.mxu0 0
        %2280 = vmatpush1.bf16.msra.mxu0 0
        %2281 = vmatprep.subr.bf16.mxu0 0
        %2282 = vmatpush1.bf16.msra.mxu0 0
        %2283 = vmatprep.subr.bf16.mxu0 0
        %2284 = vmatpush1.bf16.msra.mxu0 0
        %2285 = vmatprep.subr.bf16.mxu0 0
        %2286 = vmatpush1.bf16.msra.mxu0 0
        %2287 = vmatprep.subr.bf16.mxu0 0
        %2288 = vmatpush1.bf16.msra.mxu0 0
        %2289 = vmatprep.subr.bf16.mxu0 0
        %2290 = vmatpush1.bf16.msra.mxu0 0
        %2291 = vmatprep.subr.bf16.mxu0 0
        %2292 = vmatpush1.bf16.msra.mxu0 0
        %2293 = vmatprep.subr.bf16.mxu0 0
        %2294 = vmatpush1.bf16.msra.mxu0 0
        %2295 = vmatprep.subr.bf16.mxu0 0
        %2296 = vmatpush1.bf16.msra.mxu0 0
        %2297 = vmatprep.subr.bf16.mxu0 0
        %2298 = vmatpush1.bf16.msra.mxu0 0
        %2299 = vmatprep.subr.bf16.mxu0 0
        %2300 = vmatpush1.bf16.msra.mxu0 0
        %2301 = vmatprep.subr.bf16.mxu0 0
        %2302 = vmatpush1.bf16.msra.mxu0 0
        %2303 = vmatprep.mubr.bf16.mxu0 0
        %2304 = vmatmul.mubr.bf16.gmra.mrb[0].mxu0 %v2219
        %v2305 = vpop.f32.mrb[0].mxu0
        %v2306 = vadd.f32 %v2201, %v2305
        %v2307 = vpop.f32.mrb[0].mxu0
        %v2308 = vpop.f32.mrb[0].mxu0
        %v2309 = vpop.f32.mrb[0].mxu0
        %2310 = vdwg.mxu0
        %s2311 = scalar_lea.vmem %s8, 8
        %v2312 = vld [vmem:[%s2311] sm:$0xf]
        %v2313 = vld [vmem:[#allocation3] sm:$0xff]
        %v2315 = vcombine.high %v2313, %v2313
        %v2317 = vunpack.c.l.s4 1983009808
        %v2318 = vunpack.c.0.s8 %v2317
        %v2319 = vlaneseq
        %v2320 = vshrl.u32 %v2319, 7
        %v2321 = vsub.s32 %v2318, %v2320
        %v2322 = vrot.slane %v2313, %v2321
        %v2324 = vunpack.c.l.s4 1983009808
        %v2325 = vunpack.c.0.s8 %v2324
        %v2326 = vlaneseq
        %v2327 = vshrl.u32 %v2326, 7
        %v2328 = vsub.s32 %v2325, %v2327
        %v2329 = vrot.slane %v2315, %v2328
        %v2330 = vcombine.high %v2322, %v2322
        %v2331 = vcombine.high %v2329, %v2329
        %2332 = vrot.lane.b32.xlu0 %v2322, 21
        %v2333 = vpop.permute.xlu0 %2332
        %2334 = vrot.lane.b32.xlu0 %v2330, 21
        %v2335 = vpop.permute.xlu0 %2334
        %2336 = vrot.lane.b32.xlu0 %v2329, 21
        %v2337 = vpop.permute.xlu0 %2336
        %2338 = vrot.lane.b32.xlu0 %v2331, 21
        %v2339 = vpop.permute.xlu0 %2338
        %vm2340 = vcmask 171008
        %v2341 = vsel %vm2340, %v2333, %v2335
        %v2342 = vsel %vm2340, %v2335, %v2337
        %v2343 = vsel %vm2340, %v2337, %v2339
        %v2345 = vsel %vm2112, %v2312, 0
        %v2348 = vsel %vm2072, %v2341, 0
        %v2351 = vsel %vm2072, %v2342, 0
        %v2354 = vsel %vm2072, %v2343, 0
        %2356 = vmatprep.subr.bf16.mxu0 %v2351
        %2357 = vmatpush1.bf16.msra.mxu0 %v2348
        %2358 = vmatprep.subr.bf16.mxu0 0
        %2359 = vmatpush1.bf16.msra.mxu0 0
        %2360 = vmatprep.subr.bf16.mxu0 0
        %2361 = vmatpush1.bf16.msra.mxu0 0
        %2362 = vmatprep.subr.bf16.mxu0 0
        %2363 = vmatpush1.bf16.msra.mxu0 0
        %2364 = vmatprep.subr.bf16.mxu0 0
        %2365 = vmatpush1.bf16.msra.mxu0 0
        %2366 = vmatprep.subr.bf16.mxu0 0
        %2367 = vmatpush1.bf16.msra.mxu0 0
        %2368 = vmatprep.subr.bf16.mxu0 0
        %2369 = vmatpush1.bf16.msra.mxu0 0
        %2370 = vmatprep.subr.bf16.mxu0 0
        %2371 = vmatpush1.bf16.msra.mxu0 0
        %2372 = vmatprep.subr.bf16.mxu0 0
        %2373 = vmatpush1.bf16.msra.mxu0 0
        %2374 = vmatprep.subr.bf16.mxu0 0
        %2375 = vmatpush1.bf16.msra.mxu0 0
        %2376 = vmatprep.subr.bf16.mxu0 0
        %2377 = vmatpush1.bf16.msra.mxu0 0
        %2378 = vmatprep.subr.bf16.mxu0 0
        %2379 = vmatpush1.bf16.msra.mxu0 0
        %2380 = vmatprep.subr.bf16.mxu0 0
        %2381 = vmatpush1.bf16.msra.mxu0 0
        %2382 = vmatprep.subr.bf16.mxu0 0
        %2383 = vmatpush1.bf16.msra.mxu0 0
        %2384 = vmatprep.subr.bf16.mxu0 0
        %2385 = vmatpush1.bf16.msra.mxu0 0
        %2386 = vmatprep.subr.bf16.mxu0 0
        %2387 = vmatpush1.bf16.msra.mxu0 0
        %2388 = vmatprep.mubr.bf16.mxu0 0
        %2389 = vmatmul.mubr.bf16.gmra.mrb[0].mxu0 %v2345
        %v2390 = vpop.f32.mrb[0].mxu0
        %v2391 = vadd.f32 0.0, %v2390
        %v2392 = vpop.f32.mrb[0].mxu0
        %v2393 = vadd.f32 0.0, %v2392
        %v2394 = vpop.f32.mrb[0].mxu0
        %v2395 = vpop.f32.mrb[0].mxu0
        %2396 = vdwg.mxu0
        %2397 = vmatprep.subr.bf16.mxu0 0
        %2398 = vmatpush1.bf16.msra.mxu0 %v2354
        %2399 = vmatprep.subr.bf16.mxu0 0
        %2400 = vmatpush1.bf16.msra.mxu0 0
        %2401 = vmatprep.subr.bf16.mxu0 0
        %2402 = vmatpush1.bf16.msra.mxu0 0
        %2403 = vmatprep.subr.bf16.mxu0 0
        %2404 = vmatpush1.bf16.msra.mxu0 0
        %2405 = vmatprep.subr.bf16.mxu0 0
        %2406 = vmatpush1.bf16.msra.mxu0 0
        %2407 = vmatprep.subr.bf16.mxu0 0
        %2408 = vmatpush1.bf16.msra.mxu0 0
        %2409 = vmatprep.subr.bf16.mxu0 0
        %2410 = vmatpush1.bf16.msra.mxu0 0
        %2411 = vmatprep.subr.bf16.mxu0 0
        %2412 = vmatpush1.bf16.msra.mxu0 0
        %2413 = vmatprep.subr.bf16.mxu0 0
        %2414 = vmatpush1.bf16.msra.mxu0 0
        %2415 = vmatprep.subr.bf16.mxu0 0
        %2416 = vmatpush1.bf16.msra.mxu0 0
        %2417 = vmatprep.subr.bf16.mxu0 0
        %2418 = vmatpush1.bf16.msra.mxu0 0
        %2419 = vmatprep.subr.bf16.mxu0 0
        %2420 = vmatpush1.bf16.msra.mxu0 0
        %2421 = vmatprep.subr.bf16.mxu0 0
        %2422 = vmatpush1.bf16.msra.mxu0 0
        %2423 = vmatprep.subr.bf16.mxu0 0
        %2424 = vmatpush1.bf16.msra.mxu0 0
        %2425 = vmatprep.subr.bf16.mxu0 0
        %2426 = vmatpush1.bf16.msra.mxu0 0
        %2427 = vmatprep.subr.bf16.mxu0 0
        %2428 = vmatpush1.bf16.msra.mxu0 0
        %2429 = vmatprep.mubr.bf16.mxu0 0
        %2430 = vmatmul.mubr.bf16.gmra.mrb[0].mxu0 %v2345
        %v2431 = vpop.f32.mrb[0].mxu0
        %v2432 = vadd.f32 0.0, %v2431
        %v2433 = vpop.f32.mrb[0].mxu0
        %v2434 = vpop.f32.mrb[0].mxu0
        %v2435 = vpop.f32.mrb[0].mxu0
        %2436 = vdwg.mxu0
        %v2437 = vadd.f32 %v2265, %v2391
        %v2438 = vadd.f32 %v2267, %v2393
        %v2439 = vadd.f32 %v2306, %v2432
        %s2440 = scalar_lea.vmem %s8, 12
        %v2441 = vld [vmem:[%s2440] sm:$0xf]
        %v2442 = vld [vmem:[#allocation3] sm:$0xff]
        %v2444 = vcombine.high %v2442, %v2442
        %v2446 = vunpack.c.l.s4 1983009808
        %v2447 = vunpack.c.0.s8 %v2446
        %v2448 = vlaneseq
        %v2449 = vshrl.u32 %v2448, 7
        %v2450 = vsub.s32 %v2447, %v2449
        %v2451 = vrot.slane %v2442, %v2450
        %v2453 = vunpack.c.l.s4 1983009808
        %v2454 = vunpack.c.0.s8 %v2453
        %v2455 = vlaneseq
        %v2456 = vshrl.u32 %v2455, 7
        %v2457 = vsub.s32 %v2454, %v2456
        %v2458 = vrot.slane %v2444, %v2457
        %v2459 = vcombine.high %v2451, %v2451
        %v2460 = vcombine.high %v2458, %v2458
        %2461 = vrot.lane.b32.xlu0 %v2451, 1
        %v2462 = vpop.permute.xlu0 %2461
        %2463 = vrot.lane.b32.xlu0 %v2459, 1
        %v2464 = vpop.permute.xlu0 %2463
        %2465 = vrot.lane.b32.xlu0 %v2458, 1
        %v2466 = vpop.permute.xlu0 %2465
        %2467 = vrot.lane.b32.xlu0 %v2460, 1
        %v2468 = vpop.permute.xlu0 %2467
        %vm2469 = vcmask 7168
        %v2470 = vsel %vm2469, %v2462, %v2464
        %v2471 = vsel %vm2469, %v2464, %v2466
        %v2472 = vsel %vm2469, %v2466, %v2468
        %v2474 = vsel %vm2112, %v2441, 0
        %v2477 = vsel %vm2072, %v2470, 0
        %v2480 = vsel %vm2072, %v2471, 0
        %v2483 = vsel %vm2072, %v2472, 0
        %2485 = vmatprep.subr.bf16.mxu0 %v2480
        %2486 = vmatpush1.bf16.msra.mxu0 %v2477
        %2487 = vmatprep.subr.bf16.mxu0 0
        %2488 = vmatpush1.bf16.msra.mxu0 0
        %2489 = vmatprep.subr.bf16.mxu0 0
        %2490 = vmatpush1.bf16.msra.mxu0 0
        %2491 = vmatprep.subr.bf16.mxu0 0
        %2492 = vmatpush1.bf16.msra.mxu0 0
        %2493 = vmatprep.subr.bf16.mxu0 0
        %2494 = vmatpush1.bf16.msra.mxu0 0
        %2495 = vmatprep.subr.bf16.mxu0 0
        %2496 = vmatpush1.bf16.msra.mxu0 0
        %2497 = vmatprep.subr.bf16.mxu0 0
        %2498 = vmatpush1.bf16.msra.mxu0 0
        %2499 = vmatprep.subr.bf16.mxu0 0
        %2500 = vmatpush1.bf16.msra.mxu0 0
        %2501 = vmatprep.subr.bf16.mxu0 0
        %2502 = vmatpush1.bf16.msra.mxu0 0
        %2503 = vmatprep.subr.bf16.mxu0 0
        %2504 = vmatpush1.bf16.msra.mxu0 0
        %2505 = vmatprep.subr.bf16.mxu0 0
        %2506 = vmatpush1.bf16.msra.mxu0 0
        %2507 = vmatprep.subr.bf16.mxu0 0
        %2508 = vmatpush1.bf16.msra.mxu0 0
        %2509 = vmatprep.subr.bf16.mxu0 0
        %2510 = vmatpush1.bf16.msra.mxu0 0
        %2511 = vmatprep.subr.bf16.mxu0 0
        %2512 = vmatpush1.bf16.msra.mxu0 0
        %2513 = vmatprep.subr.bf16.mxu0 0
        %2514 = vmatpush1.bf16.msra.mxu0 0
        %2515 = vmatprep.subr.bf16.mxu0 0
        %2516 = vmatpush1.bf16.msra.mxu0 0
        %2517 = vmatprep.mubr.bf16.mxu0 0
        %2518 = vmatmul.mubr.bf16.gmra.mrb[0].mxu0 %v2474
        %v2519 = vpop.f32.mrb[0].mxu0
        %v2520 = vadd.f32 0.0, %v2519
        %v2521 = vpop.f32.mrb[0].mxu0
        %v2522 = vadd.f32 0.0, %v2521
        %v2523 = vpop.f32.mrb[0].mxu0
        %v2524 = vpop.f32.mrb[0].mxu0
        %2525 = vdwg.mxu0
        %2526 = vmatprep.subr.bf16.mxu0 0
        %2527 = vmatpush1.bf16.msra.mxu0 %v2483
        %2528 = vmatprep.subr.bf16.mxu0 0
        %2529 = vmatpush1.bf16.msra.mxu0 0
        %2530 = vmatprep.subr.bf16.mxu0 0
        %2531 = vmatpush1.bf16.msra.mxu0 0
        %2532 = vmatprep.subr.bf16.mxu0 0
        %2533 = vmatpush1.bf16.msra.mxu0 0
        %2534 = vmatprep.subr.bf16.mxu0 0
        %2535 = vmatpush1.bf16.msra.mxu0 0
        %2536 = vmatprep.subr.bf16.mxu0 0
        %2537 = vmatpush1.bf16.msra.mxu0 0
        %2538 = vmatprep.subr.bf16.mxu0 0
        %2539 = vmatpush1.bf16.msra.mxu0 0
        %2540 = vmatprep.subr.bf16.mxu0 0
        %2541 = vmatpush1.bf16.msra.mxu0 0
        %2542 = vmatprep.subr.bf16.mxu0 0
        %2543 = vmatpush1.bf16.msra.mxu0 0
        %2544 = vmatprep.subr.bf16.mxu0 0
        %2545 = vmatpush1.bf16.msra.mxu0 0
        %2546 = vmatprep.subr.bf16.mxu0 0
        %2547 = vmatpush1.bf16.msra.mxu0 0
        %2548 = vmatprep.subr.bf16.mxu0 0
        %2549 = vmatpush1.bf16.msra.mxu0 0
        %2550 = vmatprep.subr.bf16.mxu0 0
        %2551 = vmatpush1.bf16.msra.mxu0 0
        %2552 = vmatprep.subr.bf16.mxu0 0
        %2553 = vmatpush1.bf16.msra.mxu0 0
        %2554 = vmatprep.subr.bf16.mxu0 0
        %2555 = vmatpush1.bf16.msra.mxu0 0
        %2556 = vmatprep.subr.bf16.mxu0 0
        %2557 = vmatpush1.bf16.msra.mxu0 0
        %2558 = vmatprep.mubr.bf16.mxu0 0
        %2559 = vmatmul.mubr.bf16.gmra.mrb[0].mxu0 %v2474
        %v2560 = vpop.f32.mrb[0].mxu0
        %v2561 = vadd.f32 0.0, %v2560
        %v2562 = vpop.f32.mrb[0].mxu0
        %v2563 = vpop.f32.mrb[0].mxu0
        %v2564 = vpop.f32.mrb[0].mxu0
        %2565 = vdwg.mxu0
        %v2566 = vadd.f32 %v2437, %v2520
        %v2567 = vadd.f32 %v2438, %v2522
        %v2568 = vadd.f32 %v2439, %v2561
        %s2569 = scalar_lea.vmem %s8, 16
        %v2570 = vld [vmem:[%s2569] sm:$0xf]
        %v2571 = vld [vmem:[#allocation3 + $0x2] sm:$0x3f]
        %v2573 = vcombine.high %v2571, %v2571
        %v2575 = vunpack.c.l.s4 1983009808
        %v2576 = vunpack.c.0.s8 %v2575
        %v2577 = vlaneseq
        %v2578 = vshrl.u32 %v2577, 7
        %v2579 = vsub.s32 %v2576, %v2578
        %v2580 = vrot.slane %v2571, %v2579
        %v2582 = vunpack.c.l.s4 1983009808
        %v2583 = vunpack.c.0.s8 %v2582
        %v2584 = vlaneseq
        %v2585 = vshrl.u32 %v2584, 7
        %v2586 = vsub.s32 %v2583, %v2585
        %v2587 = vrot.slane %v2573, %v2586
        %v2588 = vcombine.high %v2580, %v2580
        %v2590 = vsel %vm2112, %v2570, 0
        %v2593 = vsel %vm2072, %v2580, 0
        %v2596 = vsel %vm2072, %v2588, 0
        %v2599 = vsel %vm2072, %v2587, 0
        %2601 = vmatprep.subr.bf16.mxu0 %v2596
        %2602 = vmatpush1.bf16.msra.mxu0 %v2593
        %2603 = vmatprep.subr.bf16.mxu0 0
        %2604 = vmatpush1.bf16.msra.mxu0 0
        %2605 = vmatprep.subr.bf16.mxu0 0
        %2606 = vmatpush1.bf16.msra.mxu0 0
        %2607 = vmatprep.subr.bf16.mxu0 0
        %2608 = vmatpush1.bf16.msra.mxu0 0
        %2609 = vmatprep.subr.bf16.mxu0 0
        %2610 = vmatpush1.bf16.msra.mxu0 0
        %2611 = vmatprep.subr.bf16.mxu0 0
        %2612 = vmatpush1.bf16.msra.mxu0 0
        %2613 = vmatprep.subr.bf16.mxu0 0
        %2614 = vmatpush1.bf16.msra.mxu0 0
        %2615 = vmatprep.subr.bf16.mxu0 0
        %2616 = vmatpush1.bf16.msra.mxu0 0
        %2617 = vmatprep.subr.bf16.mxu0 0
        %2618 = vmatpush1.bf16.msra.mxu0 0
        %2619 = vmatprep.subr.bf16.mxu0 0
        %2620 = vmatpush1.bf16.msra.mxu0 0
        %2621 = vmatprep.subr.bf16.mxu0 0
        %2622 = vmatpush1.bf16.msra.mxu0 0
        %2623 = vmatprep.subr.bf16.mxu0 0
        %2624 = vmatpush1.bf16.msra.mxu0 0
        %2625 = vmatprep.subr.bf16.mxu0 0
        %2626 = vmatpush1.bf16.msra.mxu0 0
        %2627 = vmatprep.subr.bf16.mxu0 0
        %2628 = vmatpush1.bf16.msra.mxu0 0
        %2629 = vmatprep.subr.bf16.mxu0 0
        %2630 = vmatpush1.bf16.msra.mxu0 0
        %2631 = vmatprep.subr.bf16.mxu0 0
        %2632 = vmatpush1.bf16.msra.mxu0 0
        %2633 = vmatprep.mubr.bf16.mxu0 0
        %2634 = vmatmul.mubr.bf16.gmra.mrb[0].mxu0 %v2590
        %v2635 = vpop.f32.mrb[0].mxu0
        %v2636 = vadd.f32 0.0, %v2635
        %v2637 = vpop.f32.mrb[0].mxu0
        %v2638 = vadd.f32 0.0, %v2637
        %v2639 = vpop.f32.mrb[0].mxu0
        %v2640 = vpop.f32.mrb[0].mxu0
        %2641 = vdwg.mxu0
        %2642 = vmatprep.subr.bf16.mxu0 0
        %2643 = vmatpush1.bf16.msra.mxu0 %v2599
        %2644 = vmatprep.subr.bf16.mxu0 0
        %2645 = vmatpush1.bf16.msra.mxu0 0
        %2646 = vmatprep.subr.bf16.mxu0 0
        %2647 = vmatpush1.bf16.msra.mxu0 0
        %2648 = vmatprep.subr.bf16.mxu0 0
        %2649 = vmatpush1.bf16.msra.mxu0 0
        %2650 = vmatprep.subr.bf16.mxu0 0
        %2651 = vmatpush1.bf16.msra.mxu0 0
        %2652 = vmatprep.subr.bf16.mxu0 0
        %2653 = vmatpush1.bf16.msra.mxu0 0
        %2654 = vmatprep.subr.bf16.mxu0 0
        %2655 = vmatpush1.bf16.msra.mxu0 0
        %2656 = vmatprep.subr.bf16.mxu0 0
        %2657 = vmatpush1.bf16.msra.mxu0 0
        %2658 = vmatprep.subr.bf16.mxu0 0
        %2659 = vmatpush1.bf16.msra.mxu0 0
        %2660 = vmatprep.subr.bf16.mxu0 0
        %2661 = vmatpush1.bf16.msra.mxu0 0
        %2662 = vmatprep.subr.bf16.mxu0 0
        %2663 = vmatpush1.bf16.msra.mxu0 0
        %2664 = vmatprep.subr.bf16.mxu0 0
        %2665 = vmatpush1.bf16.msra.mxu0 0
        %2666 = vmatprep.subr.bf16.mxu0 0
        %2667 = vmatpush1.bf16.msra.mxu0 0
        %2668 = vmatprep.subr.bf16.mxu0 0
        %2669 = vmatpush1.bf16.msra.mxu0 0
        %2670 = vmatprep.subr.bf16.mxu0 0
        %2671 = vmatpush1.bf16.msra.mxu0 0
        %2672 = vmatprep.subr.bf16.mxu0 0
        %2673 = vmatpush1.bf16.msra.mxu0 0
        %2674 = vmatprep.mubr.bf16.mxu0 0
        %2675 = vmatmul.mubr.bf16.gmra.mrb[0].mxu0 %v2590
        %v2676 = vpop.f32.mrb[0].mxu0
        %v2677 = vadd.f32 0.0, %v2676
        %v2678 = vpop.f32.mrb[0].mxu0
        %v2679 = vpop.f32.mrb[0].mxu0
        %v2680 = vpop.f32.mrb[0].mxu0
        %2681 = vdwg.mxu0
        %v2682 = vadd.f32 %v2566, %v2636
        %v2683 = vadd.f32 %v2567, %v2638
        %v2684 = vadd.f32 %v2568, %v2677
        %s2685 = scalar_lea.vmem %s8, 20
        %v2686 = vld [vmem:[%s2685] sm:$0xf]
        %v2687 = vld [vmem:[#allocation3 + $0x2] sm:$0xff]
        %v2689 = vcombine.high %v2687, %v2687
        %v2691 = vunpack.c.l.s4 1983009808
        %v2692 = vunpack.c.0.s8 %v2691
        %v2693 = vlaneseq
        %v2694 = vshrl.u32 %v2693, 7
        %v2695 = vsub.s32 %v2692, %v2694
        %v2696 = vrot.slane %v2687, %v2695
        %v2698 = vunpack.c.l.s4 1983009808
        %v2699 = vunpack.c.0.s8 %v2698
        %v2700 = vlaneseq
        %v2701 = vshrl.u32 %v2700, 7
        %v2702 = vsub.s32 %v2699, %v2701
        %v2703 = vrot.slane %v2689, %v2702
        %v2704 = vcombine.high %v2696, %v2696
        %v2705 = vcombine.high %v2703, %v2703
        %2706 = vrot.lane.b32.xlu0 %v2696, 127
        %v2707 = vpop.permute.xlu0 %2706
        %2708 = vrot.lane.b32.xlu0 %v2704, 127
        %v2709 = vpop.permute.xlu0 %2708
        %2710 = vrot.lane.b32.xlu0 %v2703, 127
        %v2711 = vpop.permute.xlu0 %2710
        %2712 = vrot.lane.b32.xlu0 %v2705, 127
        %v2713 = vpop.permute.xlu0 %2712
        %vm2714 = vcmask 1039360
        %v2715 = vsel %vm2714, %v2707, %v2709
        %v2716 = vsel %vm2714, %v2709, %v2711
        %v2717 = vsel %vm2714, %v2711, %v2713
        %v2719 = vsel %vm2112, %v2686, 0
        %v2722 = vsel %vm2072, %v2715, 0
        %v2725 = vsel %vm2072, %v2716, 0
        %v2728 = vsel %vm2072, %v2717, 0
        %2730 = vmatprep.subr.bf16.mxu0 %v2725
        %2731 = vmatpush1.bf16.msra.mxu0 %v2722
        %2732 = vmatprep.subr.bf16.mxu0 0
        %2733 = vmatpush1.bf16.msra.mxu0 0
        %2734 = vmatprep.subr.bf16.mxu0 0
        %2735 = vmatpush1.bf16.msra.mxu0 0
        %2736 = vmatprep.subr.bf16.mxu0 0
        %2737 = vmatpush1.bf16.msra.mxu0 0
        %2738 = vmatprep.subr.bf16.mxu0 0
        %2739 = vmatpush1.bf16.msra.mxu0 0
        %2740 = vmatprep.subr.bf16.mxu0 0
        %2741 = vmatpush1.bf16.msra.mxu0 0
        %2742 = vmatprep.subr.bf16.mxu0 0
        %2743 = vmatpush1.bf16.msra.mxu0 0
        %2744 = vmatprep.subr.bf16.mxu0 0
        %2745 = vmatpush1.bf16.msra.mxu0 0
        %2746 = vmatprep.subr.bf16.mxu0 0
        %2747 = vmatpush1.bf16.msra.mxu0 0
        %2748 = vmatprep.subr.bf16.mxu0 0
        %2749 = vmatpush1.bf16.msra.mxu0 0
        %2750 = vmatprep.subr.bf16.mxu0 0
        %2751 = vmatpush1.bf16.msra.mxu0 0
        %2752 = vmatprep.subr.bf16.mxu0 0
        %2753 = vmatpush1.bf16.msra.mxu0 0
        %2754 = vmatprep.subr.bf16.mxu0 0
        %2755 = vmatpush1.bf16.msra.mxu0 0
        %2756 = vmatprep.subr.bf16.mxu0 0
        %2757 = vmatpush1.bf16.msra.mxu0 0
        %2758 = vmatprep.subr.bf16.mxu0 0
        %2759 = vmatpush1.bf16.msra.mxu0 0
        %2760 = vmatprep.subr.bf16.mxu0 0
        %2761 = vmatpush1.bf16.msra.mxu0 0
        %2762 = vmatprep.mubr.bf16.mxu0 0
        %2763 = vmatmul.mubr.bf16.gmra.mrb[0].mxu0 %v2719
        %v2764 = vpop.f32.mrb[0].mxu0
        %v2765 = vadd.f32 0.0, %v2764
        %v2766 = vpop.f32.mrb[0].mxu0
        %v2767 = vadd.f32 0.0, %v2766
        %v2768 = vpop.f32.mrb[0].mxu0
        %v2769 = vpop.f32.mrb[0].mxu0
        %2770 = vdwg.mxu0
        %2771 = vmatprep.subr.bf16.mxu0 0
        %2772 = vmatpush1.bf16.msra.mxu0 %v2728
        %2773 = vmatprep.subr.bf16.mxu0 0
        %2774 = vmatpush1.bf16.msra.mxu0 0
        %2775 = vmatprep.subr.bf16.mxu0 0
        %2776 = vmatpush1.bf16.msra.mxu0 0
        %2777 = vmatprep.subr.bf16.mxu0 0
        %2778 = vmatpush1.bf16.msra.mxu0 0
        %2779 = vmatprep.subr.bf16.mxu0 0
        %2780 = vmatpush1.bf16.msra.mxu0 0
        %2781 = vmatprep.subr.bf16.mxu0 0
        %2782 = vmatpush1.bf16.msra.mxu0 0
        %2783 = vmatprep.subr.bf16.mxu0 0
        %2784 = vmatpush1.bf16.msra.mxu0 0
        %2785 = vmatprep.subr.bf16.mxu0 0
        %2786 = vmatpush1.bf16.msra.mxu0 0
        %2787 = vmatprep.subr.bf16.mxu0 0
        %2788 = vmatpush1.bf16.msra.mxu0 0
        %2789 = vmatprep.subr.bf16.mxu0 0
        %2790 = vmatpush1.bf16.msra.mxu0 0
        %2791 = vmatprep.subr.bf16.mxu0 0
        %2792 = vmatpush1.bf16.msra.mxu0 0
        %2793 = vmatprep.subr.bf16.mxu0 0
        %2794 = vmatpush1.bf16.msra.mxu0 0
        %2795 = vmatprep.subr.bf16.mxu0 0
        %2796 = vmatpush1.bf16.msra.mxu0 0
        %2797 = vmatprep.subr.bf16.mxu0 0
        %2798 = vmatpush1.bf16.msra.mxu0 0
        %2799 = vmatprep.subr.bf16.mxu0 0
        %2800 = vmatpush1.bf16.msra.mxu0 0
        %2801 = vmatprep.subr.bf16.mxu0 0
        %2802 = vmatpush1.bf16.msra.mxu0 0
        %2803 = vmatprep.mubr.bf16.mxu0 0
        %2804 = vmatmul.mubr.bf16.gmra.mrb[0].mxu0 %v2719
        %v2805 = vpop.f32.mrb[0].mxu0
        %v2806 = vadd.f32 0.0, %v2805
        %v2807 = vpop.f32.mrb[0].mxu0
        %v2808 = vpop.f32.mrb[0].mxu0
        %v2809 = vpop.f32.mrb[0].mxu0
        %2810 = vdwg.mxu0
        %v2811 = vadd.f32 %v2682, %v2765
        %v2812 = vadd.f32 %v2683, %v2767
        %v2813 = vadd.f32 %v2684, %v2806
        %s2814 = scalar_lea.vmem %s8, 24
        %v2815 = vld [vmem:[%s2814] sm:$0xf]
        %v2816 = vld [vmem:[#allocation3 + $0x2] sm:$0xff]
        %v2818 = vcombine.high %v2816, %v2816
        %v2820 = vunpack.c.l.s4 1983009808
        %v2821 = vunpack.c.0.s8 %v2820
        %v2822 = vlaneseq
        %v2823 = vshrl.u32 %v2822, 7
        %v2824 = vsub.s32 %v2821, %v2823
        %v2825 = vrot.slane %v2816, %v2824
        %v2827 = vunpack.c.l.s4 1983009808
        %v2828 = vunpack.c.0.s8 %v2827
        %v2829 = vlaneseq
        %v2830 = vshrl.u32 %v2829, 7
        %v2831 = vsub.s32 %v2828, %v2830
        %v2832 = vrot.slane %v2818, %v2831
        %v2833 = vcombine.high %v2825, %v2825
        %v2834 = vcombine.high %v2832, %v2832
        %2835 = vrot.lane.b32.xlu0 %v2825, 107
        %v2836 = vpop.permute.xlu0 %2835
        %2837 = vrot.lane.b32.xlu0 %v2833, 107
        %v2838 = vpop.permute.xlu0 %2837
        %2839 = vrot.lane.b32.xlu0 %v2832, 107
        %v2840 = vpop.permute.xlu0 %2839
        %2841 = vrot.lane.b32.xlu0 %v2834, 107
        %v2842 = vpop.permute.xlu0 %2841
        %vm2843 = vcmask 875520
        %v2844 = vsel %vm2843, %v2836, %v2838
        %v2845 = vsel %vm2843, %v2838, %v2840
        %v2846 = vsel %vm2843, %v2840, %v2842
        %v2848 = vsel %vm2112, %v2815, 0
        %v2851 = vsel %vm2072, %v2844, 0
        %v2854 = vsel %vm2072, %v2845, 0
        %v2857 = vsel %vm2072, %v2846, 0
        %2859 = vmatprep.subr.bf16.mxu0 %v2854
        %2860 = vmatpush1.bf16.msra.mxu0 %v2851
        %2861 = vmatprep.subr.bf16.mxu0 0
        %2862 = vmatpush1.bf16.msra.mxu0 0
        %2863 = vmatprep.subr.bf16.mxu0 0
        %2864 = vmatpush1.bf16.msra.mxu0 0
        %2865 = vmatprep.subr.bf16.mxu0 0
        %2866 = vmatpush1.bf16.msra.mxu0 0
        %2867 = vmatprep.subr.bf16.mxu0 0
        %2868 = vmatpush1.bf16.msra.mxu0 0
        %2869 = vmatprep.subr.bf16.mxu0 0
        %2870 = vmatpush1.bf16.msra.mxu0 0
        %2871 = vmatprep.subr.bf16.mxu0 0
        %2872 = vmatpush1.bf16.msra.mxu0 0
        %2873 = vmatprep.subr.bf16.mxu0 0
        %2874 = vmatpush1.bf16.msra.mxu0 0
        %2875 = vmatprep.subr.bf16.mxu0 0
        %2876 = vmatpush1.bf16.msra.mxu0 0
        %2877 = vmatprep.subr.bf16.mxu0 0
        %2878 = vmatpush1.bf16.msra.mxu0 0
        %2879 = vmatprep.subr.bf16.mxu0 0
        %2880 = vmatpush1.bf16.msra.mxu0 0
        %2881 = vmatprep.subr.bf16.mxu0 0
        %2882 = vmatpush1.bf16.msra.mxu0 0
        %2883 = vmatprep.subr.bf16.mxu0 0
        %2884 = vmatpush1.bf16.msra.mxu0 0
        %2885 = vmatprep.subr.bf16.mxu0 0
        %2886 = vmatpush1.bf16.msra.mxu0 0
        %2887 = vmatprep.subr.bf16.mxu0 0
        %2888 = vmatpush1.bf16.msra.mxu0 0
        %2889 = vmatprep.subr.bf16.mxu0 0
        %2890 = vmatpush1.bf16.msra.mxu0 0
        %2891 = vmatprep.mubr.bf16.mxu0 0
        %2892 = vmatmul.mubr.bf16.gmra.mrb[0].mxu0 %v2848
        %v2893 = vpop.f32.mrb[0].mxu0
        %v2894 = vadd.f32 0.0, %v2893
        %v2895 = vpop.f32.mrb[0].mxu0
        %v2896 = vadd.f32 0.0, %v2895
        %v2897 = vpop.f32.mrb[0].mxu0
        %v2898 = vpop.f32.mrb[0].mxu0
        %2899 = vdwg.mxu0
        %2900 = vmatprep.subr.bf16.mxu0 0
        %2901 = vmatpush1.bf16.msra.mxu0 %v2857
        %2902 = vmatprep.subr.bf16.mxu0 0
        %2903 = vmatpush1.bf16.msra.mxu0 0
        %2904 = vmatprep.subr.bf16.mxu0 0
        %2905 = vmatpush1.bf16.msra.mxu0 0
        %2906 = vmatprep.subr.bf16.mxu0 0
        %2907 = vmatpush1.bf16.msra.mxu0 0
        %2908 = vmatprep.subr.bf16.mxu0 0
        %2909 = vmatpush1.bf16.msra.mxu0 0
        %2910 = vmatprep.subr.bf16.mxu0 0
        %2911 = vmatpush1.bf16.msra.mxu0 0
        %2912 = vmatprep.subr.bf16.mxu0 0
        %2913 = vmatpush1.bf16.msra.mxu0 0
        %2914 = vmatprep.subr.bf16.mxu0 0
        %2915 = vmatpush1.bf16.msra.mxu0 0
        %2916 = vmatprep.subr.bf16.mxu0 0
        %2917 = vmatpush1.bf16.msra.mxu0 0
        %2918 = vmatprep.subr.bf16.mxu0 0
        %2919 = vmatpush1.bf16.msra.mxu0 0
        %2920 = vmatprep.subr.bf16.mxu0 0
        %2921 = vmatpush1.bf16.msra.mxu0 0
        %2922 = vmatprep.subr.bf16.mxu0 0
        %2923 = vmatpush1.bf16.msra.mxu0 0
        %2924 = vmatprep.subr.bf16.mxu0 0
        %2925 = vmatpush1.bf16.msra.mxu0 0
        %2926 = vmatprep.subr.bf16.mxu0 0
        %2927 = vmatpush1.bf16.msra.mxu0 0
        %2928 = vmatprep.subr.bf16.mxu0 0
        %2929 = vmatpush1.bf16.msra.mxu0 0
        %2930 = vmatprep.subr.bf16.mxu0 0
        %2931 = vmatpush1.bf16.msra.mxu0 0
        %2932 = vmatprep.mubr.bf16.mxu0 0
        %2933 = vmatmul.mubr.bf16.gmra.mrb[0].mxu0 %v2848
        %v2934 = vpop.f32.mrb[0].mxu0
        %v2935 = vadd.f32 0.0, %v2934
        %v2936 = vpop.f32.mrb[0].mxu0
        %v2937 = vpop.f32.mrb[0].mxu0
        %v2938 = vpop.f32.mrb[0].mxu0
        %2939 = vdwg.mxu0
        %v2940 = vadd.f32 %v2811, %v2894
        %v2941 = vadd.f32 %v2812, %v2896
        %v2942 = vadd.f32 %v2813, %v2935
        %s2943 = scalar_lea.vmem %s8, 28
        %v2944 = vld [vmem:[%s2943] sm:$0xf]
        %v2945 = vld [vmem:[#allocation3 + $0x2] sm:$0xff]
        %v2947 = vcombine.high %v2945, %v2945
        %v2949 = vunpack.c.l.s4 1983009808
        %v2950 = vunpack.c.0.s8 %v2949
        %v2951 = vlaneseq
        %v2952 = vshrl.u32 %v2951, 7
        %v2953 = vsub.s32 %v2950, %v2952
        %v2954 = vrot.slane %v2945, %v2953
        %v2956 = vunpack.c.l.s4 1983009808
        %v2957 = vunpack.c.0.s8 %v2956
        %v2958 = vlaneseq
        %v2959 = vshrl.u32 %v2958, 7
        %v2960 = vsub.s32 %v2957, %v2959
        %v2961 = vrot.slane %v2947, %v2960
        %v2962 = vcombine.high %v2954, %v2954
        %v2963 = vcombine.high %v2961, %v2961
        %2964 = vrot.lane.b32.xlu0 %v2954, 106
        %v2965 = vpop.permute.xlu0 %2964
        %2966 = vrot.lane.b32.xlu0 %v2962, 106
        %v2967 = vpop.permute.xlu0 %2966
        %2968 = vrot.lane.b32.xlu0 %v2961, 106
        %v2969 = vpop.permute.xlu0 %2968
        %2970 = vrot.lane.b32.xlu0 %v2963, 106
        %v2971 = vpop.permute.xlu0 %2970
        %vm2972 = vcmask 867328
        %v2973 = vsel %vm2972, %v2965, %v2967
        %v2974 = vsel %vm2972, %v2967, %v2969
        %v2975 = vsel %vm2972, %v2969, %v2971
        %v2977 = vsel %vm2112, %v2944, 0
        %v2980 = vsel %vm2072, %v2973, 0
        %v2983 = vsel %vm2072, %v2974, 0
        %v2986 = vsel %vm2072, %v2975, 0
        %2988 = vmatprep.subr.bf16.mxu0 %v2983
        %2989 = vmatpush1.bf16.msra.mxu0 %v2980
        %2990 = vmatprep.subr.bf16.mxu0 0
        %2991 = vmatpush1.bf16.msra.mxu0 0
        %2992 = vmatprep.subr.bf16.mxu0 0
        %2993 = vmatpush1.bf16.msra.mxu0 0
        %2994 = vmatprep.subr.bf16.mxu0 0
        %2995 = vmatpush1.bf16.msra.mxu0 0
        %2996 = vmatprep.subr.bf16.mxu0 0
        %2997 = vmatpush1.bf16.msra.mxu0 0
        %2998 = vmatprep.subr.bf16.mxu0 0
        %2999 = vmatpush1.bf16.msra.mxu0 0
        %3000 = vmatprep.subr.bf16.mxu0 0
        %3001 = vmatpush1.bf16.msra.mxu0 0
        %3002 = vmatprep.subr.bf16.mxu0 0
        %3003 = vmatpush1.bf16.msra.mxu0 0
        %3004 = vmatprep.subr.bf16.mxu0 0
        %3005 = vmatpush1.bf16.msra.mxu0 0
        %3006 = vmatprep.subr.bf16.mxu0 0
        %3007 = vmatpush1.bf16.msra.mxu0 0
        %3008 = vmatprep.subr.bf16.mxu0 0
        %3009 = vmatpush1.bf16.msra.mxu0 0
        %3010 = vmatprep.subr.bf16.mxu0 0
        %3011 = vmatpush1.bf16.msra.mxu0 0
        %3012 = vmatprep.subr.bf16.mxu0 0
        %3013 = vmatpush1.bf16.msra.mxu0 0
        %3014 = vmatprep.subr.bf16.mxu0 0
        %3015 = vmatpush1.bf16.msra.mxu0 0
        %3016 = vmatprep.subr.bf16.mxu0 0
        %3017 = vmatpush1.bf16.msra.mxu0 0
        %3018 = vmatprep.subr.bf16.mxu0 0
        %3019 = vmatpush1.bf16.msra.mxu0 0
        %3020 = vmatprep.mubr.bf16.mxu0 0
        %3021 = vmatmul.mubr.bf16.gmra.mrb[0].mxu0 %v2977
        %v3022 = vpop.f32.mrb[0].mxu0
        %v3023 = vadd.f32 0.0, %v3022
        %v3024 = vpop.f32.mrb[0].mxu0
        %v3025 = vadd.f32 0.0, %v3024
        %v3026 = vpop.f32.mrb[0].mxu0
        %v3027 = vpop.f32.mrb[0].mxu0
        %3028 = vdwg.mxu0
        %3029 = vmatprep.subr.bf16.mxu0 0
        %3030 = vmatpush1.bf16.msra.mxu0 %v2986
        %3031 = vmatprep.subr.bf16.mxu0 0
        %3032 = vmatpush1.bf16.msra.mxu0 0
        %3033 = vmatprep.subr.bf16.mxu0 0
        %3034 = vmatpush1.bf16.msra.mxu0 0
        %3035 = vmatprep.subr.bf16.mxu0 0
        %3036 = vmatpush1.bf16.msra.mxu0 0
        %3037 = vmatprep.subr.bf16.mxu0 0
        %3038 = vmatpush1.bf16.msra.mxu0 0
        %3039 = vmatprep.subr.bf16.mxu0 0
        %3040 = vmatpush1.bf16.msra.mxu0 0
        %3041 = vmatprep.subr.bf16.mxu0 0
        %3042 = vmatpush1.bf16.msra.mxu0 0
        %3043 = vmatprep.subr.bf16.mxu0 0
        %3044 = vmatpush1.bf16.msra.mxu0 0
        %3045 = vmatprep.subr.bf16.mxu0 0
        %3046 = vmatpush1.bf16.msra.mxu0 0
        %3047 = vmatprep.subr.bf16.mxu0 0
        %3048 = vmatpush1.bf16.msra.mxu0 0
        %3049 = vmatprep.subr.bf16.mxu0 0
        %3050 = vmatpush1.bf16.msra.mxu0 0
        %3051 = vmatprep.subr.bf16.mxu0 0
        %3052 = vmatpush1.bf16.msra.mxu0 0
        %3053 = vmatprep.subr.bf16.mxu0 0
        %3054 = vmatpush1.bf16.msra.mxu0 0
        %3055 = vmatprep.subr.bf16.mxu0 0
        %3056 = vmatpush1.bf16.msra.mxu0 0
        %3057 = vmatprep.subr.bf16.mxu0 0
        %3058 = vmatpush1.bf16.msra.mxu0 0
        %3059 = vmatprep.subr.bf16.mxu0 0
        %3060 = vmatpush1.bf16.msra.mxu0 0
        %3061 = vmatprep.mubr.bf16.mxu0 0
        %3062 = vmatmul.mubr.bf16.gmra.mrb[0].mxu0 %v2977
        %v3063 = vpop.f32.mrb[0].mxu0
        %v3064 = vadd.f32 0.0, %v3063
        %v3065 = vpop.f32.mrb[0].mxu0
        %v3066 = vpop.f32.mrb[0].mxu0
        %v3067 = vpop.f32.mrb[0].mxu0
        %3068 = vdwg.mxu0
        %v3069 = vadd.f32 %v2940, %v3023
        %v3070 = vadd.f32 %v2941, %v3025
        %v3071 = vadd.f32 %v2942, %v3064
        %s3072 = scalar_lea.vmem %s8, 32
        %v3073 = vld [vmem:[%s3072] sm:$0xf]
        %v3074 = vld [vmem:[#allocation3 + $0x2] sm:$0xff]
        %v3076 = vcombine.high %v3074, %v3074
        %v3078 = vunpack.c.l.s4 1983009808
        %v3079 = vunpack.c.0.s8 %v3078
        %v3080 = vlaneseq
        %v3081 = vshrl.u32 %v3080, 7
        %v3082 = vsub.s32 %v3079, %v3081
        %v3083 = vrot.slane %v3074, %v3082
        %v3085 = vunpack.c.l.s4 1983009808
        %v3086 = vunpack.c.0.s8 %v3085
        %v3087 = vlaneseq
        %v3088 = vshrl.u32 %v3087, 7
        %v3089 = vsub.s32 %v3086, %v3088
        %v3090 = vrot.slane %v3076, %v3089
        %v3091 = vcombine.high %v3083, %v3083
        %v3092 = vcombine.high %v3090, %v3090
        %3093 = vrot.lane.b32.xlu0 %v3083, 105
        %v3094 = vpop.permute.xlu0 %3093
        %3095 = vrot.lane.b32.xlu0 %v3091, 105
        %v3096 = vpop.permute.xlu0 %3095
        %3097 = vrot.lane.b32.xlu0 %v3090, 105
        %v3098 = vpop.permute.xlu0 %3097
        %3099 = vrot.lane.b32.xlu0 %v3092, 105
        %v3100 = vpop.permute.xlu0 %3099
        %vm3101 = vcmask 859136
        %v3102 = vsel %vm3101, %v3094, %v3096
        %v3103 = vsel %vm3101, %v3096, %v3098
        %v3104 = vsel %vm3101, %v3098, %v3100
        %v3106 = vsel %vm2112, %v3073, 0
        %v3109 = vsel %vm2072, %v3102, 0
        %v3112 = vsel %vm2072, %v3103, 0
        %v3115 = vsel %vm2072, %v3104, 0
        %3117 = vmatprep.subr.bf16.mxu0 %v3112
        %3118 = vmatpush1.bf16.msra.mxu0 %v3109
        %3119 = vmatprep.subr.bf16.mxu0 0
        %3120 = vmatpush1.bf16.msra.mxu0 0
        %3121 = vmatprep.subr.bf16.mxu0 0
        %3122 = vmatpush1.bf16.msra.mxu0 0
        %3123 = vmatprep.subr.bf16.mxu0 0
        %3124 = vmatpush1.bf16.msra.mxu0 0
        %3125 = vmatprep.subr.bf16.mxu0 0
        %3126 = vmatpush1.bf16.msra.mxu0 0
        %3127 = vmatprep.subr.bf16.mxu0 0
        %3128 = vmatpush1.bf16.msra.mxu0 0
        %3129 = vmatprep.subr.bf16.mxu0 0
        %3130 = vmatpush1.bf16.msra.mxu0 0
        %3131 = vmatprep.subr.bf16.mxu0 0
        %3132 = vmatpush1.bf16.msra.mxu0 0
        %3133 = vmatprep.subr.bf16.mxu0 0
        %3134 = vmatpush1.bf16.msra.mxu0 0
        %3135 = vmatprep.subr.bf16.mxu0 0
        %3136 = vmatpush1.bf16.msra.mxu0 0
        %3137 = vmatprep.subr.bf16.mxu0 0
        %3138 = vmatpush1.bf16.msra.mxu0 0
        %3139 = vmatprep.subr.bf16.mxu0 0
        %3140 = vmatpush1.bf16.msra.mxu0 0
        %3141 = vmatprep.subr.bf16.mxu0 0
        %3142 = vmatpush1.bf16.msra.mxu0 0
        %3143 = vmatprep.subr.bf16.mxu0 0
        %3144 = vmatpush1.bf16.msra.mxu0 0
        %3145 = vmatprep.subr.bf16.mxu0 0
        %3146 = vmatpush1.bf16.msra.mxu0 0
        %3147 = vmatprep.subr.bf16.mxu0 0
        %3148 = vmatpush1.bf16.msra.mxu0 0
        %3149 = vmatprep.mubr.bf16.mxu0 0
        %3150 = vmatmul.mubr.bf16.gmra.mrb[0].mxu0 %v3106
        %v3151 = vpop.f32.mrb[0].mxu0
        %v3152 = vadd.f32 0.0, %v3151
        %v3153 = vpop.f32.mrb[0].mxu0
        %v3154 = vadd.f32 0.0, %v3153
        %v3155 = vpop.f32.mrb[0].mxu0
        %v3156 = vpop.f32.mrb[0].mxu0
        %3157 = vdwg.mxu0
        %3158 = vmatprep.subr.bf16.mxu0 0
        %3159 = vmatpush1.bf16.msra.mxu0 %v3115
        %3160 = vmatprep.subr.bf16.mxu0 0
        %3161 = vmatpush1.bf16.msra.mxu0 0
        %3162 = vmatprep.subr.bf16.mxu0 0
        %3163 = vmatpush1.bf16.msra.mxu0 0
        %3164 = vmatprep.subr.bf16.mxu0 0
        %3165 = vmatpush1.bf16.msra.mxu0 0
        %3166 = vmatprep.subr.bf16.mxu0 0
        %3167 = vmatpush1.bf16.msra.mxu0 0
        %3168 = vmatprep.subr.bf16.mxu0 0
        %3169 = vmatpush1.bf16.msra.mxu0 0
        %3170 = vmatprep.subr.bf16.mxu0 0
        %3171 = vmatpush1.bf16.msra.mxu0 0
        %3172 = vmatprep.subr.bf16.mxu0 0
        %3173 = vmatpush1.bf16.msra.mxu0 0
        %3174 = vmatprep.subr.bf16.mxu0 0
        %3175 = vmatpush1.bf16.msra.mxu0 0
        %3176 = vmatprep.subr.bf16.mxu0 0
        %3177 = vmatpush1.bf16.msra.mxu0 0
        %3178 = vmatprep.subr.bf16.mxu0 0
        %3179 = vmatpush1.bf16.msra.mxu0 0
        %3180 = vmatprep.subr.bf16.mxu0 0
        %3181 = vmatpush1.bf16.msra.mxu0 0
        %3182 = vmatprep.subr.bf16.mxu0 0
        %3183 = vmatpush1.bf16.msra.mxu0 0
        %3184 = vmatprep.subr.bf16.mxu0 0
        %3185 = vmatpush1.bf16.msra.mxu0 0
        %3186 = vmatprep.subr.bf16.mxu0 0
        %3187 = vmatpush1.bf16.msra.mxu0 0
        %3188 = vmatprep.subr.bf16.mxu0 0
        %3189 = vmatpush1.bf16.msra.mxu0 0
        %3190 = vmatprep.mubr.bf16.mxu0 0
        %3191 = vmatmul.mubr.bf16.gmra.mrb[0].mxu0 %v3106
        %v3192 = vpop.f32.mrb[0].mxu0
        %v3193 = vadd.f32 0.0, %v3192
        %v3194 = vpop.f32.mrb[0].mxu0
        %v3195 = vpop.f32.mrb[0].mxu0
        %v3196 = vpop.f32.mrb[0].mxu0
        %3197 = vdwg.mxu0
        %v3198 = vadd.f32 %v3069, %v3152
        %v3199 = vadd.f32 %v3070, %v3154
        %v3200 = vadd.f32 %v3071, %v3193
        %v3201 = vld [vmem:[%s9] sm:$0xff]
        %3203 = vset.pattern.permute.xlu0 0
        %3204 = vperm.xlu0 %3203, %v3201
        %v3205 = vpop.permute.xlu0 %3204
        %v3207 = vadd.f32 %v3198, %v3205
        %v3208 = vadd.f32 %v3199, %v3205
        %v3209 = vadd.f32 %v3200, %v3205
        %3210 = vst [vmem:[%s352] sm:$0xff] %v3207
        %3211 = vst [vmem:[%s352 + $0x8] sm:$0xff] %v3208
        %3212 = vst [vmem:[%s352 + $0x10] sm:$0xff] %v3209
        %s3213 = sand.u32 %s247, 1
        %s3214 = scalar_lea.sflag [#allocation5], %s3213
        %s3215 = sand.u32 %s247, 1
        %s3216 = smul.addr %s3215, 24
        %s3217 = scalar_lea.vmem [#allocation4], %s3216
        // Predicated region
        $region61: #{tpu_custom_call.1} parent=59 // pred_check
          %p3218 = pneg %p257
        $region62: #{tpu_custom_call.1} parent=59 // pred_check_branch
          %3220 = sbr.rel (%p3218) target = $region64
        $region63: #{tpu_custom_call.1} parent=59 // pred_region
          %s3222 = ssub.s32 384, 384
          %3223 = vsyncadd %s3214, %s3222
          %s3224 = smul.addr %s24, 3
          %s3225 = smul.addr %s3224, 128
          %s3226 = scalar_lea.hbm %s10, %s3225
          %s3228 = sshll.u32 %s3217, 4
          %s3229 = int_to_ptr.vmem [resolvable:$true] %s3228
          %3231 = dma.vmem_to_hbm [thread:$0]  %s3229, 384, %s3226, %s3214
        $region64: #{tpu_custom_call.1} parent=59 // pred_fallthru
          _
      $region60: #{tpu_custom_call.1} parent=5 // pred_fallthru
        _
      %p3232 = scmp.le.s32.totalorder 2, %s19
      // Predicated region
      $region65: #{tpu_custom_call.1} parent=5 // pred_check
        %p3233 = pneg %p3232
      $region66: #{tpu_custom_call.1} parent=5 // pred_check_branch
        %3235 = sbr.rel (%p3233) target = $region68
      $region67: #{tpu_custom_call.1} parent=5 // pred_region
        %s3236 = ssub.s32 %s19, 2
        // Predicated region
        $region69: #{tpu_custom_call.1} parent=67 // pred_check
          %p3237 = pneg %p263
        $region70: #{tpu_custom_call.1} parent=67 // pred_check_branch
          %3239 = sbr.rel (%p3237) target = $region72
        $region71: #{tpu_custom_call.1} parent=67 // pred_region
          %s3240 = sand.u32 %s248, 1
          %s3241 = scalar_lea.sflag [#allocation5], %s3240
          %s3242 = sand.u32 %s248, 1
          %s3243 = smul.addr %s3242, 24
          %s3244 = scalar_lea.vmem [#allocation4], %s3243
          %3245 = dma.done %s3241, 384
        $region72: #{tpu_custom_call.1} parent=67 // pred_fallthru
          _
      $region68: #{tpu_custom_call.1} parent=5 // pred_fallthru
        _
    $region6: #{tpu_custom_call.1} parent=1 // loop_footer
      %s23 = sadd.s32 1, %s19
    $region7: #{tpu_custom_call.1} parent=1 // loop_footer_branch
      %18 = sbr.rel target = $region3
    $region8: #{tpu_custom_call.1} parent=1 // loop_exit
      _
    %3246 = vsyncpa [#allocation5], 1
    %s3247 = scalar_lea.sflag [#allocation5], 1
    %3248 = vsyncpa %s3247, 1

</llo_original>
